<compile_context>
chip_gen: v5e
topology: v5e:2x2
jax: 0.10.0
libtpu: 0.0.40
codegen_flags: <defaults>
</compile_context>

<pallas_src>
import jax
import jax.numpy as jnp
import numpy as np
from jax.experimental import pallas as pl
from jax.experimental.pallas import tpu as pltpu


def _round_up(n, m):
    return ((n + m - 1) // m) * m


# -----------------------------------------------------------------------------
# Fused forward kernel: one grid step == one tile of BT images.
# Activation row layout is always (spatial_row * BT + image) so every gather is
# an aligned BT-row block slice.
# -----------------------------------------------------------------------------
def _cifar_fused_kernel(xe_ref, xo_ref, A_ref, b1_ref, ec1_ref, oc1_ref,
                        Bm_ref, b2_ref, ec2_ref, oc2_ref,
                        F1_ref, fb1_ref, W2_ref, fb2_ref, W3_ref, fb3_ref,
                        out_ref):
    f32 = jnp.float32
    bf16 = jnp.bfloat16
    BT = out_ref.shape[0]

    # ---- conv1 (3->6, 5x5 valid) + ReLU: two batched K-stacked GEMMs ---------
    def conv1(lhs):                                    # lhs: (14*BT, 480) bf16
        y = jnp.dot(lhs, A_ref[...], preferred_element_type=f32)
        return jnp.maximum(y + b1_ref[...], 0.0)       # (14*BT, 168) f32

    c1_even = conv1(xe_ref[...])                       # output rows i1 = 2*r1
    c1_odd = conv1(xo_ref[...])                        # output rows i1 = 2*r1+1

    # ---- pool1: row max == even/odd max; column max via 0/1 selector GEMMs ---
    rmax1 = jnp.maximum(c1_even, c1_odd).astype(bf16)  # (14*BT, 168)
    pool1 = jnp.maximum(
        jnp.dot(rmax1, ec1_ref[...], preferred_element_type=f32),
        jnp.dot(rmax1, oc1_ref[...], preferred_element_type=f32),
    ).astype(bf16)                                     # (14*BT, 84), row = i2*BT+img

    # ---- conv2 (6->16, 5x5 valid) + ReLU: aligned row-block gathers ----------
    rows = [pool1[i2 * BT:(i2 + 1) * BT, :] for i2 in range(14)]
    slabs = [jnp.concatenate([rows[off + 2 * r] for r in range(5)], axis=0)
             for off in range(6)]                      # each (5*BT, 84)

    def conv2(parity):
        acc = jnp.dot(slabs[parity], Bm_ref[0], preferred_element_type=f32)
        for di in range(1, 5):
            acc = acc + jnp.dot(slabs[parity + di], Bm_ref[di],
                                preferred_element_type=f32)
        return jnp.maximum(acc + b2_ref[...], 0.0)     # (5*BT, 160)

    c2_even = conv2(0)                                 # output rows i3 = 2*r3
    c2_odd = conv2(1)                                  # output rows i3 = 2*r3+1

    # ---- pool2 ---------------------------------------------------------------
    rmax2 = jnp.maximum(c2_even, c2_odd).astype(bf16)  # (5*BT, 160)
    pool2 = jnp.maximum(
        jnp.dot(rmax2, ec2_ref[...], preferred_element_type=f32),
        jnp.dot(rmax2, oc2_ref[...], preferred_element_type=f32),
    ).astype(bf16)                                     # (5*BT, 80), row = h*BT+img

    # ---- fc1 (400->120): 5 aligned row blocks x per-spatial-row weight slabs -
    acc = jnp.dot(pool2[0:BT, :], F1_ref[0], preferred_element_type=f32)
    for h in range(1, 5):
        acc = acc + jnp.dot(pool2[h * BT:(h + 1) * BT, :], F1_ref[h],
                            preferred_element_type=f32)
    y1 = jnp.maximum(acc + fb1_ref[...], 0.0).astype(bf16)        # (BT, 120)

    # ---- fc2 + ReLU, fc3 -----------------------------------------------------
    y2 = jnp.maximum(jnp.dot(y1, W2_ref[...], preferred_element_type=f32)
                     + fb2_ref[...], 0.0).astype(bf16)             # (BT, 84)
    out_ref[...] = (jnp.dot(y2, W3_ref[...], preferred_element_type=f32)
                    + fb3_ref[...])                                # (BT, 10) f32


# -----------------------------------------------------------------------------
# Host-side packing: PyTorch-layout weights -> structured kernel operands
# -----------------------------------------------------------------------------
def init_torch_params(key):
    ks = jax.random.split(key, 10)
    s = 0.1
    return {
        "conv1_w": jax.random.normal(ks[0], (6, 3, 5, 5), jnp.float32) * s,
        "conv1_b": jax.random.normal(ks[1], (6,), jnp.float32) * s,
        "conv2_w": jax.random.normal(ks[2], (16, 6, 5, 5), jnp.float32) * s,
        "conv2_b": jax.random.normal(ks[3], (16,), jnp.float32) * s,
        "fc1_w": jax.random.normal(ks[4], (120, 400), jnp.float32) * s,
        "fc1_b": jax.random.normal(ks[5], (120,), jnp.float32) * s,
        "fc2_w": jax.random.normal(ks[6], (84, 120), jnp.float32) * s,
        "fc2_b": jax.random.normal(ks[7], (84,), jnp.float32) * s,
        "fc3_w": jax.random.normal(ks[8], (10, 84), jnp.float32) * s,
        "fc3_b": jax.random.normal(ks[9], (10,), jnp.float32) * s,
    }


def pack_params(tp):
    w1 = np.asarray(tp["conv1_w"]); b1 = np.asarray(tp["conv1_b"])
    w2 = np.asarray(tp["conv2_w"]); b2 = np.asarray(tp["conv2_b"])
    f1 = np.asarray(tp["fc1_w"]);  fb1 = np.asarray(tp["fc1_b"])
    f2 = np.asarray(tp["fc2_w"]);  fb2 = np.asarray(tp["fc2_b"])
    f3 = np.asarray(tp["fc3_w"]);  fb3 = np.asarray(tp["fc3_b"])

    # conv1 as ONE K-stacked banded matrix A: (5*96, 168).
    # out1[(i,b), co*28+j] = sum_{di,c,dj} x[b, c, i+di, j+dj] * w1[co,c,di,dj]
    A = np.zeros((480, 168), np.float32)
    for di in range(5):
        for c in range(3):
            for dj in range(5):
                for co in range(6):
                    for j in range(28):
                        A[di * 96 + c * 32 + j + dj, co * 28 + j] = w1[co, c, di, dj]
    b1_row = np.zeros((1, 168), np.float32)
    for co in range(6):
        b1_row[0, co * 28:(co + 1) * 28] = b1[co]

    # conv2 banded matrices Bm[di]: (84, 160); input lane layout q*14 + w.
    Bm = np.zeros((5, 84, 160), np.float32)
    for di in range(5):
        for q in range(6):
            for dj in range(5):
                for co in range(16):
                    for j in range(10):
                        Bm[di, q * 14 + j + dj, co * 10 + j] = w2[co, q, di, dj]
    b2_row = np.zeros((1, 160), np.float32)
    for co in range(16):
        b2_row[0, co * 10:(co + 1) * 10] = b2[co]

    # 2x2 max-pool column (lane) selectors; row pooling is the even/odd max.
    ec1 = np.zeros((168, 84), np.float32); oc1 = np.zeros((168, 84), np.float32)
    for q in range(6):
        for w in range(14):
            ec1[q * 28 + 2 * w, q * 14 + w] = 1.0
            oc1[q * 28 + 2 * w + 1, q * 14 + w] = 1.0
    ec2 = np.zeros((160, 80), np.float32); oc2 = np.zeros((160, 80), np.float32)
    for co in range(16):
        for w in range(5):
            ec2[co * 10 + 2 * w, co * 5 + w] = 1.0
            oc2[co * 10 + 2 * w + 1, co * 5 + w] = 1.0

    # fc1 as 5 per-spatial-row slabs (80, 120); kernel feature order (co*5 + w),
    # PyTorch flatten order (co*25 + h*5 + w) -> permutation folded here.
    F1 = np.zeros((5, 80, 120), np.float32)
    for h in range(5):
        for co in range(16):
            for w in range(5):
                F1[h, co * 5 + w, :] = f1[:, co * 25 + h * 5 + w]

    bf = jnp.bfloat16
    return {
        "A": jnp.asarray(A, bf), "b1": jnp.asarray(b1_row),
        "ec1": jnp.asarray(ec1, bf), "oc1": jnp.asarray(oc1, bf),
        "Bm": jnp.asarray(Bm, bf), "b2": jnp.asarray(b2_row),
        "ec2": jnp.asarray(ec2, bf), "oc2": jnp.asarray(oc2, bf),
        "F1": jnp.asarray(F1, bf), "fb1": jnp.asarray(fb1.reshape(1, 120)),
        "W2": jnp.asarray(f2.T, bf), "fb2": jnp.asarray(fb2.reshape(1, 84)),
        "W3": jnp.asarray(f3.T, bf), "fb3": jnp.asarray(fb3.reshape(1, 10)),
    }


# -----------------------------------------------------------------------------
# Pallas wrapper: one fused launch, grid over batch tiles (parallel across TCs)
# -----------------------------------------------------------------------------
def cifar_net_forward(x_nchw, kp, *, block_batch=64):
    B = x_nchw.shape[0]
    assert x_nchw.shape[1:] == (3, 32, 32)

    # Batch tile: multiple of 16 (bf16 sublane packing), capped at block_batch.
    BT = min(_round_up(block_batch, 16), _round_up(B, 16))
    G = _round_up(B, BT) // BT
    B_pad = G * BT

    # NCHW -> (B, 32, 96): rows = h (sublanes), lanes = c*32 + w; bf16 once.
    x2d = (jnp.transpose(x_nchw, (0, 2, 1, 3))
           .reshape(B, 32, 96).astype(jnp.bfloat16))
    if B_pad != B:
        x2d = jnp.pad(x2d, ((0, B_pad - B), (0, 0), (0, 0)))

    # K-stacked conv1 LHS for even/odd output rows, grouped per batch tile:
    #   x_par[g, r1*BT + i, di*96 + f] = x2d[g*BT + i, 2*r1 + parity + di, f]
    def stack(parity):
        cols = [x2d[:, parity + di: parity + di + 27: 2, :] for di in range(5)]
        xs = jnp.concatenate(cols, axis=-1)                     # (B_pad, 14, 480)
        xs = xs.reshape(G, BT, 14, 480).transpose(0, 2, 1, 3)   # (G, 14, BT, 480)
        return xs.reshape(G, 14 * BT, 480)

    xe, xo = stack(0), stack(1)

    weights = (kp["A"], kp["b1"], kp["ec1"], kp["oc1"],
               kp["Bm"], kp["b2"], kp["ec2"], kp["oc2"],
               kp["F1"], kp["fb1"], kp["W2"], kp["fb2"], kp["W3"], kp["fb3"])

    def resident(arr):  # full-array block, constant index -> fetched once
        zeros = (0,) * arr.ndim
        return pl.BlockSpec(arr.shape, lambda g, _z=zeros: _z)

    in_specs = ([pl.BlockSpec((None, 14 * BT, 480), lambda g: (g, 0, 0))] * 2
                + [resident(a) for a in weights])

    out = pl.pallas_call(
        _cifar_fused_kernel,
        out_shape=jax.ShapeDtypeStruct((B_pad, 10), jnp.float32),
        grid=(G,),
        in_specs=in_specs,
        out_specs=pl.BlockSpec((BT, 10), lambda g: (g, 0)),
        compiler_params=pltpu.CompilerParams(
            dimension_semantics=("parallel",),
            vmem_limit_bytes=32 * 1024 * 1024),
    )(xe, xo, *weights)
    return out[:B]


# -----------------------------------------------------------------------------
# Pure-JAX reference (mirrors the PyTorch module) for a sanity check
# -----------------------------------------------------------------------------
def cifar_net_reference(x, tp):
    dn = ("NCHW", "OIHW", "NCHW")
    y = jax.lax.conv_general_dilated(x, tp["conv1_w"], (1, 1), "VALID",
                                     dimension_numbers=dn)
    y = jnp.maximum(y + tp["conv1_b"][None, :, None, None], 0.0)
    y = jax.lax.reduce_window(y, -jnp.inf, jax.lax.max,
                              (1, 1, 2, 2), (1, 1, 2, 2), "VALID")
    y = jax.lax.conv_general_dilated(y, tp["conv2_w"], (1, 1), "VALID",
                                     dimension_numbers=dn)
    y = jnp.maximum(y + tp["conv2_b"][None, :, None, None], 0.0)
    y = jax.lax.reduce_window(y, -jnp.inf, jax.lax.max,
                              (1, 1, 2, 2), (1, 1, 2, 2), "VALID")
    f = y.reshape(y.shape[0], 16 * 5 * 5)                     # (C,H,W) flatten
    z = jnp.maximum(f @ tp["fc1_w"].T + tp["fc1_b"], 0.0)
    z = jnp.maximum(z @ tp["fc2_w"].T + tp["fc2_b"], 0.0)
    return z @ tp["fc3_w"].T + tp["fc3_b"]


if __name__ == "__main__":
    key = jax.random.PRNGKey(0)
    pkey, xkey = jax.random.split(key)
    torch_params = init_torch_params(pkey)
    kernel_params = pack_params(torch_params)

    x = jax.random.normal(xkey, (2, 3, 32, 32), jnp.float32)

    fwd = jax.jit(cifar_net_forward)
    out = jax.block_until_ready(fwd(x, kernel_params))
    assert out.shape == (2, 10), out.shape
    assert out.dtype == jnp.float32

    ref = jax.block_until_ready(cifar_net_reference(x, torch_params))
    max_err = float(jnp.max(jnp.abs(out - ref)))
    scale = float(jnp.max(jnp.abs(ref)))
    # bf16 matmul operands / f32 accumulation -> scale-aware tolerance.
    assert max_err <= 5e-2 * (1.0 + scale), (max_err, scale)

    print("KERNEL_OK")
</pallas_src>

<mosaic_0001>
module attributes {stable_mosaic.version = 11 : i64} {
  func.func @_cifar_fused_kernel(%arg0: i32, %arg1: memref<1x224x480xbf16, #tpu.memory_space<vmem>>, %arg2: memref<1x224x480xbf16, #tpu.memory_space<vmem>>, %arg3: memref<480x168xbf16, #tpu.memory_space<vmem>>, %arg4: memref<1x168xf32, #tpu.memory_space<vmem>>, %arg5: memref<168x84xbf16, #tpu.memory_space<vmem>>, %arg6: memref<168x84xbf16, #tpu.memory_space<vmem>>, %arg7: memref<5x84x160xbf16, #tpu.memory_space<vmem>>, %arg8: memref<1x160xf32, #tpu.memory_space<vmem>>, %arg9: memref<160x80xbf16, #tpu.memory_space<vmem>>, %arg10: memref<160x80xbf16, #tpu.memory_space<vmem>>, %arg11: memref<5x80x120xbf16, #tpu.memory_space<vmem>>, %arg12: memref<1x120xf32, #tpu.memory_space<vmem>>, %arg13: memref<120x84xbf16, #tpu.memory_space<vmem>>, %arg14: memref<1x84xf32, #tpu.memory_space<vmem>>, %arg15: memref<84x10xbf16, #tpu.memory_space<vmem>>, %arg16: memref<1x10xf32, #tpu.memory_space<vmem>>, %arg17: memref<16x10xf32, #tpu.memory_space<vmem>>) attributes {dimension_semantics = [#tpu.dimension_semantics<parallel>], iteration_bounds = array<i64: 1>, scalar_prefetch = 0 : i64, scratch_operands = 0 : i64, tpu.core_type = #tpu.core_type<tc>, window_params = [{transform_indices = @transform_0, window_bounds = array<i64: 1, 224, 480>}, {transform_indices = @transform_1, window_bounds = array<i64: 1, 224, 480>}, {pipeline_mode = #tpu.pipeline_mode<synchronous>, transform_indices = @transform_2, window_bounds = array<i64: 480, 168>}, {pipeline_mode = #tpu.pipeline_mode<synchronous>, transform_indices = @transform_3, window_bounds = array<i64: 1, 168>}, {pipeline_mode = #tpu.pipeline_mode<synchronous>, transform_indices = @transform_4, window_bounds = array<i64: 168, 84>}, {pipeline_mode = #tpu.pipeline_mode<synchronous>, transform_indices = @transform_5, window_bounds = array<i64: 168, 84>}, {pipeline_mode = #tpu.pipeline_mode<synchronous>, transform_indices = @transform_6, window_bounds = array<i64: 5, 84, 160>}, {pipeline_mode = #tpu.pipeline_mode<synchronous>, transform_indices = @transform_7, window_bounds = array<i64: 1, 160>}, {pipeline_mode = #tpu.pipeline_mode<synchronous>, transform_indices = @transform_8, window_bounds = array<i64: 160, 80>}, {pipeline_mode = #tpu.pipeline_mode<synchronous>, transform_indices = @transform_9, window_bounds = array<i64: 160, 80>}, {pipeline_mode = #tpu.pipeline_mode<synchronous>, transform_indices = @transform_10, window_bounds = array<i64: 5, 80, 120>}, {pipeline_mode = #tpu.pipeline_mode<synchronous>, transform_indices = @transform_11, window_bounds = array<i64: 1, 120>}, {pipeline_mode = #tpu.pipeline_mode<synchronous>, transform_indices = @transform_12, window_bounds = array<i64: 120, 84>}, {pipeline_mode = #tpu.pipeline_mode<synchronous>, transform_indices = @transform_13, window_bounds = array<i64: 1, 84>}, {pipeline_mode = #tpu.pipeline_mode<synchronous>, transform_indices = @transform_14, window_bounds = array<i64: 84, 10>}, {pipeline_mode = #tpu.pipeline_mode<synchronous>, transform_indices = @transform_15, window_bounds = array<i64: 1, 10>}, {transform_indices = @transform_16, window_bounds = array<i64: 16, 10>}]} {
    %c0 = arith.constant 0 : index
    %c0_0 = arith.constant 0 : index
    %c0_1 = arith.constant 0 : index
    %0 = vector.load %arg1[%c0, %c0_0, %c0_1] : memref<1x224x480xbf16, #tpu.memory_space<vmem>>, vector<1x224x480xbf16>
    %1 = vector.shape_cast %0 : vector<1x224x480xbf16> to vector<224x480xbf16>
    %c0_2 = arith.constant 0 : index
    %c0_3 = arith.constant 0 : index
    %2 = vector.load %arg3[%c0_2, %c0_3] : memref<480x168xbf16, #tpu.memory_space<vmem>>, vector<480x168xbf16>
    %cst = arith.constant dense<0.000000e+00> : vector<224x168xf32>
    %3 = tpu.matmul %1, %2, %cst {dimension_numbers = #tpu.dot_dimension_numbers<[1], [0], [0], [1], [0, 0, 1, 1], [], []>} : vector<224x480xbf16>, vector<480x168xbf16>, vector<224x168xf32> -> vector<224x168xf32>
    %c0_4 = arith.constant 0 : index
    %c0_5 = arith.constant 0 : index
    %4 = vector.load %arg4[%c0_4, %c0_5] : memref<1x168xf32, #tpu.memory_space<vmem>>, vector<1x168xf32>
    %5 = vector.broadcast %4 : vector<1x168xf32> to vector<224x168xf32>
    %6 = arith.addf %3, %5 : vector<224x168xf32>
    %cst_6 = arith.constant 0.000000e+00 : f32
    %7 = vector.broadcast %cst_6 : f32 to vector<224x168xf32>
    %8 = arith.maximumf %6, %7 : vector<224x168xf32>
    %c0_7 = arith.constant 0 : index
    %c0_8 = arith.constant 0 : index
    %c0_9 = arith.constant 0 : index
    %9 = vector.load %arg2[%c0_7, %c0_8, %c0_9] : memref<1x224x480xbf16, #tpu.memory_space<vmem>>, vector<1x224x480xbf16>
    %10 = vector.shape_cast %9 : vector<1x224x480xbf16> to vector<224x480xbf16>
    %c0_10 = arith.constant 0 : index
    %c0_11 = arith.constant 0 : index
    %11 = vector.load %arg3[%c0_10, %c0_11] : memref<480x168xbf16, #tpu.memory_space<vmem>>, vector<480x168xbf16>
    %cst_12 = arith.constant dense<0.000000e+00> : vector<224x168xf32>
    %12 = tpu.matmul %10, %11, %cst_12 {dimension_numbers = #tpu.dot_dimension_numbers<[1], [0], [0], [1], [0, 0, 1, 1], [], []>} : vector<224x480xbf16>, vector<480x168xbf16>, vector<224x168xf32> -> vector<224x168xf32>
    %c0_13 = arith.constant 0 : index
    %c0_14 = arith.constant 0 : index
    %13 = vector.load %arg4[%c0_13, %c0_14] : memref<1x168xf32, #tpu.memory_space<vmem>>, vector<1x168xf32>
    %14 = vector.broadcast %13 : vector<1x168xf32> to vector<224x168xf32>
    %15 = arith.addf %12, %14 : vector<224x168xf32>
    %cst_15 = arith.constant 0.000000e+00 : f32
    %16 = vector.broadcast %cst_15 : f32 to vector<224x168xf32>
    %17 = arith.maximumf %15, %16 : vector<224x168xf32>
    %18 = arith.maximumf %8, %17 : vector<224x168xf32>
    %19 = arith.truncf %18 : vector<224x168xf32> to vector<224x168xbf16>
    %c0_16 = arith.constant 0 : index
    %c0_17 = arith.constant 0 : index
    %20 = vector.load %arg5[%c0_16, %c0_17] : memref<168x84xbf16, #tpu.memory_space<vmem>>, vector<168x84xbf16>
    %cst_18 = arith.constant dense<0.000000e+00> : vector<224x84xf32>
    %21 = tpu.matmul %19, %20, %cst_18 {dimension_numbers = #tpu.dot_dimension_numbers<[1], [0], [0], [1], [0, 0, 1, 1], [], []>} : vector<224x168xbf16>, vector<168x84xbf16>, vector<224x84xf32> -> vector<224x84xf32>
    %c0_19 = arith.constant 0 : index
    %c0_20 = arith.constant 0 : index
    %22 = vector.load %arg6[%c0_19, %c0_20] : memref<168x84xbf16, #tpu.memory_space<vmem>>, vector<168x84xbf16>
    %cst_21 = arith.constant dense<0.000000e+00> : vector<224x84xf32>
    %23 = tpu.matmul %19, %22, %cst_21 {dimension_numbers = #tpu.dot_dimension_numbers<[1], [0], [0], [1], [0, 0, 1, 1], [], []>} : vector<224x168xbf16>, vector<168x84xbf16>, vector<224x84xf32> -> vector<224x84xf32>
    %24 = arith.maximumf %21, %23 : vector<224x84xf32>
    %25 = arith.truncf %24 : vector<224x84xf32> to vector<224x84xbf16>
    %26 = vector.extract_strided_slice %25 {offsets = [0, 0], sizes = [16, 84], strides = [1, 1]} : vector<224x84xbf16> to vector<16x84xbf16>
    %27 = vector.extract_strided_slice %25 {offsets = [16, 0], sizes = [16, 84], strides = [1, 1]} : vector<224x84xbf16> to vector<16x84xbf16>
    %28 = vector.extract_strided_slice %25 {offsets = [32, 0], sizes = [16, 84], strides = [1, 1]} : vector<224x84xbf16> to vector<16x84xbf16>
    %29 = vector.extract_strided_slice %25 {offsets = [48, 0], sizes = [16, 84], strides = [1, 1]} : vector<224x84xbf16> to vector<16x84xbf16>
    %30 = vector.extract_strided_slice %25 {offsets = [64, 0], sizes = [16, 84], strides = [1, 1]} : vector<224x84xbf16> to vector<16x84xbf16>
    %31 = vector.extract_strided_slice %25 {offsets = [80, 0], sizes = [16, 84], strides = [1, 1]} : vector<224x84xbf16> to vector<16x84xbf16>
    %32 = vector.extract_strided_slice %25 {offsets = [96, 0], sizes = [16, 84], strides = [1, 1]} : vector<224x84xbf16> to vector<16x84xbf16>
    %33 = vector.extract_strided_slice %25 {offsets = [112, 0], sizes = [16, 84], strides = [1, 1]} : vector<224x84xbf16> to vector<16x84xbf16>
    %34 = vector.extract_strided_slice %25 {offsets = [128, 0], sizes = [16, 84], strides = [1, 1]} : vector<224x84xbf16> to vector<16x84xbf16>
    %35 = vector.extract_strided_slice %25 {offsets = [144, 0], sizes = [16, 84], strides = [1, 1]} : vector<224x84xbf16> to vector<16x84xbf16>
    %36 = vector.extract_strided_slice %25 {offsets = [160, 0], sizes = [16, 84], strides = [1, 1]} : vector<224x84xbf16> to vector<16x84xbf16>
    %37 = vector.extract_strided_slice %25 {offsets = [176, 0], sizes = [16, 84], strides = [1, 1]} : vector<224x84xbf16> to vector<16x84xbf16>
    %38 = vector.extract_strided_slice %25 {offsets = [192, 0], sizes = [16, 84], strides = [1, 1]} : vector<224x84xbf16> to vector<16x84xbf16>
    %39 = vector.extract_strided_slice %25 {offsets = [208, 0], sizes = [16, 84], strides = [1, 1]} : vector<224x84xbf16> to vector<16x84xbf16>
    %40 = tpu.concatenate %26, %28, %30, %32, %34 in 0 : vector<16x84xbf16>, vector<16x84xbf16>, vector<16x84xbf16>, vector<16x84xbf16>, vector<16x84xbf16> -> vector<80x84xbf16>
    %41 = tpu.concatenate %27, %29, %31, %33, %35 in 0 : vector<16x84xbf16>, vector<16x84xbf16>, vector<16x84xbf16>, vector<16x84xbf16>, vector<16x84xbf16> -> vector<80x84xbf16>
    %42 = tpu.concatenate %28, %30, %32, %34, %36 in 0 : vector<16x84xbf16>, vector<16x84xbf16>, vector<16x84xbf16>, vector<16x84xbf16>, vector<16x84xbf16> -> vector<80x84xbf16>
    %43 = tpu.concatenate %29, %31, %33, %35, %37 in 0 : vector<16x84xbf16>, vector<16x84xbf16>, vector<16x84xbf16>, vector<16x84xbf16>, vector<16x84xbf16> -> vector<80x84xbf16>
    %44 = tpu.concatenate %30, %32, %34, %36, %38 in 0 : vector<16x84xbf16>, vector<16x84xbf16>, vector<16x84xbf16>, vector<16x84xbf16>, vector<16x84xbf16> -> vector<80x84xbf16>
    %45 = tpu.concatenate %31, %33, %35, %37, %39 in 0 : vector<16x84xbf16>, vector<16x84xbf16>, vector<16x84xbf16>, vector<16x84xbf16>, vector<16x84xbf16> -> vector<80x84xbf16>
    %c0_22 = arith.constant 0 : index
    %c0_23 = arith.constant 0 : index
    %c0_24 = arith.constant 0 : index
    %46 = vector.load %arg7[%c0_22, %c0_23, %c0_24] : memref<5x84x160xbf16, #tpu.memory_space<vmem>>, vector<1x84x160xbf16>
    %47 = vector.shape_cast %46 : vector<1x84x160xbf16> to vector<84x160xbf16>
    %cst_25 = arith.constant dense<0.000000e+00> : vector<80x160xf32>
    %48 = tpu.matmul %40, %47, %cst_25 {dimension_numbers = #tpu.dot_dimension_numbers<[1], [0], [0], [1], [0, 0, 1, 1], [], []>} : vector<80x84xbf16>, vector<84x160xbf16>, vector<80x160xf32> -> vector<80x160xf32>
    %c1 = arith.constant 1 : index
    %c0_26 = arith.constant 0 : index
    %c0_27 = arith.constant 0 : index
    %49 = vector.load %arg7[%c1, %c0_26, %c0_27] : memref<5x84x160xbf16, #tpu.memory_space<vmem>>, vector<1x84x160xbf16>
    %50 = vector.shape_cast %49 : vector<1x84x160xbf16> to vector<84x160xbf16>
    %cst_28 = arith.constant dense<0.000000e+00> : vector<80x160xf32>
    %51 = tpu.matmul %41, %50, %cst_28 {dimension_numbers = #tpu.dot_dimension_numbers<[1], [0], [0], [1], [0, 0, 1, 1], [], []>} : vector<80x84xbf16>, vector<84x160xbf16>, vector<80x160xf32> -> vector<80x160xf32>
    %52 = arith.addf %48, %51 : vector<80x160xf32>
    %c2 = arith.constant 2 : index
    %c0_29 = arith.constant 0 : index
    %c0_30 = arith.constant 0 : index
    %53 = vector.load %arg7[%c2, %c0_29, %c0_30] : memref<5x84x160xbf16, #tpu.memory_space<vmem>>, vector<1x84x160xbf16>
    %54 = vector.shape_cast %53 : vector<1x84x160xbf16> to vector<84x160xbf16>
    %cst_31 = arith.constant dense<0.000000e+00> : vector<80x160xf32>
    %55 = tpu.matmul %42, %54, %cst_31 {dimension_numbers = #tpu.dot_dimension_numbers<[1], [0], [0], [1], [0, 0, 1, 1], [], []>} : vector<80x84xbf16>, vector<84x160xbf16>, vector<80x160xf32> -> vector<80x160xf32>
    %56 = arith.addf %52, %55 : vector<80x160xf32>
    %c3 = arith.constant 3 : index
    %c0_32 = arith.constant 0 : index
    %c0_33 = arith.constant 0 : index
    %57 = vector.load %arg7[%c3, %c0_32, %c0_33] : memref<5x84x160xbf16, #tpu.memory_space<vmem>>, vector<1x84x160xbf16>
    %58 = vector.shape_cast %57 : vector<1x84x160xbf16> to vector<84x160xbf16>
    %cst_34 = arith.constant dense<0.000000e+00> : vector<80x160xf32>
    %59 = tpu.matmul %43, %58, %cst_34 {dimension_numbers = #tpu.dot_dimension_numbers<[1], [0], [0], [1], [0, 0, 1, 1], [], []>} : vector<80x84xbf16>, vector<84x160xbf16>, vector<80x160xf32> -> vector<80x160xf32>
    %60 = arith.addf %56, %59 : vector<80x160xf32>
    %c4 = arith.constant 4 : index
    %c0_35 = arith.constant 0 : index
    %c0_36 = arith.constant 0 : index
    %61 = vector.load %arg7[%c4, %c0_35, %c0_36] : memref<5x84x160xbf16, #tpu.memory_space<vmem>>, vector<1x84x160xbf16>
    %62 = vector.shape_cast %61 : vector<1x84x160xbf16> to vector<84x160xbf16>
    %cst_37 = arith.constant dense<0.000000e+00> : vector<80x160xf32>
    %63 = tpu.matmul %44, %62, %cst_37 {dimension_numbers = #tpu.dot_dimension_numbers<[1], [0], [0], [1], [0, 0, 1, 1], [], []>} : vector<80x84xbf16>, vector<84x160xbf16>, vector<80x160xf32> -> vector<80x160xf32>
    %64 = arith.addf %60, %63 : vector<80x160xf32>
    %c0_38 = arith.constant 0 : index
    %c0_39 = arith.constant 0 : index
    %65 = vector.load %arg8[%c0_38, %c0_39] : memref<1x160xf32, #tpu.memory_space<vmem>>, vector<1x160xf32>
    %66 = vector.broadcast %65 : vector<1x160xf32> to vector<80x160xf32>
    %67 = arith.addf %64, %66 : vector<80x160xf32>
    %cst_40 = arith.constant 0.000000e+00 : f32
    %68 = vector.broadcast %cst_40 : f32 to vector<80x160xf32>
    %69 = arith.maximumf %67, %68 : vector<80x160xf32>
    %c0_41 = arith.constant 0 : index
    %c0_42 = arith.constant 0 : index
    %c0_43 = arith.constant 0 : index
    %70 = vector.load %arg7[%c0_41, %c0_42, %c0_43] : memref<5x84x160xbf16, #tpu.memory_space<vmem>>, vector<1x84x160xbf16>
    %71 = vector.shape_cast %70 : vector<1x84x160xbf16> to vector<84x160xbf16>
    %cst_44 = arith.constant dense<0.000000e+00> : vector<80x160xf32>
    %72 = tpu.matmul %41, %71, %cst_44 {dimension_numbers = #tpu.dot_dimension_numbers<[1], [0], [0], [1], [0, 0, 1, 1], [], []>} : vector<80x84xbf16>, vector<84x160xbf16>, vector<80x160xf32> -> vector<80x160xf32>
    %c1_45 = arith.constant 1 : index
    %c0_46 = arith.constant 0 : index
    %c0_47 = arith.constant 0 : index
    %73 = vector.load %arg7[%c1_45, %c0_46, %c0_47] : memref<5x84x160xbf16, #tpu.memory_space<vmem>>, vector<1x84x160xbf16>
    %74 = vector.shape_cast %73 : vector<1x84x160xbf16> to vector<84x160xbf16>
    %cst_48 = arith.constant dense<0.000000e+00> : vector<80x160xf32>
    %75 = tpu.matmul %42, %74, %cst_48 {dimension_numbers = #tpu.dot_dimension_numbers<[1], [0], [0], [1], [0, 0, 1, 1], [], []>} : vector<80x84xbf16>, vector<84x160xbf16>, vector<80x160xf32> -> vector<80x160xf32>
    %76 = arith.addf %72, %75 : vector<80x160xf32>
    %c2_49 = arith.constant 2 : index
    %c0_50 = arith.constant 0 : index
    %c0_51 = arith.constant 0 : index
    %77 = vector.load %arg7[%c2_49, %c0_50, %c0_51] : memref<5x84x160xbf16, #tpu.memory_space<vmem>>, vector<1x84x160xbf16>
    %78 = vector.shape_cast %77 : vector<1x84x160xbf16> to vector<84x160xbf16>
    %cst_52 = arith.constant dense<0.000000e+00> : vector<80x160xf32>
    %79 = tpu.matmul %43, %78, %cst_52 {dimension_numbers = #tpu.dot_dimension_numbers<[1], [0], [0], [1], [0, 0, 1, 1], [], []>} : vector<80x84xbf16>, vector<84x160xbf16>, vector<80x160xf32> -> vector<80x160xf32>
    %80 = arith.addf %76, %79 : vector<80x160xf32>
    %c3_53 = arith.constant 3 : index
    %c0_54 = arith.constant 0 : index
    %c0_55 = arith.constant 0 : index
    %81 = vector.load %arg7[%c3_53, %c0_54, %c0_55] : memref<5x84x160xbf16, #tpu.memory_space<vmem>>, vector<1x84x160xbf16>
    %82 = vector.shape_cast %81 : vector<1x84x160xbf16> to vector<84x160xbf16>
    %cst_56 = arith.constant dense<0.000000e+00> : vector<80x160xf32>
    %83 = tpu.matmul %44, %82, %cst_56 {dimension_numbers = #tpu.dot_dimension_numbers<[1], [0], [0], [1], [0, 0, 1, 1], [], []>} : vector<80x84xbf16>, vector<84x160xbf16>, vector<80x160xf32> -> vector<80x160xf32>
    %84 = arith.addf %80, %83 : vector<80x160xf32>
    %c4_57 = arith.constant 4 : index
    %c0_58 = arith.constant 0 : index
    %c0_59 = arith.constant 0 : index
    %85 = vector.load %arg7[%c4_57, %c0_58, %c0_59] : memref<5x84x160xbf16, #tpu.memory_space<vmem>>, vector<1x84x160xbf16>
    %86 = vector.shape_cast %85 : vector<1x84x160xbf16> to vector<84x160xbf16>
    %cst_60 = arith.constant dense<0.000000e+00> : vector<80x160xf32>
    %87 = tpu.matmul %45, %86, %cst_60 {dimension_numbers = #tpu.dot_dimension_numbers<[1], [0], [0], [1], [0, 0, 1, 1], [], []>} : vector<80x84xbf16>, vector<84x160xbf16>, vector<80x160xf32> -> vector<80x160xf32>
    %88 = arith.addf %84, %87 : vector<80x160xf32>
    %c0_61 = arith.constant 0 : index
    %c0_62 = arith.constant 0 : index
    %89 = vector.load %arg8[%c0_61, %c0_62] : memref<1x160xf32, #tpu.memory_space<vmem>>, vector<1x160xf32>
    %90 = vector.broadcast %89 : vector<1x160xf32> to vector<80x160xf32>
    %91 = arith.addf %88, %90 : vector<80x160xf32>
    %cst_63 = arith.constant 0.000000e+00 : f32
    %92 = vector.broadcast %cst_63 : f32 to vector<80x160xf32>
    %93 = arith.maximumf %91, %92 : vector<80x160xf32>
    %94 = arith.maximumf %69, %93 : vector<80x160xf32>
    %95 = arith.truncf %94 : vector<80x160xf32> to vector<80x160xbf16>
    %c0_64 = arith.constant 0 : index
    %c0_65 = arith.constant 0 : index
    %96 = vector.load %arg9[%c0_64, %c0_65] : memref<160x80xbf16, #tpu.memory_space<vmem>>, vector<160x80xbf16>
    %cst_66 = arith.constant dense<0.000000e+00> : vector<80x80xf32>
    %97 = tpu.matmul %95, %96, %cst_66 {dimension_numbers = #tpu.dot_dimension_numbers<[1], [0], [0], [1], [0, 0, 1, 1], [], []>} : vector<80x160xbf16>, vector<160x80xbf16>, vector<80x80xf32> -> vector<80x80xf32>
    %c0_67 = arith.constant 0 : index
    %c0_68 = arith.constant 0 : index
    %98 = vector.load %arg10[%c0_67, %c0_68] : memref<160x80xbf16, #tpu.memory_space<vmem>>, vector<160x80xbf16>
    %cst_69 = arith.constant dense<0.000000e+00> : vector<80x80xf32>
    %99 = tpu.matmul %95, %98, %cst_69 {dimension_numbers = #tpu.dot_dimension_numbers<[1], [0], [0], [1], [0, 0, 1, 1], [], []>} : vector<80x160xbf16>, vector<160x80xbf16>, vector<80x80xf32> -> vector<80x80xf32>
    %100 = arith.maximumf %97, %99 : vector<80x80xf32>
    %101 = arith.truncf %100 : vector<80x80xf32> to vector<80x80xbf16>
    %102 = vector.extract_strided_slice %101 {offsets = [0, 0], sizes = [16, 80], strides = [1, 1]} : vector<80x80xbf16> to vector<16x80xbf16>
    %c0_70 = arith.constant 0 : index
    %c0_71 = arith.constant 0 : index
    %c0_72 = arith.constant 0 : index
    %103 = vector.load %arg11[%c0_70, %c0_71, %c0_72] : memref<5x80x120xbf16, #tpu.memory_space<vmem>>, vector<1x80x120xbf16>
    %104 = vector.shape_cast %103 : vector<1x80x120xbf16> to vector<80x120xbf16>
    %cst_73 = arith.constant dense<0.000000e+00> : vector<16x120xf32>
    %105 = tpu.matmul %102, %104, %cst_73 {dimension_numbers = #tpu.dot_dimension_numbers<[1], [0], [0], [1], [0, 0, 1, 1], [], []>} : vector<16x80xbf16>, vector<80x120xbf16>, vector<16x120xf32> -> vector<16x120xf32>
    %106 = vector.extract_strided_slice %101 {offsets = [16, 0], sizes = [16, 80], strides = [1, 1]} : vector<80x80xbf16> to vector<16x80xbf16>
    %c1_74 = arith.constant 1 : index
    %c0_75 = arith.constant 0 : index
    %c0_76 = arith.constant 0 : index
    %107 = vector.load %arg11[%c1_74, %c0_75, %c0_76] : memref<5x80x120xbf16, #tpu.memory_space<vmem>>, vector<1x80x120xbf16>
    %108 = vector.shape_cast %107 : vector<1x80x120xbf16> to vector<80x120xbf16>
    %cst_77 = arith.constant dense<0.000000e+00> : vector<16x120xf32>
    %109 = tpu.matmul %106, %108, %cst_77 {dimension_numbers = #tpu.dot_dimension_numbers<[1], [0], [0], [1], [0, 0, 1, 1], [], []>} : vector<16x80xbf16>, vector<80x120xbf16>, vector<16x120xf32> -> vector<16x120xf32>
    %110 = arith.addf %105, %109 : vector<16x120xf32>
    %111 = vector.extract_strided_slice %101 {offsets = [32, 0], sizes = [16, 80], strides = [1, 1]} : vector<80x80xbf16> to vector<16x80xbf16>
    %c2_78 = arith.constant 2 : index
    %c0_79 = arith.constant 0 : index
    %c0_80 = arith.constant 0 : index
    %112 = vector.load %arg11[%c2_78, %c0_79, %c0_80] : memref<5x80x120xbf16, #tpu.memory_space<vmem>>, vector<1x80x120xbf16>
    %113 = vector.shape_cast %112 : vector<1x80x120xbf16> to vector<80x120xbf16>
    %cst_81 = arith.constant dense<0.000000e+00> : vector<16x120xf32>
    %114 = tpu.matmul %111, %113, %cst_81 {dimension_numbers = #tpu.dot_dimension_numbers<[1], [0], [0], [1], [0, 0, 1, 1], [], []>} : vector<16x80xbf16>, vector<80x120xbf16>, vector<16x120xf32> -> vector<16x120xf32>
    %115 = arith.addf %110, %114 : vector<16x120xf32>
    %116 = vector.extract_strided_slice %101 {offsets = [48, 0], sizes = [16, 80], strides = [1, 1]} : vector<80x80xbf16> to vector<16x80xbf16>
    %c3_82 = arith.constant 3 : index
    %c0_83 = arith.constant 0 : index
    %c0_84 = arith.constant 0 : index
    %117 = vector.load %arg11[%c3_82, %c0_83, %c0_84] : memref<5x80x120xbf16, #tpu.memory_space<vmem>>, vector<1x80x120xbf16>
    %118 = vector.shape_cast %117 : vector<1x80x120xbf16> to vector<80x120xbf16>
    %cst_85 = arith.constant dense<0.000000e+00> : vector<16x120xf32>
    %119 = tpu.matmul %116, %118, %cst_85 {dimension_numbers = #tpu.dot_dimension_numbers<[1], [0], [0], [1], [0, 0, 1, 1], [], []>} : vector<16x80xbf16>, vector<80x120xbf16>, vector<16x120xf32> -> vector<16x120xf32>
    %120 = arith.addf %115, %119 : vector<16x120xf32>
    %121 = vector.extract_strided_slice %101 {offsets = [64, 0], sizes = [16, 80], strides = [1, 1]} : vector<80x80xbf16> to vector<16x80xbf16>
    %c4_86 = arith.constant 4 : index
    %c0_87 = arith.constant 0 : index
    %c0_88 = arith.constant 0 : index
    %122 = vector.load %arg11[%c4_86, %c0_87, %c0_88] : memref<5x80x120xbf16, #tpu.memory_space<vmem>>, vector<1x80x120xbf16>
    %123 = vector.shape_cast %122 : vector<1x80x120xbf16> to vector<80x120xbf16>
    %cst_89 = arith.constant dense<0.000000e+00> : vector<16x120xf32>
    %124 = tpu.matmul %121, %123, %cst_89 {dimension_numbers = #tpu.dot_dimension_numbers<[1], [0], [0], [1], [0, 0, 1, 1], [], []>} : vector<16x80xbf16>, vector<80x120xbf16>, vector<16x120xf32> -> vector<16x120xf32>
    %125 = arith.addf %120, %124 : vector<16x120xf32>
    %c0_90 = arith.constant 0 : index
    %c0_91 = arith.constant 0 : index
    %126 = vector.load %arg12[%c0_90, %c0_91] : memref<1x120xf32, #tpu.memory_space<vmem>>, vector<1x120xf32>
    %127 = vector.broadcast %126 : vector<1x120xf32> to vector<16x120xf32>
    %128 = arith.addf %125, %127 : vector<16x120xf32>
    %cst_92 = arith.constant 0.000000e+00 : f32
    %129 = vector.broadcast %cst_92 : f32 to vector<16x120xf32>
    %130 = arith.maximumf %128, %129 : vector<16x120xf32>
    %131 = arith.truncf %130 : vector<16x120xf32> to vector<16x120xbf16>
    %c0_93 = arith.constant 0 : index
    %c0_94 = arith.constant 0 : index
    %132 = vector.load %arg13[%c0_93, %c0_94] : memref<120x84xbf16, #tpu.memory_space<vmem>>, vector<120x84xbf16>
    %cst_95 = arith.constant dense<0.000000e+00> : vector<16x84xf32>
    %133 = tpu.matmul %131, %132, %cst_95 {dimension_numbers = #tpu.dot_dimension_numbers<[1], [0], [0], [1], [0, 0, 1, 1], [], []>} : vector<16x120xbf16>, vector<120x84xbf16>, vector<16x84xf32> -> vector<16x84xf32>
    %c0_96 = arith.constant 0 : index
    %c0_97 = arith.constant 0 : index
    %134 = vector.load %arg14[%c0_96, %c0_97] : memref<1x84xf32, #tpu.memory_space<vmem>>, vector<1x84xf32>
    %135 = vector.broadcast %134 : vector<1x84xf32> to vector<16x84xf32>
    %136 = arith.addf %133, %135 : vector<16x84xf32>
    %cst_98 = arith.constant 0.000000e+00 : f32
    %137 = vector.broadcast %cst_98 : f32 to vector<16x84xf32>
    %138 = arith.maximumf %136, %137 : vector<16x84xf32>
    %139 = arith.truncf %138 : vector<16x84xf32> to vector<16x84xbf16>
    %c0_99 = arith.constant 0 : index
    %c0_100 = arith.constant 0 : index
    %140 = vector.load %arg15[%c0_99, %c0_100] : memref<84x10xbf16, #tpu.memory_space<vmem>>, vector<84x10xbf16>
    %cst_101 = arith.constant dense<0.000000e+00> : vector<16x10xf32>
    %141 = tpu.matmul %139, %140, %cst_101 {dimension_numbers = #tpu.dot_dimension_numbers<[1], [0], [0], [1], [0, 0, 1, 1], [], []>} : vector<16x84xbf16>, vector<84x10xbf16>, vector<16x10xf32> -> vector<16x10xf32>
    %c0_102 = arith.constant 0 : index
    %c0_103 = arith.constant 0 : index
    %142 = vector.load %arg16[%c0_102, %c0_103] : memref<1x10xf32, #tpu.memory_space<vmem>>, vector<1x10xf32>
    %143 = vector.broadcast %142 : vector<1x10xf32> to vector<16x10xf32>
    %144 = arith.addf %141, %143 : vector<16x10xf32>
    %c0_104 = arith.constant 0 : index
    %c0_105 = arith.constant 0 : index
    %145 = vector.load %arg17[%c0_104, %c0_105] : memref<16x10xf32, #tpu.memory_space<vmem>>, vector<16x10xf32>
    tpu.vector_store %arg17[%c0_104, %c0_105], %144 {strides = array<i32>} : memref<16x10xf32, #tpu.memory_space<vmem>>, vector<16x10xf32>,
    return
  }
  func.func @transform_0(%arg0: i32) -> (i32, i32, i32) {
    %c0_i32 = arith.constant 0 : i32
    %c0_i32_0 = arith.constant 0 : i32
    %c0_i32_1 = arith.constant 0 : i32
    return %arg0, %c0_i32, %c0_i32_0 : i32, i32, i32
  }
  func.func @transform_1(%arg0: i32) -> (i32, i32, i32) {
    %c0_i32 = arith.constant 0 : i32
    %c0_i32_0 = arith.constant 0 : i32
    %c0_i32_1 = arith.constant 0 : i32
    return %arg0, %c0_i32, %c0_i32_0 : i32, i32, i32
  }
  func.func @transform_2(%arg0: i32) -> (i32, i32) {
    %c0_i32 = arith.constant 0 : i32
    %c0_i32_0 = arith.constant 0 : i32
    %c0_i32_1 = arith.constant 0 : i32
    return %c0_i32, %c0_i32_0 : i32, i32
  }
  func.func @transform_3(%arg0: i32) -> (i32, i32) {
    %c0_i32 = arith.constant 0 : i32
    %c0_i32_0 = arith.constant 0 : i32
    %c0_i32_1 = arith.constant 0 : i32
    return %c0_i32, %c0_i32_0 : i32, i32
  }
  func.func @transform_4(%arg0: i32) -> (i32, i32) {
    %c0_i32 = arith.constant 0 : i32
    %c0_i32_0 = arith.constant 0 : i32
    %c0_i32_1 = arith.constant 0 : i32
    return %c0_i32, %c0_i32_0 : i32, i32
  }
  func.func @transform_5(%arg0: i32) -> (i32, i32) {
    %c0_i32 = arith.constant 0 : i32
    %c0_i32_0 = arith.constant 0 : i32
    %c0_i32_1 = arith.constant 0 : i32
    return %c0_i32, %c0_i32_0 : i32, i32
  }
  func.func @transform_6(%arg0: i32) -> (i32, i32, i32) {
    %c0_i32 = arith.constant 0 : i32
    %c0_i32_0 = arith.constant 0 : i32
    %c0_i32_1 = arith.constant 0 : i32
    %c0_i32_2 = arith.constant 0 : i32
    return %c0_i32, %c0_i32_0, %c0_i32_1 : i32, i32, i32
  }
  func.func @transform_7(%arg0: i32) -> (i32, i32) {
    %c0_i32 = arith.constant 0 : i32
    %c0_i32_0 = arith.constant 0 : i32
    %c0_i32_1 = arith.constant 0 : i32
    return %c0_i32, %c0_i32_0 : i32, i32
  }
  func.func @transform_8(%arg0: i32) -> (i32, i32) {
    %c0_i32 = arith.constant 0 : i32
    %c0_i32_0 = arith.constant 0 : i32
    %c0_i32_1 = arith.constant 0 : i32
    return %c0_i32, %c0_i32_0 : i32, i32
  }
  func.func @transform_9(%arg0: i32) -> (i32, i32) {
    %c0_i32 = arith.constant 0 : i32
    %c0_i32_0 = arith.constant 0 : i32
    %c0_i32_1 = arith.constant 0 : i32
    return %c0_i32, %c0_i32_0 : i32, i32
  }
  func.func @transform_10(%arg0: i32) -> (i32, i32, i32) {
    %c0_i32 = arith.constant 0 : i32
    %c0_i32_0 = arith.constant 0 : i32
    %c0_i32_1 = arith.constant 0 : i32
    %c0_i32_2 = arith.constant 0 : i32
    return %c0_i32, %c0_i32_0, %c0_i32_1 : i32, i32, i32
  }
  func.func @transform_11(%arg0: i32) -> (i32, i32) {
    %c0_i32 = arith.constant 0 : i32
    %c0_i32_0 = arith.constant 0 : i32
    %c0_i32_1 = arith.constant 0 : i32
    return %c0_i32, %c0_i32_0 : i32, i32
  }
  func.func @transform_12(%arg0: i32) -> (i32, i32) {
    %c0_i32 = arith.constant 0 : i32
    %c0_i32_0 = arith.constant 0 : i32
    %c0_i32_1 = arith.constant 0 : i32
    return %c0_i32, %c0_i32_0 : i32, i32
  }
  func.func @transform_13(%arg0: i32) -> (i32, i32) {
    %c0_i32 = arith.constant 0 : i32
    %c0_i32_0 = arith.constant 0 : i32
    %c0_i32_1 = arith.constant 0 : i32
    return %c0_i32, %c0_i32_0 : i32, i32
  }
  func.func @transform_14(%arg0: i32) -> (i32, i32) {
    %c0_i32 = arith.constant 0 : i32
    %c0_i32_0 = arith.constant 0 : i32
    %c0_i32_1 = arith.constant 0 : i32
    return %c0_i32, %c0_i32_0 : i32, i32
  }
  func.func @transform_15(%arg0: i32) -> (i32, i32) {
    %c0_i32 = arith.constant 0 : i32
    %c0_i32_0 = arith.constant 0 : i32
    %c0_i32_1 = arith.constant 0 : i32
    return %c0_i32, %c0_i32_0 : i32, i32
  }
  func.func @transform_16(%arg0: i32) -> (i32, i32) {
    %c0_i32 = arith.constant 0 : i32
    %c0_i32_0 = arith.constant 0 : i32
    return %arg0, %c0_i32 : i32, i32
  }
}

</mosaic_0001>

<llo_original>
// kernel: cifar_net_forward.1
$region0: #{cifar_net_forward.1}
  #allocation0 [shape = 'u32[]', space=smem, size = 0x4, offset = 0x4, fixed_abs, tag = 'smem constant byte address 0x4 - core index']
  #allocation1 [shape = 'u32[72,128]{1,0:T(1,128)}', space=vmem, size = 0x9000, scoped, tag = 'internal scratch']
  %s0 = inlined_call_operand.vmem [shape: bf16[1,224,480], index: 0, kind: input, shape index: {}]
  %s1 = inlined_call_operand.vmem [shape: bf16[1,224,480], index: 1, kind: input, shape index: {}]
  %s2 = inlined_call_operand.vmem [shape: bf16[480,168], index: 2, kind: input, shape index: {}]
  %s3 = inlined_call_operand.vmem [shape: f32[1,168], index: 3, kind: input, shape index: {}]
  %s4 = inlined_call_operand.vmem [shape: bf16[168,84], index: 4, kind: input, shape index: {}]
  %s5 = inlined_call_operand.vmem [shape: bf16[168,84], index: 5, kind: input, shape index: {}]
  %s6 = inlined_call_operand.vmem [shape: bf16[5,84,160], index: 6, kind: input, shape index: {}]
  %s7 = inlined_call_operand.vmem [shape: f32[1,160], index: 7, kind: input, shape index: {}]
  %s8 = inlined_call_operand.vmem [shape: bf16[160,80], index: 8, kind: input, shape index: {}]
  %s9 = inlined_call_operand.vmem [shape: bf16[160,80], index: 9, kind: input, shape index: {}]
  %s10 = inlined_call_operand.vmem [shape: bf16[5,80,120], index: 10, kind: input, shape index: {}]
  %s11 = inlined_call_operand.vmem [shape: f32[1,120], index: 11, kind: input, shape index: {}]
  %s12 = inlined_call_operand.vmem [shape: bf16[120,84], index: 12, kind: input, shape index: {}]
  %s13 = inlined_call_operand.vmem [shape: f32[1,84], index: 13, kind: input, shape index: {}]
  %s14 = inlined_call_operand.vmem [shape: bf16[84,10], index: 14, kind: input, shape index: {}]
  %s15 = inlined_call_operand.vmem [shape: f32[1,10], index: 15, kind: input, shape index: {}]
  %s16 = inlined_call_operand.vmem [shape: f32[16,10], index: 16, kind: output, shape index: {}]
  %s17 = sld [smem:[#allocation0]]
  $region74: #{cifar_net_forward.1} parent=0
    _
  %s19 = ssub.s32 1, %s17
  %s20 = scalar_select 0, %s19, %s17
  // Predicated region
  $region2: #{cifar_net_forward.1} parent=0 // pred_check
    _
  $region3: #{cifar_net_forward.1} parent=0 // pred_check_branch
    %22 = sbr.rel (0) target = $region5
  $region4: #{cifar_net_forward.1} parent=0 // pred_region
    _
  $region5: #{cifar_net_forward.1} parent=0 // pred_fallthru
    _
  // Predicated region
  $region6: #{cifar_net_forward.1} parent=0 // pred_check
    _
  $region7: #{cifar_net_forward.1} parent=0 // pred_check_branch
    %24 = sbr.rel (0) target = $region9
  $region8: #{cifar_net_forward.1} parent=0 // pred_region
    _
  $region9: #{cifar_net_forward.1} parent=0 // pred_fallthru
    _
  // Predicated region
  $region10: #{cifar_net_forward.1} parent=0 // pred_check
    _
  $region11: #{cifar_net_forward.1} parent=0 // pred_check_branch
    %26 = sbr.rel (0) target = $region13
  $region12: #{cifar_net_forward.1} parent=0 // pred_region
    _
  $region13: #{cifar_net_forward.1} parent=0 // pred_fallthru
    _
  // Predicated region
  $region14: #{cifar_net_forward.1} parent=0 // pred_check
    _
  $region15: #{cifar_net_forward.1} parent=0 // pred_check_branch
    %28 = sbr.rel (0) target = $region17
  $region16: #{cifar_net_forward.1} parent=0 // pred_region
    _
  $region17: #{cifar_net_forward.1} parent=0 // pred_fallthru
    _
  // Predicated region
  $region18: #{cifar_net_forward.1} parent=0 // pred_check
    _
  $region19: #{cifar_net_forward.1} parent=0 // pred_check_branch
    %30 = sbr.rel (0) target = $region21
  $region20: #{cifar_net_forward.1} parent=0 // pred_region
    _
  $region21: #{cifar_net_forward.1} parent=0 // pred_fallthru
    _
  // Predicated region
  $region22: #{cifar_net_forward.1} parent=0 // pred_check
    _
  $region23: #{cifar_net_forward.1} parent=0 // pred_check_branch
    %32 = sbr.rel (0) target = $region25
  $region24: #{cifar_net_forward.1} parent=0 // pred_region
    _
  $region25: #{cifar_net_forward.1} parent=0 // pred_fallthru
    _
  // Predicated region
  $region26: #{cifar_net_forward.1} parent=0 // pred_check
    _
  $region27: #{cifar_net_forward.1} parent=0 // pred_check_branch
    %34 = sbr.rel (0) target = $region29
  $region28: #{cifar_net_forward.1} parent=0 // pred_region
    _
  $region29: #{cifar_net_forward.1} parent=0 // pred_fallthru
    _
  // Predicated region
  $region30: #{cifar_net_forward.1} parent=0 // pred_check
    _
  $region31: #{cifar_net_forward.1} parent=0 // pred_check_branch
    %36 = sbr.rel (0) target = $region33
  $region32: #{cifar_net_forward.1} parent=0 // pred_region
    _
  $region33: #{cifar_net_forward.1} parent=0 // pred_fallthru
    _
  // Predicated region
  $region34: #{cifar_net_forward.1} parent=0 // pred_check
    _
  $region35: #{cifar_net_forward.1} parent=0 // pred_check_branch
    %38 = sbr.rel (0) target = $region37
  $region36: #{cifar_net_forward.1} parent=0 // pred_region
    _
  $region37: #{cifar_net_forward.1} parent=0 // pred_fallthru
    _
  // Predicated region
  $region38: #{cifar_net_forward.1} parent=0 // pred_check
    _
  $region39: #{cifar_net_forward.1} parent=0 // pred_check_branch
    %40 = sbr.rel (0) target = $region41
  $region40: #{cifar_net_forward.1} parent=0 // pred_region
    _
  $region41: #{cifar_net_forward.1} parent=0 // pred_fallthru
    _
  // Predicated region
  $region42: #{cifar_net_forward.1} parent=0 // pred_check
    _
  $region43: #{cifar_net_forward.1} parent=0 // pred_check_branch
    %42 = sbr.rel (0) target = $region45
  $region44: #{cifar_net_forward.1} parent=0 // pred_region
    _
  $region45: #{cifar_net_forward.1} parent=0 // pred_fallthru
    _
  // Predicated region
  $region46: #{cifar_net_forward.1} parent=0 // pred_check
    _
  $region47: #{cifar_net_forward.1} parent=0 // pred_check_branch
    %44 = sbr.rel (0) target = $region49
  $region48: #{cifar_net_forward.1} parent=0 // pred_region
    _
  $region49: #{cifar_net_forward.1} parent=0 // pred_fallthru
    _
  // Predicated region
  $region50: #{cifar_net_forward.1} parent=0 // pred_check
    _
  $region51: #{cifar_net_forward.1} parent=0 // pred_check_branch
    %46 = sbr.rel (0) target = $region53
  $region52: #{cifar_net_forward.1} parent=0 // pred_region
    _
  $region53: #{cifar_net_forward.1} parent=0 // pred_fallthru
    _
  // Predicated region
  $region54: #{cifar_net_forward.1} parent=0 // pred_check
    _
  $region55: #{cifar_net_forward.1} parent=0 // pred_check_branch
    %48 = sbr.rel (0) target = $region57
  $region56: #{cifar_net_forward.1} parent=0 // pred_region
    _
  $region57: #{cifar_net_forward.1} parent=0 // pred_fallthru
    _
  // Predicated region
  $region58: #{cifar_net_forward.1} parent=0 // pred_check
    _
  $region59: #{cifar_net_forward.1} parent=0 // pred_check_branch
    %50 = sbr.rel (0) target = $region61
  $region60: #{cifar_net_forward.1} parent=0 // pred_region
    _
  $region61: #{cifar_net_forward.1} parent=0 // pred_fallthru
    _
  // Predicated region
  $region62: #{cifar_net_forward.1} parent=0 // pred_check
    _
  $region63: #{cifar_net_forward.1} parent=0 // pred_check_branch
    %52 = sbr.rel (0) target = $region65
  $region64: #{cifar_net_forward.1} parent=0 // pred_region
    _
  $region65: #{cifar_net_forward.1} parent=0 // pred_fallthru
    _
  %v54 = vld [vmem:[%s0] sm:$0xff]
  %v55 = vld [vmem:[%s0 + $0x8] sm:$0xff]
  %v56 = vld [vmem:[%s0 + $0x10] sm:$0xff]
  %v57 = vld [vmem:[%s0 + $0x18] sm:$0xff]
  %v58 = vld [vmem:[%s0 + $0x20] sm:$0xff]
  %v59 = vld [vmem:[%s0 + $0x28] sm:$0xff]
  %v60 = vld [vmem:[%s0 + $0x30] sm:$0xff]
  %v61 = vld [vmem:[%s0 + $0x38] sm:$0xff]
  %v62 = vld [vmem:[%s0 + $0x40] sm:$0xff]
  %v63 = vld [vmem:[%s0 + $0x48] sm:$0xff]
  %v64 = vld [vmem:[%s0 + $0x50] sm:$0xff]
  %v65 = vld [vmem:[%s0 + $0x58] sm:$0xff]
  %v66 = vld [vmem:[%s0 + $0x60] sm:$0xff]
  %v67 = vld [vmem:[%s0 + $0x68] sm:$0xff]
  %v68 = vld [vmem:[%s0 + $0x70] sm:$0xff]
  %v69 = vld [vmem:[%s0 + $0x78] sm:$0xff]
  %v70 = vld [vmem:[%s0 + $0x80] sm:$0xff]
  %v71 = vld [vmem:[%s0 + $0x88] sm:$0xff]
  %v72 = vld [vmem:[%s0 + $0x90] sm:$0xff]
  %v73 = vld [vmem:[%s0 + $0x98] sm:$0xff]
  %v74 = vld [vmem:[%s0 + $0xa0] sm:$0xff]
  %v75 = vld [vmem:[%s0 + $0xa8] sm:$0xff]
  %v76 = vld [vmem:[%s0 + $0xb0] sm:$0xff]
  %v77 = vld [vmem:[%s0 + $0xb8] sm:$0xff]
  %v78 = vld [vmem:[%s0 + $0xc0] sm:$0xff]
  %v79 = vld [vmem:[%s0 + $0xc8] sm:$0xff]
  %v80 = vld [vmem:[%s0 + $0xd0] sm:$0xff]
  %v81 = vld [vmem:[%s0 + $0xd8] sm:$0xff]
  %v82 = vld [vmem:[%s0 + $0xe0] sm:$0xff]
  %v83 = vld [vmem:[%s0 + $0xe8] sm:$0xff]
  %v84 = vld [vmem:[%s0 + $0xf0] sm:$0xff]
  %v85 = vld [vmem:[%s0 + $0xf8] sm:$0xff]
  %v86 = vld [vmem:[%s0 + $0x100] sm:$0xff]
  %v87 = vld [vmem:[%s0 + $0x108] sm:$0xff]
  %v88 = vld [vmem:[%s0 + $0x110] sm:$0xff]
  %v89 = vld [vmem:[%s0 + $0x118] sm:$0xff]
  %v90 = vld [vmem:[%s0 + $0x120] sm:$0xff]
  %v91 = vld [vmem:[%s0 + $0x128] sm:$0xff]
  %v92 = vld [vmem:[%s0 + $0x130] sm:$0xff]
  %v93 = vld [vmem:[%s0 + $0x138] sm:$0xff]
  %v94 = vld [vmem:[%s0 + $0x140] sm:$0xff]
  %v95 = vld [vmem:[%s0 + $0x148] sm:$0xff]
  %v96 = vld [vmem:[%s0 + $0x150] sm:$0xff]
  %v97 = vld [vmem:[%s0 + $0x158] sm:$0xff]
  %v98 = vld [vmem:[%s0 + $0x160] sm:$0xff]
  %v99 = vld [vmem:[%s0 + $0x168] sm:$0xff]
  %v100 = vld [vmem:[%s0 + $0x170] sm:$0xff]
  %v101 = vld [vmem:[%s0 + $0x178] sm:$0xff]
  %v102 = vld [vmem:[%s0 + $0x180] sm:$0xff]
  %v103 = vld [vmem:[%s0 + $0x188] sm:$0xff]
  %v104 = vld [vmem:[%s0 + $0x190] sm:$0xff]
  %v105 = vld [vmem:[%s0 + $0x198] sm:$0xff]
  %v106 = vld [vmem:[%s0 + $0x1a0] sm:$0xff]
  %v107 = vld [vmem:[%s0 + $0x1a8] sm:$0xff]
  %v108 = vld [vmem:[%s0 + $0x1b0] sm:$0xff]
  %v109 = vld [vmem:[%s0 + $0x1b8] sm:$0xff]
  %v110 = vld [vmem:[%s2] sm:$0xff]
  %v111 = vld [vmem:[%s2 + $0x8] sm:$0xff]
  %v112 = vld [vmem:[%s2 + $0x10] sm:$0xff]
  %v113 = vld [vmem:[%s2 + $0x18] sm:$0xff]
  %v114 = vld [vmem:[%s2 + $0x20] sm:$0xff]
  %v115 = vld [vmem:[%s2 + $0x28] sm:$0xff]
  %v116 = vld [vmem:[%s2 + $0x30] sm:$0xff]
  %v117 = vld [vmem:[%s2 + $0x38] sm:$0xff]
  %v118 = vld [vmem:[%s2 + $0x40] sm:$0xff]
  %v119 = vld [vmem:[%s2 + $0x48] sm:$0xff]
  %v120 = vld [vmem:[%s2 + $0x50] sm:$0xff]
  %v121 = vld [vmem:[%s2 + $0x58] sm:$0xff]
  %v122 = vld [vmem:[%s2 + $0x60] sm:$0xff]
  %v123 = vld [vmem:[%s2 + $0x68] sm:$0xff]
  %v124 = vld [vmem:[%s2 + $0x70] sm:$0xff]
  %v125 = vld [vmem:[%s2 + $0x78] sm:$0xff]
  %v126 = vld [vmem:[%s2 + $0x80] sm:$0xff]
  %v127 = vld [vmem:[%s2 + $0x88] sm:$0xff]
  %v128 = vld [vmem:[%s2 + $0x90] sm:$0xff]
  %v129 = vld [vmem:[%s2 + $0x98] sm:$0xff]
  %v130 = vld [vmem:[%s2 + $0xa0] sm:$0xff]
  %v131 = vld [vmem:[%s2 + $0xa8] sm:$0xff]
  %v132 = vld [vmem:[%s2 + $0xb0] sm:$0xff]
  %v133 = vld [vmem:[%s2 + $0xb8] sm:$0xff]
  %v134 = vld [vmem:[%s2 + $0xc0] sm:$0xff]
  %v135 = vld [vmem:[%s2 + $0xc8] sm:$0xff]
  %v136 = vld [vmem:[%s2 + $0xd0] sm:$0xff]
  %v137 = vld [vmem:[%s2 + $0xd8] sm:$0xff]
  %v138 = vld [vmem:[%s2 + $0xe0] sm:$0xff]
  %v139 = vld [vmem:[%s2 + $0xe8] sm:$0xff]
  %v140 = vld [vmem:[%s2 + $0xf0] sm:$0xff]
  %v141 = vld [vmem:[%s2 + $0xf8] sm:$0xff]
  %v142 = vld [vmem:[%s2 + $0x100] sm:$0xff]
  %v143 = vld [vmem:[%s2 + $0x108] sm:$0xff]
  %v144 = vld [vmem:[%s2 + $0x110] sm:$0xff]
  %v145 = vld [vmem:[%s2 + $0x118] sm:$0xff]
  %v146 = vld [vmem:[%s2 + $0x120] sm:$0xff]
  %v147 = vld [vmem:[%s2 + $0x128] sm:$0xff]
  %v148 = vld [vmem:[%s2 + $0x130] sm:$0xff]
  %v149 = vld [vmem:[%s2 + $0x138] sm:$0xff]
  %v150 = vld [vmem:[%s2 + $0x140] sm:$0xff]
  %v151 = vld [vmem:[%s2 + $0x148] sm:$0xff]
  %v152 = vld [vmem:[%s2 + $0x150] sm:$0xff]
  %v153 = vld [vmem:[%s2 + $0x158] sm:$0xff]
  %v154 = vld [vmem:[%s2 + $0x160] sm:$0xff]
  %v155 = vld [vmem:[%s2 + $0x168] sm:$0xff]
  %v156 = vld [vmem:[%s2 + $0x170] sm:$0xff]
  %v157 = vld [vmem:[%s2 + $0x178] sm:$0xff]
  %v158 = vld [vmem:[%s2 + $0x180] sm:$0xff]
  %v159 = vld [vmem:[%s2 + $0x188] sm:$0xff]
  %v160 = vld [vmem:[%s2 + $0x190] sm:$0xff]
  %v161 = vld [vmem:[%s2 + $0x198] sm:$0xff]
  %v162 = vld [vmem:[%s2 + $0x1a0] sm:$0xff]
  %v163 = vld [vmem:[%s2 + $0x1a8] sm:$0xff]
  %v164 = vld [vmem:[%s2 + $0x1b0] sm:$0xff]
  %v165 = vld [vmem:[%s2 + $0x1b8] sm:$0xff]
  %v166 = vld [vmem:[%s2 + $0x1c0] sm:$0xff]
  %v167 = vld [vmem:[%s2 + $0x1c8] sm:$0xff]
  %v168 = vld [vmem:[%s2 + $0x1d0] sm:$0xff]
  %v169 = vld [vmem:[%s2 + $0x1d8] sm:$0xff]
  %v170 = vld [vmem:[%s3] sm:$0x3]
  %v172 = vperm.slane %v170, 0
  %v173 = vperm.slane %v170, 1
  %v232 = vunpack.c.l.b16 %v54
  %v233 = vunpack.c.h.b16 %v54
  %v234 = vunpack.c.l.b16 %v55
  %v235 = vunpack.c.h.b16 %v55
  %v236 = vunpack.c.l.b16 %v56
  %v237 = vunpack.c.h.b16 %v56
  %v238 = vunpack.c.l.b16 %v57
  %v239 = vunpack.c.h.b16 %v57
  %v240 = vunpack.c.l.b16 %v58
  %v241 = vunpack.c.h.b16 %v58
  %v242 = vunpack.c.l.b16 %v59
  %v243 = vunpack.c.h.b16 %v59
  %v244 = vunpack.c.l.b16 %v60
  %v245 = vunpack.c.h.b16 %v60
  %v246 = vunpack.c.l.b16 %v61
  %v247 = vunpack.c.h.b16 %v61
  %v248 = vunpack.c.l.b16 %v62
  %v249 = vunpack.c.h.b16 %v62
  %v250 = vunpack.c.l.b16 %v63
  %v251 = vunpack.c.h.b16 %v63
  %v252 = vunpack.c.l.b16 %v64
  %v253 = vunpack.c.h.b16 %v64
  %v254 = vunpack.c.l.b16 %v65
  %v255 = vunpack.c.h.b16 %v65
  %v256 = vunpack.c.l.b16 %v66
  %v257 = vunpack.c.h.b16 %v66
  %v258 = vunpack.c.l.b16 %v67
  %v259 = vunpack.c.h.b16 %v67
  %v260 = vunpack.c.l.b16 %v68
  %v261 = vunpack.c.h.b16 %v68
  %v262 = vunpack.c.l.b16 %v69
  %v263 = vunpack.c.h.b16 %v69
  %v264 = vunpack.c.l.b16 %v70
  %v265 = vunpack.c.h.b16 %v70
  %v266 = vunpack.c.l.b16 %v71
  %v267 = vunpack.c.h.b16 %v71
  %v268 = vunpack.c.l.b16 %v72
  %v269 = vunpack.c.h.b16 %v72
  %v270 = vunpack.c.l.b16 %v73
  %v271 = vunpack.c.h.b16 %v73
  %v272 = vunpack.c.l.b16 %v74
  %v273 = vunpack.c.h.b16 %v74
  %v274 = vunpack.c.l.b16 %v75
  %v275 = vunpack.c.h.b16 %v75
  %v276 = vunpack.c.l.b16 %v76
  %v277 = vunpack.c.h.b16 %v76
  %v278 = vunpack.c.l.b16 %v77
  %v279 = vunpack.c.h.b16 %v77
  %v280 = vunpack.c.l.b16 %v78
  %v281 = vunpack.c.h.b16 %v78
  %v282 = vunpack.c.l.b16 %v79
  %v283 = vunpack.c.h.b16 %v79
  %v284 = vunpack.c.l.b16 %v80
  %v285 = vunpack.c.h.b16 %v80
  %v286 = vunpack.c.l.b16 %v81
  %v287 = vunpack.c.h.b16 %v81
  %v288 = vunpack.c.l.b16 %v82
  %v289 = vunpack.c.h.b16 %v82
  %v290 = vunpack.c.l.b16 %v83
  %v291 = vunpack.c.h.b16 %v83
  %v292 = vunpack.c.l.b16 %v84
  %v293 = vunpack.c.h.b16 %v84
  %v294 = vunpack.c.l.b16 %v85
  %v295 = vunpack.c.h.b16 %v85
  %v296 = vunpack.c.l.b16 %v86
  %v297 = vunpack.c.h.b16 %v86
  %v298 = vunpack.c.l.b16 %v87
  %v299 = vunpack.c.h.b16 %v87
  %v300 = vunpack.c.l.b16 %v88
  %v301 = vunpack.c.h.b16 %v88
  %v302 = vunpack.c.l.b16 %v89
  %v303 = vunpack.c.h.b16 %v89
  %v304 = vunpack.c.l.b16 %v90
  %v305 = vunpack.c.h.b16 %v90
  %v306 = vunpack.c.l.b16 %v91
  %v307 = vunpack.c.h.b16 %v91
  %v308 = vunpack.c.l.b16 %v92
  %v309 = vunpack.c.h.b16 %v92
  %v310 = vunpack.c.l.b16 %v93
  %v311 = vunpack.c.h.b16 %v93
  %v312 = vunpack.c.l.b16 %v94
  %v313 = vunpack.c.h.b16 %v94
  %v314 = vunpack.c.l.b16 %v95
  %v315 = vunpack.c.h.b16 %v95
  %v316 = vunpack.c.l.b16 %v96
  %v317 = vunpack.c.h.b16 %v96
  %v318 = vunpack.c.l.b16 %v97
  %v319 = vunpack.c.h.b16 %v97
  %v320 = vunpack.c.l.b16 %v98
  %v321 = vunpack.c.h.b16 %v98
  %v322 = vunpack.c.l.b16 %v99
  %v323 = vunpack.c.h.b16 %v99
  %v324 = vunpack.c.l.b16 %v100
  %v325 = vunpack.c.h.b16 %v100
  %v326 = vunpack.c.l.b16 %v101
  %v327 = vunpack.c.h.b16 %v101
  %v328 = vunpack.c.l.b16 %v102
  %v329 = vunpack.c.h.b16 %v102
  %v330 = vunpack.c.l.b16 %v103
  %v331 = vunpack.c.h.b16 %v103
  %v332 = vunpack.c.l.b16 %v104
  %v333 = vunpack.c.h.b16 %v104
  %v334 = vunpack.c.l.b16 %v105
  %v335 = vunpack.c.h.b16 %v105
  %v336 = vunpack.c.l.b16 %v106
  %v337 = vunpack.c.h.b16 %v106
  %v338 = vunpack.c.l.b16 %v107
  %v339 = vunpack.c.h.b16 %v107
  %v340 = vunpack.c.l.b16 %v108
  %v341 = vunpack.c.h.b16 %v108
  %v342 = vunpack.c.l.b16 %v109
  %v343 = vunpack.c.h.b16 %v109
  %v344 = vpack.c.b16 %v236, %v232
  %v345 = vpack.c.b16 %v237, %v233
  %v346 = vpack.c.b16 %v238, %v234
  %v347 = vpack.c.b16 %v239, %v235
  %v348 = vpack.c.b16 %v244, %v240
  %v349 = vpack.c.b16 %v245, %v241
  %v350 = vpack.c.b16 %v246, %v242
  %v351 = vpack.c.b16 %v247, %v243
  %v352 = vpack.c.b16 %v252, %v248
  %v353 = vpack.c.b16 %v253, %v249
  %v354 = vpack.c.b16 %v254, %v250
  %v355 = vpack.c.b16 %v255, %v251
  %v356 = vpack.c.b16 %v260, %v256
  %v357 = vpack.c.b16 %v261, %v257
  %v358 = vpack.c.b16 %v262, %v258
  %v359 = vpack.c.b16 %v263, %v259
  %v360 = vpack.c.b16 %v268, %v264
  %v361 = vpack.c.b16 %v269, %v265
  %v362 = vpack.c.b16 %v270, %v266
  %v363 = vpack.c.b16 %v271, %v267
  %v364 = vpack.c.b16 %v276, %v272
  %v365 = vpack.c.b16 %v277, %v273
  %v366 = vpack.c.b16 %v278, %v274
  %v367 = vpack.c.b16 %v279, %v275
  %v368 = vpack.c.b16 %v284, %v280
  %v369 = vpack.c.b16 %v285, %v281
  %v370 = vpack.c.b16 %v286, %v282
  %v371 = vpack.c.b16 %v287, %v283
  %v372 = vpack.c.b16 %v292, %v288
  %v373 = vpack.c.b16 %v293, %v289
  %v374 = vpack.c.b16 %v294, %v290
  %v375 = vpack.c.b16 %v295, %v291
  %v376 = vpack.c.b16 %v300, %v296
  %v377 = vpack.c.b16 %v301, %v297
  %v378 = vpack.c.b16 %v302, %v298
  %v379 = vpack.c.b16 %v303, %v299
  %v380 = vpack.c.b16 %v308, %v304
  %v381 = vpack.c.b16 %v309, %v305
  %v382 = vpack.c.b16 %v310, %v306
  %v383 = vpack.c.b16 %v311, %v307
  %v384 = vpack.c.b16 %v316, %v312
  %v385 = vpack.c.b16 %v317, %v313
  %v386 = vpack.c.b16 %v318, %v314
  %v387 = vpack.c.b16 %v319, %v315
  %v388 = vpack.c.b16 %v324, %v320
  %v389 = vpack.c.b16 %v325, %v321
  %v390 = vpack.c.b16 %v326, %v322
  %v391 = vpack.c.b16 %v327, %v323
  %v392 = vpack.c.b16 %v332, %v328
  %v393 = vpack.c.b16 %v333, %v329
  %v394 = vpack.c.b16 %v334, %v330
  %v395 = vpack.c.b16 %v335, %v331
  %v396 = vpack.c.b16 %v340, %v336
  %v397 = vpack.c.b16 %v341, %v337
  %v398 = vpack.c.b16 %v342, %v338
  %v399 = vpack.c.b16 %v343, %v339
  %v502 = vunpack.c.l.b16 %v110
  %v503 = vunpack.c.h.b16 %v110
  %v504 = vunpack.c.l.b16 %v111
  %v505 = vunpack.c.h.b16 %v111
  %v506 = vunpack.c.l.b16 %v112
  %v507 = vunpack.c.h.b16 %v112
  %v508 = vunpack.c.l.b16 %v113
  %v509 = vunpack.c.h.b16 %v113
  %v510 = vunpack.c.l.b16 %v114
  %v511 = vunpack.c.h.b16 %v114
  %v512 = vunpack.c.l.b16 %v115
  %v513 = vunpack.c.h.b16 %v115
  %v514 = vunpack.c.l.b16 %v116
  %v515 = vunpack.c.h.b16 %v116
  %v516 = vunpack.c.l.b16 %v117
  %v517 = vunpack.c.h.b16 %v117
  %v518 = vunpack.c.l.b16 %v118
  %v519 = vunpack.c.h.b16 %v118
  %v520 = vunpack.c.l.b16 %v119
  %v521 = vunpack.c.h.b16 %v119
  %v522 = vunpack.c.l.b16 %v120
  %v523 = vunpack.c.h.b16 %v120
  %v524 = vunpack.c.l.b16 %v121
  %v525 = vunpack.c.h.b16 %v121
  %v526 = vunpack.c.l.b16 %v122
  %v527 = vunpack.c.h.b16 %v122
  %v528 = vunpack.c.l.b16 %v123
  %v529 = vunpack.c.h.b16 %v123
  %v530 = vunpack.c.l.b16 %v124
  %v531 = vunpack.c.h.b16 %v124
  %v532 = vunpack.c.l.b16 %v125
  %v533 = vunpack.c.h.b16 %v125
  %v534 = vunpack.c.l.b16 %v126
  %v535 = vunpack.c.h.b16 %v126
  %v536 = vunpack.c.l.b16 %v127
  %v537 = vunpack.c.h.b16 %v127
  %v538 = vunpack.c.l.b16 %v128
  %v539 = vunpack.c.h.b16 %v128
  %v540 = vunpack.c.l.b16 %v129
  %v541 = vunpack.c.h.b16 %v129
  %v542 = vunpack.c.l.b16 %v130
  %v543 = vunpack.c.h.b16 %v130
  %v544 = vunpack.c.l.b16 %v131
  %v545 = vunpack.c.h.b16 %v131
  %v546 = vunpack.c.l.b16 %v132
  %v547 = vunpack.c.h.b16 %v132
  %v548 = vunpack.c.l.b16 %v133
  %v549 = vunpack.c.h.b16 %v133
  %v550 = vunpack.c.l.b16 %v134
  %v551 = vunpack.c.h.b16 %v134
  %v552 = vunpack.c.l.b16 %v135
  %v553 = vunpack.c.h.b16 %v135
  %v554 = vunpack.c.l.b16 %v136
  %v555 = vunpack.c.h.b16 %v136
  %v556 = vunpack.c.l.b16 %v137
  %v557 = vunpack.c.h.b16 %v137
  %v558 = vunpack.c.l.b16 %v138
  %v559 = vunpack.c.h.b16 %v138
  %v560 = vunpack.c.l.b16 %v139
  %v561 = vunpack.c.h.b16 %v139
  %v562 = vunpack.c.l.b16 %v140
  %v563 = vunpack.c.h.b16 %v140
  %v564 = vunpack.c.l.b16 %v141
  %v565 = vunpack.c.h.b16 %v141
  %v566 = vunpack.c.l.b16 %v142
  %v567 = vunpack.c.h.b16 %v142
  %v568 = vunpack.c.l.b16 %v143
  %v569 = vunpack.c.h.b16 %v143
  %v570 = vunpack.c.l.b16 %v144
  %v571 = vunpack.c.h.b16 %v144
  %v572 = vunpack.c.l.b16 %v145
  %v573 = vunpack.c.h.b16 %v145
  %v574 = vunpack.c.l.b16 %v146
  %v575 = vunpack.c.h.b16 %v146
  %v576 = vunpack.c.l.b16 %v147
  %v577 = vunpack.c.h.b16 %v147
  %v578 = vunpack.c.l.b16 %v148
  %v579 = vunpack.c.h.b16 %v148
  %v580 = vunpack.c.l.b16 %v149
  %v581 = vunpack.c.h.b16 %v149
  %v582 = vunpack.c.l.b16 %v150
  %v583 = vunpack.c.h.b16 %v150
  %v584 = vunpack.c.l.b16 %v151
  %v585 = vunpack.c.h.b16 %v151
  %v586 = vunpack.c.l.b16 %v152
  %v587 = vunpack.c.h.b16 %v152
  %v588 = vunpack.c.l.b16 %v153
  %v589 = vunpack.c.h.b16 %v153
  %v590 = vunpack.c.l.b16 %v154
  %v591 = vunpack.c.h.b16 %v154
  %v592 = vunpack.c.l.b16 %v155
  %v593 = vunpack.c.h.b16 %v155
  %v594 = vunpack.c.l.b16 %v156
  %v595 = vunpack.c.h.b16 %v156
  %v596 = vunpack.c.l.b16 %v157
  %v597 = vunpack.c.h.b16 %v157
  %v598 = vunpack.c.l.b16 %v158
  %v599 = vunpack.c.h.b16 %v158
  %v600 = vunpack.c.l.b16 %v159
  %v601 = vunpack.c.h.b16 %v159
  %v602 = vunpack.c.l.b16 %v160
  %v603 = vunpack.c.h.b16 %v160
  %v604 = vunpack.c.l.b16 %v161
  %v605 = vunpack.c.h.b16 %v161
  %v606 = vunpack.c.l.b16 %v162
  %v607 = vunpack.c.h.b16 %v162
  %v608 = vunpack.c.l.b16 %v163
  %v609 = vunpack.c.h.b16 %v163
  %v610 = vunpack.c.l.b16 %v164
  %v611 = vunpack.c.h.b16 %v164
  %v612 = vunpack.c.l.b16 %v165
  %v613 = vunpack.c.h.b16 %v165
  %v614 = vunpack.c.l.b16 %v166
  %v615 = vunpack.c.h.b16 %v166
  %v616 = vunpack.c.l.b16 %v167
  %v617 = vunpack.c.h.b16 %v167
  %v618 = vunpack.c.l.b16 %v168
  %v619 = vunpack.c.h.b16 %v168
  %v620 = vunpack.c.l.b16 %v169
  %v621 = vunpack.c.h.b16 %v169
  %v622 = vpack.c.b16 %v504, %v502
  %v623 = vpack.c.b16 %v505, %v503
  %v624 = vpack.c.b16 %v508, %v506
  %v625 = vpack.c.b16 %v509, %v507
  %v626 = vpack.c.b16 %v512, %v510
  %v627 = vpack.c.b16 %v513, %v511
  %v628 = vpack.c.b16 %v516, %v514
  %v629 = vpack.c.b16 %v517, %v515
  %v630 = vpack.c.b16 %v520, %v518
  %v631 = vpack.c.b16 %v521, %v519
  %v632 = vpack.c.b16 %v524, %v522
  %v633 = vpack.c.b16 %v525, %v523
  %v634 = vpack.c.b16 %v528, %v526
  %v635 = vpack.c.b16 %v529, %v527
  %v636 = vpack.c.b16 %v532, %v530
  %v637 = vpack.c.b16 %v533, %v531
  %v638 = vpack.c.b16 %v536, %v534
  %v639 = vpack.c.b16 %v537, %v535
  %v640 = vpack.c.b16 %v540, %v538
  %v641 = vpack.c.b16 %v541, %v539
  %v642 = vpack.c.b16 %v544, %v542
  %v643 = vpack.c.b16 %v545, %v543
  %v644 = vpack.c.b16 %v548, %v546
  %v645 = vpack.c.b16 %v549, %v547
  %v646 = vpack.c.b16 %v552, %v550
  %v647 = vpack.c.b16 %v553, %v551
  %v648 = vpack.c.b16 %v556, %v554
  %v649 = vpack.c.b16 %v557, %v555
  %v650 = vpack.c.b16 %v560, %v558
  %v651 = vpack.c.b16 %v561, %v559
  %v652 = vpack.c.b16 %v564, %v562
  %v653 = vpack.c.b16 %v565, %v563
  %v654 = vpack.c.b16 %v568, %v566
  %v655 = vpack.c.b16 %v569, %v567
  %v656 = vpack.c.b16 %v572, %v570
  %v657 = vpack.c.b16 %v573, %v571
  %v658 = vpack.c.b16 %v576, %v574
  %v659 = vpack.c.b16 %v577, %v575
  %v660 = vpack.c.b16 %v580, %v578
  %v661 = vpack.c.b16 %v581, %v579
  %v662 = vpack.c.b16 %v584, %v582
  %v663 = vpack.c.b16 %v585, %v583
  %v664 = vpack.c.b16 %v588, %v586
  %v665 = vpack.c.b16 %v589, %v587
  %v666 = vpack.c.b16 %v592, %v590
  %v667 = vpack.c.b16 %v593, %v591
  %v668 = vpack.c.b16 %v596, %v594
  %v669 = vpack.c.b16 %v597, %v595
  %v670 = vpack.c.b16 %v600, %v598
  %v671 = vpack.c.b16 %v601, %v599
  %v672 = vpack.c.b16 %v604, %v602
  %v673 = vpack.c.b16 %v605, %v603
  %v674 = vpack.c.b16 %v608, %v606
  %v675 = vpack.c.b16 %v609, %v607
  %v676 = vpack.c.b16 %v612, %v610
  %v677 = vpack.c.b16 %v613, %v611
  %v678 = vpack.c.b16 %v616, %v614
  %v679 = vpack.c.b16 %v617, %v615
  %v680 = vpack.c.b16 %v620, %v618
  %v681 = vpack.c.b16 %v621, %v619
  %vm742 = vcmask 785408
  %v744 = vsel %vm742, %v347, 0
  %v747 = vsel %vm742, %v351, 0
  %v750 = vsel %vm742, %v355, 0
  %v753 = vsel %vm742, %v359, 0
  %v756 = vsel %vm742, %v363, 0
  %v759 = vsel %vm742, %v367, 0
  %v762 = vsel %vm742, %v371, 0
  %v765 = vsel %vm742, %v375, 0
  %v768 = vsel %vm742, %v379, 0
  %v771 = vsel %vm742, %v383, 0
  %v774 = vsel %vm742, %v387, 0
  %v777 = vsel %vm742, %v391, 0
  %v780 = vsel %vm742, %v395, 0
  %v783 = vsel %vm742, %v399, 0
  %785 = vmatpush.bf16.msra.mxu0 %v636
  %786 = vmatpush.bf16.msra.mxu0 %v634
  %787 = vmatpush.bf16.msra.mxu0 %v632
  %788 = vmatpush.bf16.msra.mxu0 %v630
  %789 = vmatpush.bf16.msra.mxu0 %v628
  %790 = vmatpush.bf16.msra.mxu0 %v626
  %791 = vmatpush.bf16.msra.mxu0 %v624
  %792 = vmatpush.bf16.msra.mxu0 %v622
  %793 = vmatmul.bf16.gmra.mxu0 %v344
  %v794 = vpop.f32.mrf.mxu0
  %v795 = vadd.f32 %v172, %v794
  %v796 = vpop.f32.mrf.mxu0
  %v797 = vadd.f32 %v172, %v796
  %798 = vmatmul.bf16.gmra.mxu0 %v348
  %v799 = vpop.f32.mrf.mxu0
  %v800 = vadd.f32 %v172, %v799
  %v801 = vpop.f32.mrf.mxu0
  %v802 = vadd.f32 %v172, %v801
  %803 = vmatmul.bf16.gmra.mxu0 %v352
  %v804 = vpop.f32.mrf.mxu0
  %v805 = vadd.f32 %v172, %v804
  %v806 = vpop.f32.mrf.mxu0
  %v807 = vadd.f32 %v172, %v806
  %808 = vmatmul.bf16.gmra.mxu0 %v356
  %v809 = vpop.f32.mrf.mxu0
  %v810 = vadd.f32 %v172, %v809
  %v811 = vpop.f32.mrf.mxu0
  %v812 = vadd.f32 %v172, %v811
  %813 = vmatmul.bf16.gmra.mxu0 %v360
  %v814 = vpop.f32.mrf.mxu0
  %v815 = vadd.f32 %v172, %v814
  %v816 = vpop.f32.mrf.mxu0
  %v817 = vadd.f32 %v172, %v816
  %818 = vmatmul.bf16.gmra.mxu0 %v364
  %v819 = vpop.f32.mrf.mxu0
  %v820 = vadd.f32 %v172, %v819
  %v821 = vpop.f32.mrf.mxu0
  %v822 = vadd.f32 %v172, %v821
  %823 = vmatmul.bf16.gmra.mxu0 %v368
  %v824 = vpop.f32.mrf.mxu0
  %v825 = vadd.f32 %v172, %v824
  %v826 = vpop.f32.mrf.mxu0
  %v827 = vadd.f32 %v172, %v826
  %828 = vmatmul.bf16.gmra.mxu0 %v372
  %v829 = vpop.f32.mrf.mxu0
  %v830 = vadd.f32 %v172, %v829
  %v831 = vpop.f32.mrf.mxu0
  %v832 = vadd.f32 %v172, %v831
  %833 = vmatmul.bf16.gmra.mxu0 %v376
  %v834 = vpop.f32.mrf.mxu0
  %v835 = vadd.f32 %v172, %v834
  %v836 = vpop.f32.mrf.mxu0
  %v837 = vadd.f32 %v172, %v836
  %838 = vmatmul.bf16.gmra.mxu0 %v380
  %v839 = vpop.f32.mrf.mxu0
  %v840 = vadd.f32 %v172, %v839
  %v841 = vpop.f32.mrf.mxu0
  %v842 = vadd.f32 %v172, %v841
  %843 = vmatmul.bf16.gmra.mxu0 %v384
  %v844 = vpop.f32.mrf.mxu0
  %v845 = vadd.f32 %v172, %v844
  %v846 = vpop.f32.mrf.mxu0
  %v847 = vadd.f32 %v172, %v846
  %848 = vmatmul.bf16.gmra.mxu0 %v388
  %v849 = vpop.f32.mrf.mxu0
  %v850 = vadd.f32 %v172, %v849
  %v851 = vpop.f32.mrf.mxu0
  %v852 = vadd.f32 %v172, %v851
  %853 = vmatmul.bf16.gmra.mxu0 %v392
  %v854 = vpop.f32.mrf.mxu0
  %v855 = vadd.f32 %v172, %v854
  %v856 = vpop.f32.mrf.mxu0
  %v857 = vadd.f32 %v172, %v856
  %858 = vmatmul.bf16.gmra.mxu0 %v396
  %v859 = vpop.f32.mrf.mxu0
  %v860 = vadd.f32 %v172, %v859
  %v861 = vpop.f32.mrf.mxu0
  %v862 = vadd.f32 %v172, %v861
  %863 = vdwg.mxu0
  %864 = vmatpush.bf16.msra.mxu0 %v652
  %865 = vmatpush.bf16.msra.mxu0 %v650
  %866 = vmatpush.bf16.msra.mxu0 %v648
  %867 = vmatpush.bf16.msra.mxu0 %v646
  %868 = vmatpush.bf16.msra.mxu0 %v644
  %869 = vmatpush.bf16.msra.mxu0 %v642
  %870 = vmatpush.bf16.msra.mxu0 %v640
  %871 = vmatpush.bf16.msra.mxu0 %v638
  %872 = vmatmul.bf16.gmra.mxu0 %v345
  %v873 = vpop.f32.mrf.mxu0
  %v874 = vadd.f32 %v795, %v873
  %v875 = vpop.f32.mrf.mxu0
  %v876 = vadd.f32 %v797, %v875
  %877 = vmatmul.bf16.gmra.mxu0 %v349
  %v878 = vpop.f32.mrf.mxu0
  %v879 = vadd.f32 %v800, %v878
  %v880 = vpop.f32.mrf.mxu0
  %v881 = vadd.f32 %v802, %v880
  %882 = vmatmul.bf16.gmra.mxu0 %v353
  %v883 = vpop.f32.mrf.mxu0
  %v884 = vadd.f32 %v805, %v883
  %v885 = vpop.f32.mrf.mxu0
  %v886 = vadd.f32 %v807, %v885
  %887 = vmatmul.bf16.gmra.mxu0 %v357
  %v888 = vpop.f32.mrf.mxu0
  %v889 = vadd.f32 %v810, %v888
  %v890 = vpop.f32.mrf.mxu0
  %v891 = vadd.f32 %v812, %v890
  %892 = vmatmul.bf16.gmra.mxu0 %v361
  %v893 = vpop.f32.mrf.mxu0
  %v894 = vadd.f32 %v815, %v893
  %v895 = vpop.f32.mrf.mxu0
  %v896 = vadd.f32 %v817, %v895
  %897 = vmatmul.bf16.gmra.mxu0 %v365
  %v898 = vpop.f32.mrf.mxu0
  %v899 = vadd.f32 %v820, %v898
  %v900 = vpop.f32.mrf.mxu0
  %v901 = vadd.f32 %v822, %v900
  %902 = vmatmul.bf16.gmra.mxu0 %v369
  %v903 = vpop.f32.mrf.mxu0
  %v904 = vadd.f32 %v825, %v903
  %v905 = vpop.f32.mrf.mxu0
  %v906 = vadd.f32 %v827, %v905
  %907 = vmatmul.bf16.gmra.mxu0 %v373
  %v908 = vpop.f32.mrf.mxu0
  %v909 = vadd.f32 %v830, %v908
  %v910 = vpop.f32.mrf.mxu0
  %v911 = vadd.f32 %v832, %v910
  %912 = vmatmul.bf16.gmra.mxu0 %v377
  %v913 = vpop.f32.mrf.mxu0
  %v914 = vadd.f32 %v835, %v913
  %v915 = vpop.f32.mrf.mxu0
  %v916 = vadd.f32 %v837, %v915
  %917 = vmatmul.bf16.gmra.mxu0 %v381
  %v918 = vpop.f32.mrf.mxu0
  %v919 = vadd.f32 %v840, %v918
  %v920 = vpop.f32.mrf.mxu0
  %v921 = vadd.f32 %v842, %v920
  %922 = vmatmul.bf16.gmra.mxu0 %v385
  %v923 = vpop.f32.mrf.mxu0
  %v924 = vadd.f32 %v845, %v923
  %v925 = vpop.f32.mrf.mxu0
  %v926 = vadd.f32 %v847, %v925
  %927 = vmatmul.bf16.gmra.mxu0 %v389
  %v928 = vpop.f32.mrf.mxu0
  %v929 = vadd.f32 %v850, %v928
  %v930 = vpop.f32.mrf.mxu0
  %v931 = vadd.f32 %v852, %v930
  %932 = vmatmul.bf16.gmra.mxu0 %v393
  %v933 = vpop.f32.mrf.mxu0
  %v934 = vadd.f32 %v855, %v933
  %v935 = vpop.f32.mrf.mxu0
  %v936 = vadd.f32 %v857, %v935
  %937 = vmatmul.bf16.gmra.mxu0 %v397
  %v938 = vpop.f32.mrf.mxu0
  %v939 = vadd.f32 %v860, %v938
  %v940 = vpop.f32.mrf.mxu0
  %v941 = vadd.f32 %v862, %v940
  %942 = vdwg.mxu0
  %943 = vmatpush.bf16.msra.mxu0 %v668
  %944 = vmatpush.bf16.msra.mxu0 %v666
  %945 = vmatpush.bf16.msra.mxu0 %v664
  %946 = vmatpush.bf16.msra.mxu0 %v662
  %947 = vmatpush.bf16.msra.mxu0 %v660
  %948 = vmatpush.bf16.msra.mxu0 %v658
  %949 = vmatpush.bf16.msra.mxu0 %v656
  %950 = vmatpush.bf16.msra.mxu0 %v654
  %951 = vmatmul.bf16.gmra.mxu0 %v346
  %v952 = vpop.f32.mrf.mxu0
  %v953 = vadd.f32 %v874, %v952
  %v954 = vpop.f32.mrf.mxu0
  %v955 = vadd.f32 %v876, %v954
  %956 = vmatmul.bf16.gmra.mxu0 %v350
  %v957 = vpop.f32.mrf.mxu0
  %v958 = vadd.f32 %v879, %v957
  %v959 = vpop.f32.mrf.mxu0
  %v960 = vadd.f32 %v881, %v959
  %961 = vmatmul.bf16.gmra.mxu0 %v354
  %v962 = vpop.f32.mrf.mxu0
  %v963 = vadd.f32 %v884, %v962
  %v964 = vpop.f32.mrf.mxu0
  %v965 = vadd.f32 %v886, %v964
  %966 = vmatmul.bf16.gmra.mxu0 %v358
  %v967 = vpop.f32.mrf.mxu0
  %v968 = vadd.f32 %v889, %v967
  %v969 = vpop.f32.mrf.mxu0
  %v970 = vadd.f32 %v891, %v969
  %971 = vmatmul.bf16.gmra.mxu0 %v362
  %v972 = vpop.f32.mrf.mxu0
  %v973 = vadd.f32 %v894, %v972
  %v974 = vpop.f32.mrf.mxu0
  %v975 = vadd.f32 %v896, %v974
  %976 = vmatmul.bf16.gmra.mxu0 %v366
  %v977 = vpop.f32.mrf.mxu0
  %v978 = vadd.f32 %v899, %v977
  %v979 = vpop.f32.mrf.mxu0
  %v980 = vadd.f32 %v901, %v979
  %981 = vmatmul.bf16.gmra.mxu0 %v370
  %v982 = vpop.f32.mrf.mxu0
  %v983 = vadd.f32 %v904, %v982
  %v984 = vpop.f32.mrf.mxu0
  %v985 = vadd.f32 %v906, %v984
  %986 = vmatmul.bf16.gmra.mxu0 %v374
  %v987 = vpop.f32.mrf.mxu0
  %v988 = vadd.f32 %v909, %v987
  %v989 = vpop.f32.mrf.mxu0
  %v990 = vadd.f32 %v911, %v989
  %991 = vmatmul.bf16.gmra.mxu0 %v378
  %v992 = vpop.f32.mrf.mxu0
  %v993 = vadd.f32 %v914, %v992
  %v994 = vpop.f32.mrf.mxu0
  %v995 = vadd.f32 %v916, %v994
  %996 = vmatmul.bf16.gmra.mxu0 %v382
  %v997 = vpop.f32.mrf.mxu0
  %v998 = vadd.f32 %v919, %v997
  %v999 = vpop.f32.mrf.mxu0
  %v1000 = vadd.f32 %v921, %v999
  %1001 = vmatmul.bf16.gmra.mxu0 %v386
  %v1002 = vpop.f32.mrf.mxu0
  %v1003 = vadd.f32 %v924, %v1002
  %v1004 = vpop.f32.mrf.mxu0
  %v1005 = vadd.f32 %v926, %v1004
  %1006 = vmatmul.bf16.gmra.mxu0 %v390
  %v1007 = vpop.f32.mrf.mxu0
  %v1008 = vadd.f32 %v929, %v1007
  %v1009 = vpop.f32.mrf.mxu0
  %v1010 = vadd.f32 %v931, %v1009
  %1011 = vmatmul.bf16.gmra.mxu0 %v394
  %v1012 = vpop.f32.mrf.mxu0
  %v1013 = vadd.f32 %v934, %v1012
  %v1014 = vpop.f32.mrf.mxu0
  %v1015 = vadd.f32 %v936, %v1014
  %1016 = vmatmul.bf16.gmra.mxu0 %v398
  %v1017 = vpop.f32.mrf.mxu0
  %v1018 = vadd.f32 %v939, %v1017
  %v1019 = vpop.f32.mrf.mxu0
  %v1020 = vadd.f32 %v941, %v1019
  %1021 = vdwg.mxu0
  %1022 = vmatpush.bf16.msra.mxu0 0
  %1023 = vmatpush.bf16.msra.mxu0 0
  %1024 = vmatpush.bf16.msra.mxu0 %v680
  %1025 = vmatpush.bf16.msra.mxu0 %v678
  %1026 = vmatpush.bf16.msra.mxu0 %v676
  %1027 = vmatpush.bf16.msra.mxu0 %v674
  %1028 = vmatpush.bf16.msra.mxu0 %v672
  %1029 = vmatpush.bf16.msra.mxu0 %v670
  %1030 = vmatmul.bf16.gmra.mxu0 %v744
  %v1031 = vpop.f32.mrf.mxu0
  %v1032 = vadd.f32 %v953, %v1031
  %v1033 = vpop.f32.mrf.mxu0
  %v1034 = vadd.f32 %v955, %v1033
  %1035 = vmatmul.bf16.gmra.mxu0 %v747
  %v1036 = vpop.f32.mrf.mxu0
  %v1037 = vadd.f32 %v958, %v1036
  %v1038 = vpop.f32.mrf.mxu0
  %v1039 = vadd.f32 %v960, %v1038
  %1040 = vmatmul.bf16.gmra.mxu0 %v750
  %v1041 = vpop.f32.mrf.mxu0
  %v1042 = vadd.f32 %v963, %v1041
  %v1043 = vpop.f32.mrf.mxu0
  %v1044 = vadd.f32 %v965, %v1043
  %1045 = vmatmul.bf16.gmra.mxu0 %v753
  %v1046 = vpop.f32.mrf.mxu0
  %v1047 = vadd.f32 %v968, %v1046
  %v1048 = vpop.f32.mrf.mxu0
  %v1049 = vadd.f32 %v970, %v1048
  %1050 = vmatmul.bf16.gmra.mxu0 %v756
  %v1051 = vpop.f32.mrf.mxu0
  %v1052 = vadd.f32 %v973, %v1051
  %v1053 = vpop.f32.mrf.mxu0
  %v1054 = vadd.f32 %v975, %v1053
  %1055 = vmatmul.bf16.gmra.mxu0 %v759
  %v1056 = vpop.f32.mrf.mxu0
  %v1057 = vadd.f32 %v978, %v1056
  %v1058 = vpop.f32.mrf.mxu0
  %v1059 = vadd.f32 %v980, %v1058
  %1060 = vmatmul.bf16.gmra.mxu0 %v762
  %v1061 = vpop.f32.mrf.mxu0
  %v1062 = vadd.f32 %v983, %v1061
  %v1063 = vpop.f32.mrf.mxu0
  %v1064 = vadd.f32 %v985, %v1063
  %1065 = vmatmul.bf16.gmra.mxu0 %v765
  %v1066 = vpop.f32.mrf.mxu0
  %v1067 = vadd.f32 %v988, %v1066
  %v1068 = vpop.f32.mrf.mxu0
  %v1069 = vadd.f32 %v990, %v1068
  %1070 = vmatmul.bf16.gmra.mxu0 %v768
  %v1071 = vpop.f32.mrf.mxu0
  %v1072 = vadd.f32 %v993, %v1071
  %v1073 = vpop.f32.mrf.mxu0
  %v1074 = vadd.f32 %v995, %v1073
  %1075 = vmatmul.bf16.gmra.mxu0 %v771
  %v1076 = vpop.f32.mrf.mxu0
  %v1077 = vadd.f32 %v998, %v1076
  %v1078 = vpop.f32.mrf.mxu0
  %v1079 = vadd.f32 %v1000, %v1078
  %1080 = vmatmul.bf16.gmra.mxu0 %v774
  %v1081 = vpop.f32.mrf.mxu0
  %v1082 = vadd.f32 %v1003, %v1081
  %v1083 = vpop.f32.mrf.mxu0
  %v1084 = vadd.f32 %v1005, %v1083
  %1085 = vmatmul.bf16.gmra.mxu0 %v777
  %v1086 = vpop.f32.mrf.mxu0
  %v1087 = vadd.f32 %v1008, %v1086
  %v1088 = vpop.f32.mrf.mxu0
  %v1089 = vadd.f32 %v1010, %v1088
  %1090 = vmatmul.bf16.gmra.mxu0 %v780
  %v1091 = vpop.f32.mrf.mxu0
  %v1092 = vadd.f32 %v1013, %v1091
  %v1093 = vpop.f32.mrf.mxu0
  %v1094 = vadd.f32 %v1015, %v1093
  %1095 = vmatmul.bf16.gmra.mxu0 %v783
  %v1096 = vpop.f32.mrf.mxu0
  %v1097 = vadd.f32 %v1018, %v1096
  %v1098 = vpop.f32.mrf.mxu0
  %v1099 = vadd.f32 %v1020, %v1098
  %1100 = vdwg.mxu0
  %1101 = vmatpush.bf16.msra.mxu0 %v637
  %1102 = vmatpush.bf16.msra.mxu0 %v635
  %1103 = vmatpush.bf16.msra.mxu0 %v633
  %1104 = vmatpush.bf16.msra.mxu0 %v631
  %1105 = vmatpush.bf16.msra.mxu0 %v629
  %1106 = vmatpush.bf16.msra.mxu0 %v627
  %1107 = vmatpush.bf16.msra.mxu0 %v625
  %1108 = vmatpush.bf16.msra.mxu0 %v623
  %1109 = vmatmul.bf16.gmra.mxu0 %v344
  %v1110 = vpop.f32.mrf.mxu0
  %v1111 = vadd.f32 %v173, %v1110
  %v1112 = vpop.f32.mrf.mxu0
  %v1113 = vadd.f32 %v173, %v1112
  %1114 = vmatmul.bf16.gmra.mxu0 %v348
  %v1115 = vpop.f32.mrf.mxu0
  %v1116 = vadd.f32 %v173, %v1115
  %v1117 = vpop.f32.mrf.mxu0
  %v1118 = vadd.f32 %v173, %v1117
  %1119 = vmatmul.bf16.gmra.mxu0 %v352
  %v1120 = vpop.f32.mrf.mxu0
  %v1121 = vadd.f32 %v173, %v1120
  %v1122 = vpop.f32.mrf.mxu0
  %v1123 = vadd.f32 %v173, %v1122
  %1124 = vmatmul.bf16.gmra.mxu0 %v356
  %v1125 = vpop.f32.mrf.mxu0
  %v1126 = vadd.f32 %v173, %v1125
  %v1127 = vpop.f32.mrf.mxu0
  %v1128 = vadd.f32 %v173, %v1127
  %1129 = vmatmul.bf16.gmra.mxu0 %v360
  %v1130 = vpop.f32.mrf.mxu0
  %v1131 = vadd.f32 %v173, %v1130
  %v1132 = vpop.f32.mrf.mxu0
  %v1133 = vadd.f32 %v173, %v1132
  %1134 = vmatmul.bf16.gmra.mxu0 %v364
  %v1135 = vpop.f32.mrf.mxu0
  %v1136 = vadd.f32 %v173, %v1135
  %v1137 = vpop.f32.mrf.mxu0
  %v1138 = vadd.f32 %v173, %v1137
  %1139 = vmatmul.bf16.gmra.mxu0 %v368
  %v1140 = vpop.f32.mrf.mxu0
  %v1141 = vadd.f32 %v173, %v1140
  %v1142 = vpop.f32.mrf.mxu0
  %v1143 = vadd.f32 %v173, %v1142
  %1144 = vmatmul.bf16.gmra.mxu0 %v372
  %v1145 = vpop.f32.mrf.mxu0
  %v1146 = vadd.f32 %v173, %v1145
  %v1147 = vpop.f32.mrf.mxu0
  %v1148 = vadd.f32 %v173, %v1147
  %1149 = vmatmul.bf16.gmra.mxu0 %v376
  %v1150 = vpop.f32.mrf.mxu0
  %v1151 = vadd.f32 %v173, %v1150
  %v1152 = vpop.f32.mrf.mxu0
  %v1153 = vadd.f32 %v173, %v1152
  %1154 = vmatmul.bf16.gmra.mxu0 %v380
  %v1155 = vpop.f32.mrf.mxu0
  %v1156 = vadd.f32 %v173, %v1155
  %v1157 = vpop.f32.mrf.mxu0
  %v1158 = vadd.f32 %v173, %v1157
  %1159 = vmatmul.bf16.gmra.mxu0 %v384
  %v1160 = vpop.f32.mrf.mxu0
  %v1161 = vadd.f32 %v173, %v1160
  %v1162 = vpop.f32.mrf.mxu0
  %v1163 = vadd.f32 %v173, %v1162
  %1164 = vmatmul.bf16.gmra.mxu0 %v388
  %v1165 = vpop.f32.mrf.mxu0
  %v1166 = vadd.f32 %v173, %v1165
  %v1167 = vpop.f32.mrf.mxu0
  %v1168 = vadd.f32 %v173, %v1167
  %1169 = vmatmul.bf16.gmra.mxu0 %v392
  %v1170 = vpop.f32.mrf.mxu0
  %v1171 = vadd.f32 %v173, %v1170
  %v1172 = vpop.f32.mrf.mxu0
  %v1173 = vadd.f32 %v173, %v1172
  %1174 = vmatmul.bf16.gmra.mxu0 %v396
  %v1175 = vpop.f32.mrf.mxu0
  %v1176 = vadd.f32 %v173, %v1175
  %v1177 = vpop.f32.mrf.mxu0
  %v1178 = vadd.f32 %v173, %v1177
  %1179 = vdwg.mxu0
  %1180 = vmatpush.bf16.msra.mxu0 %v653
  %1181 = vmatpush.bf16.msra.mxu0 %v651
  %1182 = vmatpush.bf16.msra.mxu0 %v649
  %1183 = vmatpush.bf16.msra.mxu0 %v647
  %1184 = vmatpush.bf16.msra.mxu0 %v645
  %1185 = vmatpush.bf16.msra.mxu0 %v643
  %1186 = vmatpush.bf16.msra.mxu0 %v641
  %1187 = vmatpush.bf16.msra.mxu0 %v639
  %1188 = vmatmul.bf16.gmra.mxu0 %v345
  %v1189 = vpop.f32.mrf.mxu0
  %v1190 = vadd.f32 %v1111, %v1189
  %v1191 = vpop.f32.mrf.mxu0
  %v1192 = vadd.f32 %v1113, %v1191
  %1193 = vmatmul.bf16.gmra.mxu0 %v349
  %v1194 = vpop.f32.mrf.mxu0
  %v1195 = vadd.f32 %v1116, %v1194
  %v1196 = vpop.f32.mrf.mxu0
  %v1197 = vadd.f32 %v1118, %v1196
  %1198 = vmatmul.bf16.gmra.mxu0 %v353
  %v1199 = vpop.f32.mrf.mxu0
  %v1200 = vadd.f32 %v1121, %v1199
  %v1201 = vpop.f32.mrf.mxu0
  %v1202 = vadd.f32 %v1123, %v1201
  %1203 = vmatmul.bf16.gmra.mxu0 %v357
  %v1204 = vpop.f32.mrf.mxu0
  %v1205 = vadd.f32 %v1126, %v1204
  %v1206 = vpop.f32.mrf.mxu0
  %v1207 = vadd.f32 %v1128, %v1206
  %1208 = vmatmul.bf16.gmra.mxu0 %v361
  %v1209 = vpop.f32.mrf.mxu0
  %v1210 = vadd.f32 %v1131, %v1209
  %v1211 = vpop.f32.mrf.mxu0
  %v1212 = vadd.f32 %v1133, %v1211
  %1213 = vmatmul.bf16.gmra.mxu0 %v365
  %v1214 = vpop.f32.mrf.mxu0
  %v1215 = vadd.f32 %v1136, %v1214
  %v1216 = vpop.f32.mrf.mxu0
  %v1217 = vadd.f32 %v1138, %v1216
  %1218 = vmatmul.bf16.gmra.mxu0 %v369
  %v1219 = vpop.f32.mrf.mxu0
  %v1220 = vadd.f32 %v1141, %v1219
  %v1221 = vpop.f32.mrf.mxu0
  %v1222 = vadd.f32 %v1143, %v1221
  %1223 = vmatmul.bf16.gmra.mxu0 %v373
  %v1224 = vpop.f32.mrf.mxu0
  %v1225 = vadd.f32 %v1146, %v1224
  %v1226 = vpop.f32.mrf.mxu0
  %v1227 = vadd.f32 %v1148, %v1226
  %1228 = vmatmul.bf16.gmra.mxu0 %v377
  %v1229 = vpop.f32.mrf.mxu0
  %v1230 = vadd.f32 %v1151, %v1229
  %v1231 = vpop.f32.mrf.mxu0
  %v1232 = vadd.f32 %v1153, %v1231
  %1233 = vmatmul.bf16.gmra.mxu0 %v381
  %v1234 = vpop.f32.mrf.mxu0
  %v1235 = vadd.f32 %v1156, %v1234
  %v1236 = vpop.f32.mrf.mxu0
  %v1237 = vadd.f32 %v1158, %v1236
  %1238 = vmatmul.bf16.gmra.mxu0 %v385
  %v1239 = vpop.f32.mrf.mxu0
  %v1240 = vadd.f32 %v1161, %v1239
  %v1241 = vpop.f32.mrf.mxu0
  %v1242 = vadd.f32 %v1163, %v1241
  %1243 = vmatmul.bf16.gmra.mxu0 %v389
  %v1244 = vpop.f32.mrf.mxu0
  %v1245 = vadd.f32 %v1166, %v1244
  %v1246 = vpop.f32.mrf.mxu0
  %v1247 = vadd.f32 %v1168, %v1246
  %1248 = vmatmul.bf16.gmra.mxu0 %v393
  %v1249 = vpop.f32.mrf.mxu0
  %v1250 = vadd.f32 %v1171, %v1249
  %v1251 = vpop.f32.mrf.mxu0
  %v1252 = vadd.f32 %v1173, %v1251
  %1253 = vmatmul.bf16.gmra.mxu0 %v397
  %v1254 = vpop.f32.mrf.mxu0
  %v1255 = vadd.f32 %v1176, %v1254
  %v1256 = vpop.f32.mrf.mxu0
  %v1257 = vadd.f32 %v1178, %v1256
  %1258 = vdwg.mxu0
  %1259 = vmatpush.bf16.msra.mxu0 %v669
  %1260 = vmatpush.bf16.msra.mxu0 %v667
  %1261 = vmatpush.bf16.msra.mxu0 %v665
  %1262 = vmatpush.bf16.msra.mxu0 %v663
  %1263 = vmatpush.bf16.msra.mxu0 %v661
  %1264 = vmatpush.bf16.msra.mxu0 %v659
  %1265 = vmatpush.bf16.msra.mxu0 %v657
  %1266 = vmatpush.bf16.msra.mxu0 %v655
  %1267 = vmatmul.bf16.gmra.mxu0 %v346
  %v1268 = vpop.f32.mrf.mxu0
  %v1269 = vadd.f32 %v1190, %v1268
  %v1270 = vpop.f32.mrf.mxu0
  %v1271 = vadd.f32 %v1192, %v1270
  %1272 = vmatmul.bf16.gmra.mxu0 %v350
  %v1273 = vpop.f32.mrf.mxu0
  %v1274 = vadd.f32 %v1195, %v1273
  %v1275 = vpop.f32.mrf.mxu0
  %v1276 = vadd.f32 %v1197, %v1275
  %1277 = vmatmul.bf16.gmra.mxu0 %v354
  %v1278 = vpop.f32.mrf.mxu0
  %v1279 = vadd.f32 %v1200, %v1278
  %v1280 = vpop.f32.mrf.mxu0
  %v1281 = vadd.f32 %v1202, %v1280
  %1282 = vmatmul.bf16.gmra.mxu0 %v358
  %v1283 = vpop.f32.mrf.mxu0
  %v1284 = vadd.f32 %v1205, %v1283
  %v1285 = vpop.f32.mrf.mxu0
  %v1286 = vadd.f32 %v1207, %v1285
  %1287 = vmatmul.bf16.gmra.mxu0 %v362
  %v1288 = vpop.f32.mrf.mxu0
  %v1289 = vadd.f32 %v1210, %v1288
  %v1290 = vpop.f32.mrf.mxu0
  %v1291 = vadd.f32 %v1212, %v1290
  %1292 = vmatmul.bf16.gmra.mxu0 %v366
  %v1293 = vpop.f32.mrf.mxu0
  %v1294 = vadd.f32 %v1215, %v1293
  %v1295 = vpop.f32.mrf.mxu0
  %v1296 = vadd.f32 %v1217, %v1295
  %1297 = vmatmul.bf16.gmra.mxu0 %v370
  %v1298 = vpop.f32.mrf.mxu0
  %v1299 = vadd.f32 %v1220, %v1298
  %v1300 = vpop.f32.mrf.mxu0
  %v1301 = vadd.f32 %v1222, %v1300
  %1302 = vmatmul.bf16.gmra.mxu0 %v374
  %v1303 = vpop.f32.mrf.mxu0
  %v1304 = vadd.f32 %v1225, %v1303
  %v1305 = vpop.f32.mrf.mxu0
  %v1306 = vadd.f32 %v1227, %v1305
  %1307 = vmatmul.bf16.gmra.mxu0 %v378
  %v1308 = vpop.f32.mrf.mxu0
  %v1309 = vadd.f32 %v1230, %v1308
  %v1310 = vpop.f32.mrf.mxu0
  %v1311 = vadd.f32 %v1232, %v1310
  %1312 = vmatmul.bf16.gmra.mxu0 %v382
  %v1313 = vpop.f32.mrf.mxu0
  %v1314 = vadd.f32 %v1235, %v1313
  %v1315 = vpop.f32.mrf.mxu0
  %v1316 = vadd.f32 %v1237, %v1315
  %1317 = vmatmul.bf16.gmra.mxu0 %v386
  %v1318 = vpop.f32.mrf.mxu0
  %v1319 = vadd.f32 %v1240, %v1318
  %v1320 = vpop.f32.mrf.mxu0
  %v1321 = vadd.f32 %v1242, %v1320
  %1322 = vmatmul.bf16.gmra.mxu0 %v390
  %v1323 = vpop.f32.mrf.mxu0
  %v1324 = vadd.f32 %v1245, %v1323
  %v1325 = vpop.f32.mrf.mxu0
  %v1326 = vadd.f32 %v1247, %v1325
  %1327 = vmatmul.bf16.gmra.mxu0 %v394
  %v1328 = vpop.f32.mrf.mxu0
  %v1329 = vadd.f32 %v1250, %v1328
  %v1330 = vpop.f32.mrf.mxu0
  %v1331 = vadd.f32 %v1252, %v1330
  %1332 = vmatmul.bf16.gmra.mxu0 %v398
  %v1333 = vpop.f32.mrf.mxu0
  %v1334 = vadd.f32 %v1255, %v1333
  %v1335 = vpop.f32.mrf.mxu0
  %v1336 = vadd.f32 %v1257, %v1335
  %1337 = vdwg.mxu0
  %1338 = vmatpush.bf16.msra.mxu0 0
  %1339 = vmatpush.bf16.msra.mxu0 0
  %1340 = vmatpush.bf16.msra.mxu0 %v681
  %1341 = vmatpush.bf16.msra.mxu0 %v679
  %1342 = vmatpush.bf16.msra.mxu0 %v677
  %1343 = vmatpush.bf16.msra.mxu0 %v675
  %1344 = vmatpush.bf16.msra.mxu0 %v673
  %1345 = vmatpush.bf16.msra.mxu0 %v671
  %1346 = vmatmul.bf16.gmra.mxu0 %v744
  %v1347 = vpop.f32.mrf.mxu0
  %v1348 = vadd.f32 %v1269, %v1347
  %v1349 = vpop.f32.mrf.mxu0
  %v1350 = vadd.f32 %v1271, %v1349
  %1351 = vmatmul.bf16.gmra.mxu0 %v747
  %v1352 = vpop.f32.mrf.mxu0
  %v1353 = vadd.f32 %v1274, %v1352
  %v1354 = vpop.f32.mrf.mxu0
  %v1355 = vadd.f32 %v1276, %v1354
  %1356 = vmatmul.bf16.gmra.mxu0 %v750
  %v1357 = vpop.f32.mrf.mxu0
  %v1358 = vadd.f32 %v1279, %v1357
  %v1359 = vpop.f32.mrf.mxu0
  %v1360 = vadd.f32 %v1281, %v1359
  %1361 = vmatmul.bf16.gmra.mxu0 %v753
  %v1362 = vpop.f32.mrf.mxu0
  %v1363 = vadd.f32 %v1284, %v1362
  %v1364 = vpop.f32.mrf.mxu0
  %v1365 = vadd.f32 %v1286, %v1364
  %1366 = vmatmul.bf16.gmra.mxu0 %v756
  %v1367 = vpop.f32.mrf.mxu0
  %v1368 = vadd.f32 %v1289, %v1367
  %v1369 = vpop.f32.mrf.mxu0
  %v1370 = vadd.f32 %v1291, %v1369
  %1371 = vmatmul.bf16.gmra.mxu0 %v759
  %v1372 = vpop.f32.mrf.mxu0
  %v1373 = vadd.f32 %v1294, %v1372
  %v1374 = vpop.f32.mrf.mxu0
  %v1375 = vadd.f32 %v1296, %v1374
  %1376 = vmatmul.bf16.gmra.mxu0 %v762
  %v1377 = vpop.f32.mrf.mxu0
  %v1378 = vadd.f32 %v1299, %v1377
  %v1379 = vpop.f32.mrf.mxu0
  %v1380 = vadd.f32 %v1301, %v1379
  %1381 = vmatmul.bf16.gmra.mxu0 %v765
  %v1382 = vpop.f32.mrf.mxu0
  %v1383 = vadd.f32 %v1304, %v1382
  %v1384 = vpop.f32.mrf.mxu0
  %v1385 = vadd.f32 %v1306, %v1384
  %1386 = vmatmul.bf16.gmra.mxu0 %v768
  %v1387 = vpop.f32.mrf.mxu0
  %v1388 = vadd.f32 %v1309, %v1387
  %v1389 = vpop.f32.mrf.mxu0
  %v1390 = vadd.f32 %v1311, %v1389
  %1391 = vmatmul.bf16.gmra.mxu0 %v771
  %v1392 = vpop.f32.mrf.mxu0
  %v1393 = vadd.f32 %v1314, %v1392
  %v1394 = vpop.f32.mrf.mxu0
  %v1395 = vadd.f32 %v1316, %v1394
  %1396 = vmatmul.bf16.gmra.mxu0 %v774
  %v1397 = vpop.f32.mrf.mxu0
  %v1398 = vadd.f32 %v1319, %v1397
  %v1399 = vpop.f32.mrf.mxu0
  %v1400 = vadd.f32 %v1321, %v1399
  %1401 = vmatmul.bf16.gmra.mxu0 %v777
  %v1402 = vpop.f32.mrf.mxu0
  %v1403 = vadd.f32 %v1324, %v1402
  %v1404 = vpop.f32.mrf.mxu0
  %v1405 = vadd.f32 %v1326, %v1404
  %1406 = vmatmul.bf16.gmra.mxu0 %v780
  %v1407 = vpop.f32.mrf.mxu0
  %v1408 = vadd.f32 %v1329, %v1407
  %v1409 = vpop.f32.mrf.mxu0
  %v1410 = vadd.f32 %v1331, %v1409
  %1411 = vmatmul.bf16.gmra.mxu0 %v783
  %v1412 = vpop.f32.mrf.mxu0
  %v1413 = vadd.f32 %v1334, %v1412
  %v1414 = vpop.f32.mrf.mxu0
  %v1415 = vadd.f32 %v1336, %v1414
  %1416 = vdwg.mxu0
  %v1417 = vmax.f32 %v1032, 0.0
  %v1418 = vmax.f32 %v1348, 0.0
  %v1419 = vmax.f32 %v1034, 0.0
  %v1420 = vmax.f32 %v1350, 0.0
  %v1421 = vmax.f32 %v1037, 0.0
  %v1422 = vmax.f32 %v1353, 0.0
  %v1423 = vmax.f32 %v1039, 0.0
  %v1424 = vmax.f32 %v1355, 0.0
  %v1425 = vmax.f32 %v1042, 0.0
  %v1426 = vmax.f32 %v1358, 0.0
  %v1427 = vmax.f32 %v1044, 0.0
  %v1428 = vmax.f32 %v1360, 0.0
  %v1429 = vmax.f32 %v1047, 0.0
  %v1430 = vmax.f32 %v1363, 0.0
  %v1431 = vmax.f32 %v1049, 0.0
  %v1432 = vmax.f32 %v1365, 0.0
  %v1433 = vmax.f32 %v1052, 0.0
  %v1434 = vmax.f32 %v1368, 0.0
  %v1435 = vmax.f32 %v1054, 0.0
  %v1436 = vmax.f32 %v1370, 0.0
  %v1437 = vmax.f32 %v1057, 0.0
  %v1438 = vmax.f32 %v1373, 0.0
  %v1439 = vmax.f32 %v1059, 0.0
  %v1440 = vmax.f32 %v1375, 0.0
  %v1441 = vmax.f32 %v1062, 0.0
  %v1442 = vmax.f32 %v1378, 0.0
  %v1443 = vmax.f32 %v1064, 0.0
  %v1444 = vmax.f32 %v1380, 0.0
  %v1445 = vmax.f32 %v1067, 0.0
  %v1446 = vmax.f32 %v1383, 0.0
  %v1447 = vmax.f32 %v1069, 0.0
  %v1448 = vmax.f32 %v1385, 0.0
  %v1449 = vmax.f32 %v1072, 0.0
  %v1450 = vmax.f32 %v1388, 0.0
  %v1451 = vmax.f32 %v1074, 0.0
  %v1452 = vmax.f32 %v1390, 0.0
  %v1453 = vmax.f32 %v1077, 0.0
  %v1454 = vmax.f32 %v1393, 0.0
  %v1455 = vmax.f32 %v1079, 0.0
  %v1456 = vmax.f32 %v1395, 0.0
  %v1457 = vmax.f32 %v1082, 0.0
  %v1458 = vmax.f32 %v1398, 0.0
  %v1459 = vmax.f32 %v1084, 0.0
  %v1460 = vmax.f32 %v1400, 0.0
  %v1461 = vmax.f32 %v1087, 0.0
  %v1462 = vmax.f32 %v1403, 0.0
  %v1463 = vmax.f32 %v1089, 0.0
  %v1464 = vmax.f32 %v1405, 0.0
  %v1465 = vmax.f32 %v1092, 0.0
  %v1466 = vmax.f32 %v1408, 0.0
  %v1467 = vmax.f32 %v1094, 0.0
  %v1468 = vmax.f32 %v1410, 0.0
  %v1469 = vmax.f32 %v1097, 0.0
  %v1470 = vmax.f32 %v1413, 0.0
  %v1471 = vmax.f32 %v1099, 0.0
  %v1472 = vmax.f32 %v1415, 0.0
  %v1473 = vld [vmem:[%s1] sm:$0xff]
  %v1474 = vld [vmem:[%s1 + $0x8] sm:$0xff]
  %v1475 = vld [vmem:[%s1 + $0x10] sm:$0xff]
  %v1476 = vld [vmem:[%s1 + $0x18] sm:$0xff]
  %v1477 = vld [vmem:[%s1 + $0x20] sm:$0xff]
  %v1478 = vld [vmem:[%s1 + $0x28] sm:$0xff]
  %v1479 = vld [vmem:[%s1 + $0x30] sm:$0xff]
  %v1480 = vld [vmem:[%s1 + $0x38] sm:$0xff]
  %v1481 = vld [vmem:[%s1 + $0x40] sm:$0xff]
  %v1482 = vld [vmem:[%s1 + $0x48] sm:$0xff]
  %v1483 = vld [vmem:[%s1 + $0x50] sm:$0xff]
  %v1484 = vld [vmem:[%s1 + $0x58] sm:$0xff]
  %v1485 = vld [vmem:[%s1 + $0x60] sm:$0xff]
  %v1486 = vld [vmem:[%s1 + $0x68] sm:$0xff]
  %v1487 = vld [vmem:[%s1 + $0x70] sm:$0xff]
  %v1488 = vld [vmem:[%s1 + $0x78] sm:$0xff]
  %v1489 = vld [vmem:[%s1 + $0x80] sm:$0xff]
  %v1490 = vld [vmem:[%s1 + $0x88] sm:$0xff]
  %v1491 = vld [vmem:[%s1 + $0x90] sm:$0xff]
  %v1492 = vld [vmem:[%s1 + $0x98] sm:$0xff]
  %v1493 = vld [vmem:[%s1 + $0xa0] sm:$0xff]
  %v1494 = vld [vmem:[%s1 + $0xa8] sm:$0xff]
  %v1495 = vld [vmem:[%s1 + $0xb0] sm:$0xff]
  %v1496 = vld [vmem:[%s1 + $0xb8] sm:$0xff]
  %v1497 = vld [vmem:[%s1 + $0xc0] sm:$0xff]
  %v1498 = vld [vmem:[%s1 + $0xc8] sm:$0xff]
  %v1499 = vld [vmem:[%s1 + $0xd0] sm:$0xff]
  %v1500 = vld [vmem:[%s1 + $0xd8] sm:$0xff]
  %v1501 = vld [vmem:[%s1 + $0xe0] sm:$0xff]
  %v1502 = vld [vmem:[%s1 + $0xe8] sm:$0xff]
  %v1503 = vld [vmem:[%s1 + $0xf0] sm:$0xff]
  %v1504 = vld [vmem:[%s1 + $0xf8] sm:$0xff]
  %v1505 = vld [vmem:[%s1 + $0x100] sm:$0xff]
  %v1506 = vld [vmem:[%s1 + $0x108] sm:$0xff]
  %v1507 = vld [vmem:[%s1 + $0x110] sm:$0xff]
  %v1508 = vld [vmem:[%s1 + $0x118] sm:$0xff]
  %v1509 = vld [vmem:[%s1 + $0x120] sm:$0xff]
  %v1510 = vld [vmem:[%s1 + $0x128] sm:$0xff]
  %v1511 = vld [vmem:[%s1 + $0x130] sm:$0xff]
  %v1512 = vld [vmem:[%s1 + $0x138] sm:$0xff]
  %v1513 = vld [vmem:[%s1 + $0x140] sm:$0xff]
  %v1514 = vld [vmem:[%s1 + $0x148] sm:$0xff]
  %v1515 = vld [vmem:[%s1 + $0x150] sm:$0xff]
  %v1516 = vld [vmem:[%s1 + $0x158] sm:$0xff]
  %v1517 = vld [vmem:[%s1 + $0x160] sm:$0xff]
  %v1518 = vld [vmem:[%s1 + $0x168] sm:$0xff]
  %v1519 = vld [vmem:[%s1 + $0x170] sm:$0xff]
  %v1520 = vld [vmem:[%s1 + $0x178] sm:$0xff]
  %v1521 = vld [vmem:[%s1 + $0x180] sm:$0xff]
  %v1522 = vld [vmem:[%s1 + $0x188] sm:$0xff]
  %v1523 = vld [vmem:[%s1 + $0x190] sm:$0xff]
  %v1524 = vld [vmem:[%s1 + $0x198] sm:$0xff]
  %v1525 = vld [vmem:[%s1 + $0x1a0] sm:$0xff]
  %v1526 = vld [vmem:[%s1 + $0x1a8] sm:$0xff]
  %v1527 = vld [vmem:[%s1 + $0x1b0] sm:$0xff]
  %v1528 = vld [vmem:[%s1 + $0x1b8] sm:$0xff]
  %v1585 = vunpack.c.l.b16 %v1473
  %v1586 = vunpack.c.h.b16 %v1473
  %v1587 = vunpack.c.l.b16 %v1474
  %v1588 = vunpack.c.h.b16 %v1474
  %v1589 = vunpack.c.l.b16 %v1475
  %v1590 = vunpack.c.h.b16 %v1475
  %v1591 = vunpack.c.l.b16 %v1476
  %v1592 = vunpack.c.h.b16 %v1476
  %v1593 = vunpack.c.l.b16 %v1477
  %v1594 = vunpack.c.h.b16 %v1477
  %v1595 = vunpack.c.l.b16 %v1478
  %v1596 = vunpack.c.h.b16 %v1478
  %v1597 = vunpack.c.l.b16 %v1479
  %v1598 = vunpack.c.h.b16 %v1479
  %v1599 = vunpack.c.l.b16 %v1480
  %v1600 = vunpack.c.h.b16 %v1480
  %v1601 = vunpack.c.l.b16 %v1481
  %v1602 = vunpack.c.h.b16 %v1481
  %v1603 = vunpack.c.l.b16 %v1482
  %v1604 = vunpack.c.h.b16 %v1482
  %v1605 = vunpack.c.l.b16 %v1483
  %v1606 = vunpack.c.h.b16 %v1483
  %v1607 = vunpack.c.l.b16 %v1484
  %v1608 = vunpack.c.h.b16 %v1484
  %v1609 = vunpack.c.l.b16 %v1485
  %v1610 = vunpack.c.h.b16 %v1485
  %v1611 = vunpack.c.l.b16 %v1486
  %v1612 = vunpack.c.h.b16 %v1486
  %v1613 = vunpack.c.l.b16 %v1487
  %v1614 = vunpack.c.h.b16 %v1487
  %v1615 = vunpack.c.l.b16 %v1488
  %v1616 = vunpack.c.h.b16 %v1488
  %v1617 = vunpack.c.l.b16 %v1489
  %v1618 = vunpack.c.h.b16 %v1489
  %v1619 = vunpack.c.l.b16 %v1490
  %v1620 = vunpack.c.h.b16 %v1490
  %v1621 = vunpack.c.l.b16 %v1491
  %v1622 = vunpack.c.h.b16 %v1491
  %v1623 = vunpack.c.l.b16 %v1492
  %v1624 = vunpack.c.h.b16 %v1492
  %v1625 = vunpack.c.l.b16 %v1493
  %v1626 = vunpack.c.h.b16 %v1493
  %v1627 = vunpack.c.l.b16 %v1494
  %v1628 = vunpack.c.h.b16 %v1494
  %v1629 = vunpack.c.l.b16 %v1495
  %v1630 = vunpack.c.h.b16 %v1495
  %v1631 = vunpack.c.l.b16 %v1496
  %v1632 = vunpack.c.h.b16 %v1496
  %v1633 = vunpack.c.l.b16 %v1497
  %v1634 = vunpack.c.h.b16 %v1497
  %v1635 = vunpack.c.l.b16 %v1498
  %v1636 = vunpack.c.h.b16 %v1498
  %v1637 = vunpack.c.l.b16 %v1499
  %v1638 = vunpack.c.h.b16 %v1499
  %v1639 = vunpack.c.l.b16 %v1500
  %v1640 = vunpack.c.h.b16 %v1500
  %v1641 = vunpack.c.l.b16 %v1501
  %v1642 = vunpack.c.h.b16 %v1501
  %v1643 = vunpack.c.l.b16 %v1502
  %v1644 = vunpack.c.h.b16 %v1502
  %v1645 = vunpack.c.l.b16 %v1503
  %v1646 = vunpack.c.h.b16 %v1503
  %v1647 = vunpack.c.l.b16 %v1504
  %v1648 = vunpack.c.h.b16 %v1504
  %v1649 = vunpack.c.l.b16 %v1505
  %v1650 = vunpack.c.h.b16 %v1505
  %v1651 = vunpack.c.l.b16 %v1506
  %v1652 = vunpack.c.h.b16 %v1506
  %v1653 = vunpack.c.l.b16 %v1507
  %v1654 = vunpack.c.h.b16 %v1507
  %v1655 = vunpack.c.l.b16 %v1508
  %v1656 = vunpack.c.h.b16 %v1508
  %v1657 = vunpack.c.l.b16 %v1509
  %v1658 = vunpack.c.h.b16 %v1509
  %v1659 = vunpack.c.l.b16 %v1510
  %v1660 = vunpack.c.h.b16 %v1510
  %v1661 = vunpack.c.l.b16 %v1511
  %v1662 = vunpack.c.h.b16 %v1511
  %v1663 = vunpack.c.l.b16 %v1512
  %v1664 = vunpack.c.h.b16 %v1512
  %v1665 = vunpack.c.l.b16 %v1513
  %v1666 = vunpack.c.h.b16 %v1513
  %v1667 = vunpack.c.l.b16 %v1514
  %v1668 = vunpack.c.h.b16 %v1514
  %v1669 = vunpack.c.l.b16 %v1515
  %v1670 = vunpack.c.h.b16 %v1515
  %v1671 = vunpack.c.l.b16 %v1516
  %v1672 = vunpack.c.h.b16 %v1516
  %v1673 = vunpack.c.l.b16 %v1517
  %v1674 = vunpack.c.h.b16 %v1517
  %v1675 = vunpack.c.l.b16 %v1518
  %v1676 = vunpack.c.h.b16 %v1518
  %v1677 = vunpack.c.l.b16 %v1519
  %v1678 = vunpack.c.h.b16 %v1519
  %v1679 = vunpack.c.l.b16 %v1520
  %v1680 = vunpack.c.h.b16 %v1520
  %v1681 = vunpack.c.l.b16 %v1521
  %v1682 = vunpack.c.h.b16 %v1521
  %v1683 = vunpack.c.l.b16 %v1522
  %v1684 = vunpack.c.h.b16 %v1522
  %v1685 = vunpack.c.l.b16 %v1523
  %v1686 = vunpack.c.h.b16 %v1523
  %v1687 = vunpack.c.l.b16 %v1524
  %v1688 = vunpack.c.h.b16 %v1524
  %v1689 = vunpack.c.l.b16 %v1525
  %v1690 = vunpack.c.h.b16 %v1525
  %v1691 = vunpack.c.l.b16 %v1526
  %v1692 = vunpack.c.h.b16 %v1526
  %v1693 = vunpack.c.l.b16 %v1527
  %v1694 = vunpack.c.h.b16 %v1527
  %v1695 = vunpack.c.l.b16 %v1528
  %v1696 = vunpack.c.h.b16 %v1528
  %v1697 = vpack.c.b16 %v1589, %v1585
  %v1698 = vpack.c.b16 %v1590, %v1586
  %v1699 = vpack.c.b16 %v1591, %v1587
  %v1700 = vpack.c.b16 %v1592, %v1588
  %v1701 = vpack.c.b16 %v1597, %v1593
  %v1702 = vpack.c.b16 %v1598, %v1594
  %v1703 = vpack.c.b16 %v1599, %v1595
  %v1704 = vpack.c.b16 %v1600, %v1596
  %v1705 = vpack.c.b16 %v1605, %v1601
  %v1706 = vpack.c.b16 %v1606, %v1602
  %v1707 = vpack.c.b16 %v1607, %v1603
  %v1708 = vpack.c.b16 %v1608, %v1604
  %v1709 = vpack.c.b16 %v1613, %v1609
  %v1710 = vpack.c.b16 %v1614, %v1610
  %v1711 = vpack.c.b16 %v1615, %v1611
  %v1712 = vpack.c.b16 %v1616, %v1612
  %v1713 = vpack.c.b16 %v1621, %v1617
  %v1714 = vpack.c.b16 %v1622, %v1618
  %v1715 = vpack.c.b16 %v1623, %v1619
  %v1716 = vpack.c.b16 %v1624, %v1620
  %v1717 = vpack.c.b16 %v1629, %v1625
  %v1718 = vpack.c.b16 %v1630, %v1626
  %v1719 = vpack.c.b16 %v1631, %v1627
  %v1720 = vpack.c.b16 %v1632, %v1628
  %v1721 = vpack.c.b16 %v1637, %v1633
  %v1722 = vpack.c.b16 %v1638, %v1634
  %v1723 = vpack.c.b16 %v1639, %v1635
  %v1724 = vpack.c.b16 %v1640, %v1636
  %v1725 = vpack.c.b16 %v1645, %v1641
  %v1726 = vpack.c.b16 %v1646, %v1642
  %v1727 = vpack.c.b16 %v1647, %v1643
  %v1728 = vpack.c.b16 %v1648, %v1644
  %v1729 = vpack.c.b16 %v1653, %v1649
  %v1730 = vpack.c.b16 %v1654, %v1650
  %v1731 = vpack.c.b16 %v1655, %v1651
  %v1732 = vpack.c.b16 %v1656, %v1652
  %v1733 = vpack.c.b16 %v1661, %v1657
  %v1734 = vpack.c.b16 %v1662, %v1658
  %v1735 = vpack.c.b16 %v1663, %v1659
  %v1736 = vpack.c.b16 %v1664, %v1660
  %v1737 = vpack.c.b16 %v1669, %v1665
  %v1738 = vpack.c.b16 %v1670, %v1666
  %v1739 = vpack.c.b16 %v1671, %v1667
  %v1740 = vpack.c.b16 %v1672, %v1668
  %v1741 = vpack.c.b16 %v1677, %v1673
  %v1742 = vpack.c.b16 %v1678, %v1674
  %v1743 = vpack.c.b16 %v1679, %v1675
  %v1744 = vpack.c.b16 %v1680, %v1676
  %v1745 = vpack.c.b16 %v1685, %v1681
  %v1746 = vpack.c.b16 %v1686, %v1682
  %v1747 = vpack.c.b16 %v1687, %v1683
  %v1748 = vpack.c.b16 %v1688, %v1684
  %v1749 = vpack.c.b16 %v1693, %v1689
  %v1750 = vpack.c.b16 %v1694, %v1690
  %v1751 = vpack.c.b16 %v1695, %v1691
  %v1752 = vpack.c.b16 %v1696, %v1692
  %v1796 = vsel %vm742, %v1700, 0
  %v1799 = vsel %vm742, %v1704, 0
  %v1802 = vsel %vm742, %v1708, 0
  %v1805 = vsel %vm742, %v1712, 0
  %v1808 = vsel %vm742, %v1716, 0
  %v1811 = vsel %vm742, %v1720, 0
  %v1814 = vsel %vm742, %v1724, 0
  %v1817 = vsel %vm742, %v1728, 0
  %v1820 = vsel %vm742, %v1732, 0
  %v1823 = vsel %vm742, %v1736, 0
  %v1826 = vsel %vm742, %v1740, 0
  %v1829 = vsel %vm742, %v1744, 0
  %v1832 = vsel %vm742, %v1748, 0
  %v1835 = vsel %vm742, %v1752, 0
  %1837 = vmatpush.bf16.msra.mxu0 %v636
  %1838 = vmatpush.bf16.msra.mxu0 %v634
  %1839 = vmatpush.bf16.msra.mxu0 %v632
  %1840 = vmatpush.bf16.msra.mxu0 %v630
  %1841 = vmatpush.bf16.msra.mxu0 %v628
  %1842 = vmatpush.bf16.msra.mxu0 %v626
  %1843 = vmatpush.bf16.msra.mxu0 %v624
  %1844 = vmatpush.bf16.msra.mxu0 %v622
  %1845 = vmatmul.bf16.gmra.mxu0 %v1697
  %v1846 = vpop.f32.mrf.mxu0
  %v1847 = vadd.f32 %v172, %v1846
  %v1848 = vpop.f32.mrf.mxu0
  %v1849 = vadd.f32 %v172, %v1848
  %1850 = vmatmul.bf16.gmra.mxu0 %v1701
  %v1851 = vpop.f32.mrf.mxu0
  %v1852 = vadd.f32 %v172, %v1851
  %v1853 = vpop.f32.mrf.mxu0
  %v1854 = vadd.f32 %v172, %v1853
  %1855 = vmatmul.bf16.gmra.mxu0 %v1705
  %v1856 = vpop.f32.mrf.mxu0
  %v1857 = vadd.f32 %v172, %v1856
  %v1858 = vpop.f32.mrf.mxu0
  %v1859 = vadd.f32 %v172, %v1858
  %1860 = vmatmul.bf16.gmra.mxu0 %v1709
  %v1861 = vpop.f32.mrf.mxu0
  %v1862 = vadd.f32 %v172, %v1861
  %v1863 = vpop.f32.mrf.mxu0
  %v1864 = vadd.f32 %v172, %v1863
  %1865 = vmatmul.bf16.gmra.mxu0 %v1713
  %v1866 = vpop.f32.mrf.mxu0
  %v1867 = vadd.f32 %v172, %v1866
  %v1868 = vpop.f32.mrf.mxu0
  %v1869 = vadd.f32 %v172, %v1868
  %1870 = vmatmul.bf16.gmra.mxu0 %v1717
  %v1871 = vpop.f32.mrf.mxu0
  %v1872 = vadd.f32 %v172, %v1871
  %v1873 = vpop.f32.mrf.mxu0
  %v1874 = vadd.f32 %v172, %v1873
  %1875 = vmatmul.bf16.gmra.mxu0 %v1721
  %v1876 = vpop.f32.mrf.mxu0
  %v1877 = vadd.f32 %v172, %v1876
  %v1878 = vpop.f32.mrf.mxu0
  %v1879 = vadd.f32 %v172, %v1878
  %1880 = vmatmul.bf16.gmra.mxu0 %v1725
  %v1881 = vpop.f32.mrf.mxu0
  %v1882 = vadd.f32 %v172, %v1881
  %v1883 = vpop.f32.mrf.mxu0
  %v1884 = vadd.f32 %v172, %v1883
  %1885 = vmatmul.bf16.gmra.mxu0 %v1729
  %v1886 = vpop.f32.mrf.mxu0
  %v1887 = vadd.f32 %v172, %v1886
  %v1888 = vpop.f32.mrf.mxu0
  %v1889 = vadd.f32 %v172, %v1888
  %1890 = vmatmul.bf16.gmra.mxu0 %v1733
  %v1891 = vpop.f32.mrf.mxu0
  %v1892 = vadd.f32 %v172, %v1891
  %v1893 = vpop.f32.mrf.mxu0
  %v1894 = vadd.f32 %v172, %v1893
  %1895 = vmatmul.bf16.gmra.mxu0 %v1737
  %v1896 = vpop.f32.mrf.mxu0
  %v1897 = vadd.f32 %v172, %v1896
  %v1898 = vpop.f32.mrf.mxu0
  %v1899 = vadd.f32 %v172, %v1898
  %1900 = vmatmul.bf16.gmra.mxu0 %v1741
  %v1901 = vpop.f32.mrf.mxu0
  %v1902 = vadd.f32 %v172, %v1901
  %v1903 = vpop.f32.mrf.mxu0
  %v1904 = vadd.f32 %v172, %v1903
  %1905 = vmatmul.bf16.gmra.mxu0 %v1745
  %v1906 = vpop.f32.mrf.mxu0
  %v1907 = vadd.f32 %v172, %v1906
  %v1908 = vpop.f32.mrf.mxu0
  %v1909 = vadd.f32 %v172, %v1908
  %1910 = vmatmul.bf16.gmra.mxu0 %v1749
  %v1911 = vpop.f32.mrf.mxu0
  %v1912 = vadd.f32 %v172, %v1911
  %v1913 = vpop.f32.mrf.mxu0
  %v1914 = vadd.f32 %v172, %v1913
  %1915 = vdwg.mxu0
  %1916 = vmatpush.bf16.msra.mxu0 %v652
  %1917 = vmatpush.bf16.msra.mxu0 %v650
  %1918 = vmatpush.bf16.msra.mxu0 %v648
  %1919 = vmatpush.bf16.msra.mxu0 %v646
  %1920 = vmatpush.bf16.msra.mxu0 %v644
  %1921 = vmatpush.bf16.msra.mxu0 %v642
  %1922 = vmatpush.bf16.msra.mxu0 %v640
  %1923 = vmatpush.bf16.msra.mxu0 %v638
  %1924 = vmatmul.bf16.gmra.mxu0 %v1698
  %v1925 = vpop.f32.mrf.mxu0
  %v1926 = vadd.f32 %v1847, %v1925
  %v1927 = vpop.f32.mrf.mxu0
  %v1928 = vadd.f32 %v1849, %v1927
  %1929 = vmatmul.bf16.gmra.mxu0 %v1702
  %v1930 = vpop.f32.mrf.mxu0
  %v1931 = vadd.f32 %v1852, %v1930
  %v1932 = vpop.f32.mrf.mxu0
  %v1933 = vadd.f32 %v1854, %v1932
  %1934 = vmatmul.bf16.gmra.mxu0 %v1706
  %v1935 = vpop.f32.mrf.mxu0
  %v1936 = vadd.f32 %v1857, %v1935
  %v1937 = vpop.f32.mrf.mxu0
  %v1938 = vadd.f32 %v1859, %v1937
  %1939 = vmatmul.bf16.gmra.mxu0 %v1710
  %v1940 = vpop.f32.mrf.mxu0
  %v1941 = vadd.f32 %v1862, %v1940
  %v1942 = vpop.f32.mrf.mxu0
  %v1943 = vadd.f32 %v1864, %v1942
  %1944 = vmatmul.bf16.gmra.mxu0 %v1714
  %v1945 = vpop.f32.mrf.mxu0
  %v1946 = vadd.f32 %v1867, %v1945
  %v1947 = vpop.f32.mrf.mxu0
  %v1948 = vadd.f32 %v1869, %v1947
  %1949 = vmatmul.bf16.gmra.mxu0 %v1718
  %v1950 = vpop.f32.mrf.mxu0
  %v1951 = vadd.f32 %v1872, %v1950
  %v1952 = vpop.f32.mrf.mxu0
  %v1953 = vadd.f32 %v1874, %v1952
  %1954 = vmatmul.bf16.gmra.mxu0 %v1722
  %v1955 = vpop.f32.mrf.mxu0
  %v1956 = vadd.f32 %v1877, %v1955
  %v1957 = vpop.f32.mrf.mxu0
  %v1958 = vadd.f32 %v1879, %v1957
  %1959 = vmatmul.bf16.gmra.mxu0 %v1726
  %v1960 = vpop.f32.mrf.mxu0
  %v1961 = vadd.f32 %v1882, %v1960
  %v1962 = vpop.f32.mrf.mxu0
  %v1963 = vadd.f32 %v1884, %v1962
  %1964 = vmatmul.bf16.gmra.mxu0 %v1730
  %v1965 = vpop.f32.mrf.mxu0
  %v1966 = vadd.f32 %v1887, %v1965
  %v1967 = vpop.f32.mrf.mxu0
  %v1968 = vadd.f32 %v1889, %v1967
  %1969 = vmatmul.bf16.gmra.mxu0 %v1734
  %v1970 = vpop.f32.mrf.mxu0
  %v1971 = vadd.f32 %v1892, %v1970
  %v1972 = vpop.f32.mrf.mxu0
  %v1973 = vadd.f32 %v1894, %v1972
  %1974 = vmatmul.bf16.gmra.mxu0 %v1738
  %v1975 = vpop.f32.mrf.mxu0
  %v1976 = vadd.f32 %v1897, %v1975
  %v1977 = vpop.f32.mrf.mxu0
  %v1978 = vadd.f32 %v1899, %v1977
  %1979 = vmatmul.bf16.gmra.mxu0 %v1742
  %v1980 = vpop.f32.mrf.mxu0
  %v1981 = vadd.f32 %v1902, %v1980
  %v1982 = vpop.f32.mrf.mxu0
  %v1983 = vadd.f32 %v1904, %v1982
  %1984 = vmatmul.bf16.gmra.mxu0 %v1746
  %v1985 = vpop.f32.mrf.mxu0
  %v1986 = vadd.f32 %v1907, %v1985
  %v1987 = vpop.f32.mrf.mxu0
  %v1988 = vadd.f32 %v1909, %v1987
  %1989 = vmatmul.bf16.gmra.mxu0 %v1750
  %v1990 = vpop.f32.mrf.mxu0
  %v1991 = vadd.f32 %v1912, %v1990
  %v1992 = vpop.f32.mrf.mxu0
  %v1993 = vadd.f32 %v1914, %v1992
  %1994 = vdwg.mxu0
  %1995 = vmatpush.bf16.msra.mxu0 %v668
  %1996 = vmatpush.bf16.msra.mxu0 %v666
  %1997 = vmatpush.bf16.msra.mxu0 %v664
  %1998 = vmatpush.bf16.msra.mxu0 %v662
  %1999 = vmatpush.bf16.msra.mxu0 %v660
  %2000 = vmatpush.bf16.msra.mxu0 %v658
  %2001 = vmatpush.bf16.msra.mxu0 %v656
  %2002 = vmatpush.bf16.msra.mxu0 %v654
  %2003 = vmatmul.bf16.gmra.mxu0 %v1699
  %v2004 = vpop.f32.mrf.mxu0
  %v2005 = vadd.f32 %v1926, %v2004
  %v2006 = vpop.f32.mrf.mxu0
  %v2007 = vadd.f32 %v1928, %v2006
  %2008 = vmatmul.bf16.gmra.mxu0 %v1703
  %v2009 = vpop.f32.mrf.mxu0
  %v2010 = vadd.f32 %v1931, %v2009
  %v2011 = vpop.f32.mrf.mxu0
  %v2012 = vadd.f32 %v1933, %v2011
  %2013 = vmatmul.bf16.gmra.mxu0 %v1707
  %v2014 = vpop.f32.mrf.mxu0
  %v2015 = vadd.f32 %v1936, %v2014
  %v2016 = vpop.f32.mrf.mxu0
  %v2017 = vadd.f32 %v1938, %v2016
  %2018 = vmatmul.bf16.gmra.mxu0 %v1711
  %v2019 = vpop.f32.mrf.mxu0
  %v2020 = vadd.f32 %v1941, %v2019
  %v2021 = vpop.f32.mrf.mxu0
  %v2022 = vadd.f32 %v1943, %v2021
  %2023 = vmatmul.bf16.gmra.mxu0 %v1715
  %v2024 = vpop.f32.mrf.mxu0
  %v2025 = vadd.f32 %v1946, %v2024
  %v2026 = vpop.f32.mrf.mxu0
  %v2027 = vadd.f32 %v1948, %v2026
  %2028 = vmatmul.bf16.gmra.mxu0 %v1719
  %v2029 = vpop.f32.mrf.mxu0
  %v2030 = vadd.f32 %v1951, %v2029
  %v2031 = vpop.f32.mrf.mxu0
  %v2032 = vadd.f32 %v1953, %v2031
  %2033 = vmatmul.bf16.gmra.mxu0 %v1723
  %v2034 = vpop.f32.mrf.mxu0
  %v2035 = vadd.f32 %v1956, %v2034
  %v2036 = vpop.f32.mrf.mxu0
  %v2037 = vadd.f32 %v1958, %v2036
  %2038 = vmatmul.bf16.gmra.mxu0 %v1727
  %v2039 = vpop.f32.mrf.mxu0
  %v2040 = vadd.f32 %v1961, %v2039
  %v2041 = vpop.f32.mrf.mxu0
  %v2042 = vadd.f32 %v1963, %v2041
  %2043 = vmatmul.bf16.gmra.mxu0 %v1731
  %v2044 = vpop.f32.mrf.mxu0
  %v2045 = vadd.f32 %v1966, %v2044
  %v2046 = vpop.f32.mrf.mxu0
  %v2047 = vadd.f32 %v1968, %v2046
  %2048 = vmatmul.bf16.gmra.mxu0 %v1735
  %v2049 = vpop.f32.mrf.mxu0
  %v2050 = vadd.f32 %v1971, %v2049
  %v2051 = vpop.f32.mrf.mxu0
  %v2052 = vadd.f32 %v1973, %v2051
  %2053 = vmatmul.bf16.gmra.mxu0 %v1739
  %v2054 = vpop.f32.mrf.mxu0
  %v2055 = vadd.f32 %v1976, %v2054
  %v2056 = vpop.f32.mrf.mxu0
  %v2057 = vadd.f32 %v1978, %v2056
  %2058 = vmatmul.bf16.gmra.mxu0 %v1743
  %v2059 = vpop.f32.mrf.mxu0
  %v2060 = vadd.f32 %v1981, %v2059
  %v2061 = vpop.f32.mrf.mxu0
  %v2062 = vadd.f32 %v1983, %v2061
  %2063 = vmatmul.bf16.gmra.mxu0 %v1747
  %v2064 = vpop.f32.mrf.mxu0
  %v2065 = vadd.f32 %v1986, %v2064
  %v2066 = vpop.f32.mrf.mxu0
  %v2067 = vadd.f32 %v1988, %v2066
  %2068 = vmatmul.bf16.gmra.mxu0 %v1751
  %v2069 = vpop.f32.mrf.mxu0
  %v2070 = vadd.f32 %v1991, %v2069
  %v2071 = vpop.f32.mrf.mxu0
  %v2072 = vadd.f32 %v1993, %v2071
  %2073 = vdwg.mxu0
  %2074 = vmatpush.bf16.msra.mxu0 0
  %2075 = vmatpush.bf16.msra.mxu0 0
  %2076 = vmatpush.bf16.msra.mxu0 %v680
  %2077 = vmatpush.bf16.msra.mxu0 %v678
  %2078 = vmatpush.bf16.msra.mxu0 %v676
  %2079 = vmatpush.bf16.msra.mxu0 %v674
  %2080 = vmatpush.bf16.msra.mxu0 %v672
  %2081 = vmatpush.bf16.msra.mxu0 %v670
  %2082 = vmatmul.bf16.gmra.mxu0 %v1796
  %v2083 = vpop.f32.mrf.mxu0
  %v2084 = vadd.f32 %v2005, %v2083
  %v2085 = vpop.f32.mrf.mxu0
  %v2086 = vadd.f32 %v2007, %v2085
  %2087 = vmatmul.bf16.gmra.mxu0 %v1799
  %v2088 = vpop.f32.mrf.mxu0
  %v2089 = vadd.f32 %v2010, %v2088
  %v2090 = vpop.f32.mrf.mxu0
  %v2091 = vadd.f32 %v2012, %v2090
  %2092 = vmatmul.bf16.gmra.mxu0 %v1802
  %v2093 = vpop.f32.mrf.mxu0
  %v2094 = vadd.f32 %v2015, %v2093
  %v2095 = vpop.f32.mrf.mxu0
  %v2096 = vadd.f32 %v2017, %v2095
  %2097 = vmatmul.bf16.gmra.mxu0 %v1805
  %v2098 = vpop.f32.mrf.mxu0
  %v2099 = vadd.f32 %v2020, %v2098
  %v2100 = vpop.f32.mrf.mxu0
  %v2101 = vadd.f32 %v2022, %v2100
  %2102 = vmatmul.bf16.gmra.mxu0 %v1808
  %v2103 = vpop.f32.mrf.mxu0
  %v2104 = vadd.f32 %v2025, %v2103
  %v2105 = vpop.f32.mrf.mxu0
  %v2106 = vadd.f32 %v2027, %v2105
  %2107 = vmatmul.bf16.gmra.mxu0 %v1811
  %v2108 = vpop.f32.mrf.mxu0
  %v2109 = vadd.f32 %v2030, %v2108
  %v2110 = vpop.f32.mrf.mxu0
  %v2111 = vadd.f32 %v2032, %v2110
  %2112 = vmatmul.bf16.gmra.mxu0 %v1814
  %v2113 = vpop.f32.mrf.mxu0
  %v2114 = vadd.f32 %v2035, %v2113
  %v2115 = vpop.f32.mrf.mxu0
  %v2116 = vadd.f32 %v2037, %v2115
  %2117 = vmatmul.bf16.gmra.mxu0 %v1817
  %v2118 = vpop.f32.mrf.mxu0
  %v2119 = vadd.f32 %v2040, %v2118
  %v2120 = vpop.f32.mrf.mxu0
  %v2121 = vadd.f32 %v2042, %v2120
  %2122 = vmatmul.bf16.gmra.mxu0 %v1820
  %v2123 = vpop.f32.mrf.mxu0
  %v2124 = vadd.f32 %v2045, %v2123
  %v2125 = vpop.f32.mrf.mxu0
  %v2126 = vadd.f32 %v2047, %v2125
  %2127 = vmatmul.bf16.gmra.mxu0 %v1823
  %v2128 = vpop.f32.mrf.mxu0
  %v2129 = vadd.f32 %v2050, %v2128
  %v2130 = vpop.f32.mrf.mxu0
  %v2131 = vadd.f32 %v2052, %v2130
  %2132 = vmatmul.bf16.gmra.mxu0 %v1826
  %v2133 = vpop.f32.mrf.mxu0
  %v2134 = vadd.f32 %v2055, %v2133
  %v2135 = vpop.f32.mrf.mxu0
  %v2136 = vadd.f32 %v2057, %v2135
  %2137 = vmatmul.bf16.gmra.mxu0 %v1829
  %v2138 = vpop.f32.mrf.mxu0
  %v2139 = vadd.f32 %v2060, %v2138
  %v2140 = vpop.f32.mrf.mxu0
  %v2141 = vadd.f32 %v2062, %v2140
  %2142 = vmatmul.bf16.gmra.mxu0 %v1832
  %v2143 = vpop.f32.mrf.mxu0
  %v2144 = vadd.f32 %v2065, %v2143
  %v2145 = vpop.f32.mrf.mxu0
  %v2146 = vadd.f32 %v2067, %v2145
  %2147 = vmatmul.bf16.gmra.mxu0 %v1835
  %v2148 = vpop.f32.mrf.mxu0
  %v2149 = vadd.f32 %v2070, %v2148
  %v2150 = vpop.f32.mrf.mxu0
  %v2151 = vadd.f32 %v2072, %v2150
  %2152 = vdwg.mxu0
  %2153 = vmatpush.bf16.msra.mxu0 %v637
  %2154 = vmatpush.bf16.msra.mxu0 %v635
  %2155 = vmatpush.bf16.msra.mxu0 %v633
  %2156 = vmatpush.bf16.msra.mxu0 %v631
  %2157 = vmatpush.bf16.msra.mxu0 %v629
  %2158 = vmatpush.bf16.msra.mxu0 %v627
  %2159 = vmatpush.bf16.msra.mxu0 %v625
  %2160 = vmatpush.bf16.msra.mxu0 %v623
  %2161 = vmatmul.bf16.gmra.mxu0 %v1697
  %v2162 = vpop.f32.mrf.mxu0
  %v2163 = vadd.f32 %v173, %v2162
  %v2164 = vpop.f32.mrf.mxu0
  %v2165 = vadd.f32 %v173, %v2164
  %2166 = vmatmul.bf16.gmra.mxu0 %v1701
  %v2167 = vpop.f32.mrf.mxu0
  %v2168 = vadd.f32 %v173, %v2167
  %v2169 = vpop.f32.mrf.mxu0
  %v2170 = vadd.f32 %v173, %v2169
  %2171 = vmatmul.bf16.gmra.mxu0 %v1705
  %v2172 = vpop.f32.mrf.mxu0
  %v2173 = vadd.f32 %v173, %v2172
  %v2174 = vpop.f32.mrf.mxu0
  %v2175 = vadd.f32 %v173, %v2174
  %2176 = vmatmul.bf16.gmra.mxu0 %v1709
  %v2177 = vpop.f32.mrf.mxu0
  %v2178 = vadd.f32 %v173, %v2177
  %v2179 = vpop.f32.mrf.mxu0
  %v2180 = vadd.f32 %v173, %v2179
  %2181 = vmatmul.bf16.gmra.mxu0 %v1713
  %v2182 = vpop.f32.mrf.mxu0
  %v2183 = vadd.f32 %v173, %v2182
  %v2184 = vpop.f32.mrf.mxu0
  %v2185 = vadd.f32 %v173, %v2184
  %2186 = vmatmul.bf16.gmra.mxu0 %v1717
  %v2187 = vpop.f32.mrf.mxu0
  %v2188 = vadd.f32 %v173, %v2187
  %v2189 = vpop.f32.mrf.mxu0
  %v2190 = vadd.f32 %v173, %v2189
  %2191 = vmatmul.bf16.gmra.mxu0 %v1721
  %v2192 = vpop.f32.mrf.mxu0
  %v2193 = vadd.f32 %v173, %v2192
  %v2194 = vpop.f32.mrf.mxu0
  %v2195 = vadd.f32 %v173, %v2194
  %2196 = vmatmul.bf16.gmra.mxu0 %v1725
  %v2197 = vpop.f32.mrf.mxu0
  %v2198 = vadd.f32 %v173, %v2197
  %v2199 = vpop.f32.mrf.mxu0
  %v2200 = vadd.f32 %v173, %v2199
  %2201 = vmatmul.bf16.gmra.mxu0 %v1729
  %v2202 = vpop.f32.mrf.mxu0
  %v2203 = vadd.f32 %v173, %v2202
  %v2204 = vpop.f32.mrf.mxu0
  %v2205 = vadd.f32 %v173, %v2204
  %2206 = vmatmul.bf16.gmra.mxu0 %v1733
  %v2207 = vpop.f32.mrf.mxu0
  %v2208 = vadd.f32 %v173, %v2207
  %v2209 = vpop.f32.mrf.mxu0
  %v2210 = vadd.f32 %v173, %v2209
  %2211 = vmatmul.bf16.gmra.mxu0 %v1737
  %v2212 = vpop.f32.mrf.mxu0
  %v2213 = vadd.f32 %v173, %v2212
  %v2214 = vpop.f32.mrf.mxu0
  %v2215 = vadd.f32 %v173, %v2214
  %2216 = vmatmul.bf16.gmra.mxu0 %v1741
  %v2217 = vpop.f32.mrf.mxu0
  %v2218 = vadd.f32 %v173, %v2217
  %v2219 = vpop.f32.mrf.mxu0
  %v2220 = vadd.f32 %v173, %v2219
  %2221 = vmatmul.bf16.gmra.mxu0 %v1745
  %v2222 = vpop.f32.mrf.mxu0
  %v2223 = vadd.f32 %v173, %v2222
  %v2224 = vpop.f32.mrf.mxu0
  %v2225 = vadd.f32 %v173, %v2224
  %2226 = vmatmul.bf16.gmra.mxu0 %v1749
  %v2227 = vpop.f32.mrf.mxu0
  %v2228 = vadd.f32 %v173, %v2227
  %v2229 = vpop.f32.mrf.mxu0
  %v2230 = vadd.f32 %v173, %v2229
  %2231 = vdwg.mxu0
  %2232 = vmatpush.bf16.msra.mxu0 %v653
  %2233 = vmatpush.bf16.msra.mxu0 %v651
  %2234 = vmatpush.bf16.msra.mxu0 %v649
  %2235 = vmatpush.bf16.msra.mxu0 %v647
  %2236 = vmatpush.bf16.msra.mxu0 %v645
  %2237 = vmatpush.bf16.msra.mxu0 %v643
  %2238 = vmatpush.bf16.msra.mxu0 %v641
  %2239 = vmatpush.bf16.msra.mxu0 %v639
  %2240 = vmatmul.bf16.gmra.mxu0 %v1698
  %v2241 = vpop.f32.mrf.mxu0
  %v2242 = vadd.f32 %v2163, %v2241
  %v2243 = vpop.f32.mrf.mxu0
  %v2244 = vadd.f32 %v2165, %v2243
  %2245 = vmatmul.bf16.gmra.mxu0 %v1702
  %v2246 = vpop.f32.mrf.mxu0
  %v2247 = vadd.f32 %v2168, %v2246
  %v2248 = vpop.f32.mrf.mxu0
  %v2249 = vadd.f32 %v2170, %v2248
  %2250 = vmatmul.bf16.gmra.mxu0 %v1706
  %v2251 = vpop.f32.mrf.mxu0
  %v2252 = vadd.f32 %v2173, %v2251
  %v2253 = vpop.f32.mrf.mxu0
  %v2254 = vadd.f32 %v2175, %v2253
  %2255 = vmatmul.bf16.gmra.mxu0 %v1710
  %v2256 = vpop.f32.mrf.mxu0
  %v2257 = vadd.f32 %v2178, %v2256
  %v2258 = vpop.f32.mrf.mxu0
  %v2259 = vadd.f32 %v2180, %v2258
  %2260 = vmatmul.bf16.gmra.mxu0 %v1714
  %v2261 = vpop.f32.mrf.mxu0
  %v2262 = vadd.f32 %v2183, %v2261
  %v2263 = vpop.f32.mrf.mxu0
  %v2264 = vadd.f32 %v2185, %v2263
  %2265 = vmatmul.bf16.gmra.mxu0 %v1718
  %v2266 = vpop.f32.mrf.mxu0
  %v2267 = vadd.f32 %v2188, %v2266
  %v2268 = vpop.f32.mrf.mxu0
  %v2269 = vadd.f32 %v2190, %v2268
  %2270 = vmatmul.bf16.gmra.mxu0 %v1722
  %v2271 = vpop.f32.mrf.mxu0
  %v2272 = vadd.f32 %v2193, %v2271
  %v2273 = vpop.f32.mrf.mxu0
  %v2274 = vadd.f32 %v2195, %v2273
  %2275 = vmatmul.bf16.gmra.mxu0 %v1726
  %v2276 = vpop.f32.mrf.mxu0
  %v2277 = vadd.f32 %v2198, %v2276
  %v2278 = vpop.f32.mrf.mxu0
  %v2279 = vadd.f32 %v2200, %v2278
  %2280 = vmatmul.bf16.gmra.mxu0 %v1730
  %v2281 = vpop.f32.mrf.mxu0
  %v2282 = vadd.f32 %v2203, %v2281
  %v2283 = vpop.f32.mrf.mxu0
  %v2284 = vadd.f32 %v2205, %v2283
  %2285 = vmatmul.bf16.gmra.mxu0 %v1734
  %v2286 = vpop.f32.mrf.mxu0
  %v2287 = vadd.f32 %v2208, %v2286
  %v2288 = vpop.f32.mrf.mxu0
  %v2289 = vadd.f32 %v2210, %v2288
  %2290 = vmatmul.bf16.gmra.mxu0 %v1738
  %v2291 = vpop.f32.mrf.mxu0
  %v2292 = vadd.f32 %v2213, %v2291
  %v2293 = vpop.f32.mrf.mxu0
  %v2294 = vadd.f32 %v2215, %v2293
  %2295 = vmatmul.bf16.gmra.mxu0 %v1742
  %v2296 = vpop.f32.mrf.mxu0
  %v2297 = vadd.f32 %v2218, %v2296
  %v2298 = vpop.f32.mrf.mxu0
  %v2299 = vadd.f32 %v2220, %v2298
  %2300 = vmatmul.bf16.gmra.mxu0 %v1746
  %v2301 = vpop.f32.mrf.mxu0
  %v2302 = vadd.f32 %v2223, %v2301
  %v2303 = vpop.f32.mrf.mxu0
  %v2304 = vadd.f32 %v2225, %v2303
  %2305 = vmatmul.bf16.gmra.mxu0 %v1750
  %v2306 = vpop.f32.mrf.mxu0
  %v2307 = vadd.f32 %v2228, %v2306
  %v2308 = vpop.f32.mrf.mxu0
  %v2309 = vadd.f32 %v2230, %v2308
  %2310 = vdwg.mxu0
  %2311 = vmatpush.bf16.msra.mxu0 %v669
  %2312 = vmatpush.bf16.msra.mxu0 %v667
  %2313 = vmatpush.bf16.msra.mxu0 %v665
  %2314 = vmatpush.bf16.msra.mxu0 %v663
  %2315 = vmatpush.bf16.msra.mxu0 %v661
  %2316 = vmatpush.bf16.msra.mxu0 %v659
  %2317 = vmatpush.bf16.msra.mxu0 %v657
  %2318 = vmatpush.bf16.msra.mxu0 %v655
  %2319 = vmatmul.bf16.gmra.mxu0 %v1699
  %v2320 = vpop.f32.mrf.mxu0
  %v2321 = vadd.f32 %v2242, %v2320
  %v2322 = vpop.f32.mrf.mxu0
  %v2323 = vadd.f32 %v2244, %v2322
  %2324 = vmatmul.bf16.gmra.mxu0 %v1703
  %v2325 = vpop.f32.mrf.mxu0
  %v2326 = vadd.f32 %v2247, %v2325
  %v2327 = vpop.f32.mrf.mxu0
  %v2328 = vadd.f32 %v2249, %v2327
  %2329 = vmatmul.bf16.gmra.mxu0 %v1707
  %v2330 = vpop.f32.mrf.mxu0
  %v2331 = vadd.f32 %v2252, %v2330
  %v2332 = vpop.f32.mrf.mxu0
  %v2333 = vadd.f32 %v2254, %v2332
  %2334 = vmatmul.bf16.gmra.mxu0 %v1711
  %v2335 = vpop.f32.mrf.mxu0
  %v2336 = vadd.f32 %v2257, %v2335
  %v2337 = vpop.f32.mrf.mxu0
  %v2338 = vadd.f32 %v2259, %v2337
  %2339 = vmatmul.bf16.gmra.mxu0 %v1715
  %v2340 = vpop.f32.mrf.mxu0
  %v2341 = vadd.f32 %v2262, %v2340
  %v2342 = vpop.f32.mrf.mxu0
  %v2343 = vadd.f32 %v2264, %v2342
  %2344 = vmatmul.bf16.gmra.mxu0 %v1719
  %v2345 = vpop.f32.mrf.mxu0
  %v2346 = vadd.f32 %v2267, %v2345
  %v2347 = vpop.f32.mrf.mxu0
  %v2348 = vadd.f32 %v2269, %v2347
  %2349 = vmatmul.bf16.gmra.mxu0 %v1723
  %v2350 = vpop.f32.mrf.mxu0
  %v2351 = vadd.f32 %v2272, %v2350
  %v2352 = vpop.f32.mrf.mxu0
  %v2353 = vadd.f32 %v2274, %v2352
  %2354 = vmatmul.bf16.gmra.mxu0 %v1727
  %v2355 = vpop.f32.mrf.mxu0
  %v2356 = vadd.f32 %v2277, %v2355
  %v2357 = vpop.f32.mrf.mxu0
  %v2358 = vadd.f32 %v2279, %v2357
  %2359 = vmatmul.bf16.gmra.mxu0 %v1731
  %v2360 = vpop.f32.mrf.mxu0
  %v2361 = vadd.f32 %v2282, %v2360
  %v2362 = vpop.f32.mrf.mxu0
  %v2363 = vadd.f32 %v2284, %v2362
  %2364 = vmatmul.bf16.gmra.mxu0 %v1735
  %v2365 = vpop.f32.mrf.mxu0
  %v2366 = vadd.f32 %v2287, %v2365
  %v2367 = vpop.f32.mrf.mxu0
  %v2368 = vadd.f32 %v2289, %v2367
  %2369 = vmatmul.bf16.gmra.mxu0 %v1739
  %v2370 = vpop.f32.mrf.mxu0
  %v2371 = vadd.f32 %v2292, %v2370
  %v2372 = vpop.f32.mrf.mxu0
  %v2373 = vadd.f32 %v2294, %v2372
  %2374 = vmatmul.bf16.gmra.mxu0 %v1743
  %v2375 = vpop.f32.mrf.mxu0
  %v2376 = vadd.f32 %v2297, %v2375
  %v2377 = vpop.f32.mrf.mxu0
  %v2378 = vadd.f32 %v2299, %v2377
  %2379 = vmatmul.bf16.gmra.mxu0 %v1747
  %v2380 = vpop.f32.mrf.mxu0
  %v2381 = vadd.f32 %v2302, %v2380
  %v2382 = vpop.f32.mrf.mxu0
  %v2383 = vadd.f32 %v2304, %v2382
  %2384 = vmatmul.bf16.gmra.mxu0 %v1751
  %v2385 = vpop.f32.mrf.mxu0
  %v2386 = vadd.f32 %v2307, %v2385
  %v2387 = vpop.f32.mrf.mxu0
  %v2388 = vadd.f32 %v2309, %v2387
  %2389 = vdwg.mxu0
  %2390 = vmatpush.bf16.msra.mxu0 0
  %2391 = vmatpush.bf16.msra.mxu0 0
  %2392 = vmatpush.bf16.msra.mxu0 %v681
  %2393 = vmatpush.bf16.msra.mxu0 %v679
  %2394 = vmatpush.bf16.msra.mxu0 %v677
  %2395 = vmatpush.bf16.msra.mxu0 %v675
  %2396 = vmatpush.bf16.msra.mxu0 %v673
  %2397 = vmatpush.bf16.msra.mxu0 %v671
  %2398 = vmatmul.bf16.gmra.mxu0 %v1796
  %v2399 = vpop.f32.mrf.mxu0
  %v2400 = vadd.f32 %v2321, %v2399
  %v2401 = vpop.f32.mrf.mxu0
  %v2402 = vadd.f32 %v2323, %v2401
  %2403 = vmatmul.bf16.gmra.mxu0 %v1799
  %v2404 = vpop.f32.mrf.mxu0
  %v2405 = vadd.f32 %v2326, %v2404
  %v2406 = vpop.f32.mrf.mxu0
  %v2407 = vadd.f32 %v2328, %v2406
  %2408 = vmatmul.bf16.gmra.mxu0 %v1802
  %v2409 = vpop.f32.mrf.mxu0
  %v2410 = vadd.f32 %v2331, %v2409
  %v2411 = vpop.f32.mrf.mxu0
  %v2412 = vadd.f32 %v2333, %v2411
  %2413 = vmatmul.bf16.gmra.mxu0 %v1805
  %v2414 = vpop.f32.mrf.mxu0
  %v2415 = vadd.f32 %v2336, %v2414
  %v2416 = vpop.f32.mrf.mxu0
  %v2417 = vadd.f32 %v2338, %v2416
  %2418 = vmatmul.bf16.gmra.mxu0 %v1808
  %v2419 = vpop.f32.mrf.mxu0
  %v2420 = vadd.f32 %v2341, %v2419
  %v2421 = vpop.f32.mrf.mxu0
  %v2422 = vadd.f32 %v2343, %v2421
  %2423 = vmatmul.bf16.gmra.mxu0 %v1811
  %v2424 = vpop.f32.mrf.mxu0
  %v2425 = vadd.f32 %v2346, %v2424
  %v2426 = vpop.f32.mrf.mxu0
  %v2427 = vadd.f32 %v2348, %v2426
  %2428 = vmatmul.bf16.gmra.mxu0 %v1814
  %v2429 = vpop.f32.mrf.mxu0
  %v2430 = vadd.f32 %v2351, %v2429
  %v2431 = vpop.f32.mrf.mxu0
  %v2432 = vadd.f32 %v2353, %v2431
  %2433 = vmatmul.bf16.gmra.mxu0 %v1817
  %v2434 = vpop.f32.mrf.mxu0
  %v2435 = vadd.f32 %v2356, %v2434
  %v2436 = vpop.f32.mrf.mxu0
  %v2437 = vadd.f32 %v2358, %v2436
  %2438 = vmatmul.bf16.gmra.mxu0 %v1820
  %v2439 = vpop.f32.mrf.mxu0
  %v2440 = vadd.f32 %v2361, %v2439
  %v2441 = vpop.f32.mrf.mxu0
  %v2442 = vadd.f32 %v2363, %v2441
  %2443 = vmatmul.bf16.gmra.mxu0 %v1823
  %v2444 = vpop.f32.mrf.mxu0
  %v2445 = vadd.f32 %v2366, %v2444
  %v2446 = vpop.f32.mrf.mxu0
  %v2447 = vadd.f32 %v2368, %v2446
  %2448 = vmatmul.bf16.gmra.mxu0 %v1826
  %v2449 = vpop.f32.mrf.mxu0
  %v2450 = vadd.f32 %v2371, %v2449
  %v2451 = vpop.f32.mrf.mxu0
  %v2452 = vadd.f32 %v2373, %v2451
  %2453 = vmatmul.bf16.gmra.mxu0 %v1829
  %v2454 = vpop.f32.mrf.mxu0
  %v2455 = vadd.f32 %v2376, %v2454
  %v2456 = vpop.f32.mrf.mxu0
  %v2457 = vadd.f32 %v2378, %v2456
  %2458 = vmatmul.bf16.gmra.mxu0 %v1832
  %v2459 = vpop.f32.mrf.mxu0
  %v2460 = vadd.f32 %v2381, %v2459
  %v2461 = vpop.f32.mrf.mxu0
  %v2462 = vadd.f32 %v2383, %v2461
  %2463 = vmatmul.bf16.gmra.mxu0 %v1835
  %v2464 = vpop.f32.mrf.mxu0
  %v2465 = vadd.f32 %v2386, %v2464
  %v2466 = vpop.f32.mrf.mxu0
  %v2467 = vadd.f32 %v2388, %v2466
  %2468 = vdwg.mxu0
  %v2469 = vmax.f32 %v2084, 0.0
  %v2470 = vmax.f32 %v2400, 0.0
  %v2471 = vmax.f32 %v2086, 0.0
  %v2472 = vmax.f32 %v2402, 0.0
  %v2473 = vmax.f32 %v2089, 0.0
  %v2474 = vmax.f32 %v2405, 0.0
  %v2475 = vmax.f32 %v2091, 0.0
  %v2476 = vmax.f32 %v2407, 0.0
  %v2477 = vmax.f32 %v2094, 0.0
  %v2478 = vmax.f32 %v2410, 0.0
  %v2479 = vmax.f32 %v2096, 0.0
  %v2480 = vmax.f32 %v2412, 0.0
  %v2481 = vmax.f32 %v2099, 0.0
  %v2482 = vmax.f32 %v2415, 0.0
  %v2483 = vmax.f32 %v2101, 0.0
  %v2484 = vmax.f32 %v2417, 0.0
  %v2485 = vmax.f32 %v2104, 0.0
  %v2486 = vmax.f32 %v2420, 0.0
  %v2487 = vmax.f32 %v2106, 0.0
  %v2488 = vmax.f32 %v2422, 0.0
  %v2489 = vmax.f32 %v2109, 0.0
  %v2490 = vmax.f32 %v2425, 0.0
  %v2491 = vmax.f32 %v2111, 0.0
  %v2492 = vmax.f32 %v2427, 0.0
  %v2493 = vmax.f32 %v2114, 0.0
  %v2494 = vmax.f32 %v2430, 0.0
  %v2495 = vmax.f32 %v2116, 0.0
  %v2496 = vmax.f32 %v2432, 0.0
  %v2497 = vmax.f32 %v2119, 0.0
  %v2498 = vmax.f32 %v2435, 0.0
  %v2499 = vmax.f32 %v2121, 0.0
  %v2500 = vmax.f32 %v2437, 0.0
  %v2501 = vmax.f32 %v2124, 0.0
  %v2502 = vmax.f32 %v2440, 0.0
  %v2503 = vmax.f32 %v2126, 0.0
  %v2504 = vmax.f32 %v2442, 0.0
  %v2505 = vmax.f32 %v2129, 0.0
  %v2506 = vmax.f32 %v2445, 0.0
  %v2507 = vmax.f32 %v2131, 0.0
  %v2508 = vmax.f32 %v2447, 0.0
  %v2509 = vmax.f32 %v2134, 0.0
  %v2510 = vmax.f32 %v2450, 0.0
  %v2511 = vmax.f32 %v2136, 0.0
  %v2512 = vmax.f32 %v2452, 0.0
  %v2513 = vmax.f32 %v2139, 0.0
  %v2514 = vmax.f32 %v2455, 0.0
  %v2515 = vmax.f32 %v2141, 0.0
  %v2516 = vmax.f32 %v2457, 0.0
  %v2517 = vmax.f32 %v2144, 0.0
  %v2518 = vmax.f32 %v2460, 0.0
  %v2519 = vmax.f32 %v2146, 0.0
  %v2520 = vmax.f32 %v2462, 0.0
  %v2521 = vmax.f32 %v2149, 0.0
  %v2522 = vmax.f32 %v2465, 0.0
  %v2523 = vmax.f32 %v2151, 0.0
  %v2524 = vmax.f32 %v2467, 0.0
  %v2525 = vmax.f32 %v1417, %v2469
  %v2526 = vmax.f32 %v1418, %v2470
  %v2527 = vmax.f32 %v1419, %v2471
  %v2528 = vmax.f32 %v1420, %v2472
  %v2529 = vmax.f32 %v1421, %v2473
  %v2530 = vmax.f32 %v1422, %v2474
  %v2531 = vmax.f32 %v1423, %v2475
  %v2532 = vmax.f32 %v1424, %v2476
  %v2533 = vmax.f32 %v1425, %v2477
  %v2534 = vmax.f32 %v1426, %v2478
  %v2535 = vmax.f32 %v1427, %v2479
  %v2536 = vmax.f32 %v1428, %v2480
  %v2537 = vmax.f32 %v1429, %v2481
  %v2538 = vmax.f32 %v1430, %v2482
  %v2539 = vmax.f32 %v1431, %v2483
  %v2540 = vmax.f32 %v1432, %v2484
  %v2541 = vmax.f32 %v1433, %v2485
  %v2542 = vmax.f32 %v1434, %v2486
  %v2543 = vmax.f32 %v1435, %v2487
  %v2544 = vmax.f32 %v1436, %v2488
  %v2545 = vmax.f32 %v1437, %v2489
  %v2546 = vmax.f32 %v1438, %v2490
  %v2547 = vmax.f32 %v1439, %v2491
  %v2548 = vmax.f32 %v1440, %v2492
  %v2549 = vmax.f32 %v1441, %v2493
  %v2550 = vmax.f32 %v1442, %v2494
  %v2551 = vmax.f32 %v1443, %v2495
  %v2552 = vmax.f32 %v1444, %v2496
  %v2553 = vmax.f32 %v1445, %v2497
  %v2554 = vmax.f32 %v1446, %v2498
  %v2555 = vmax.f32 %v1447, %v2499
  %v2556 = vmax.f32 %v1448, %v2500
  %v2557 = vmax.f32 %v1449, %v2501
  %v2558 = vmax.f32 %v1450, %v2502
  %v2559 = vmax.f32 %v1451, %v2503
  %v2560 = vmax.f32 %v1452, %v2504
  %v2561 = vmax.f32 %v1453, %v2505
  %v2562 = vmax.f32 %v1454, %v2506
  %v2563 = vmax.f32 %v1455, %v2507
  %v2564 = vmax.f32 %v1456, %v2508
  %v2565 = vmax.f32 %v1457, %v2509
  %v2566 = vmax.f32 %v1458, %v2510
  %v2567 = vmax.f32 %v1459, %v2511
  %v2568 = vmax.f32 %v1460, %v2512
  %v2569 = vmax.f32 %v1461, %v2513
  %v2570 = vmax.f32 %v1462, %v2514
  %v2571 = vmax.f32 %v1463, %v2515
  %v2572 = vmax.f32 %v1464, %v2516
  %v2573 = vmax.f32 %v1465, %v2517
  %v2574 = vmax.f32 %v1466, %v2518
  %v2575 = vmax.f32 %v1467, %v2519
  %v2576 = vmax.f32 %v1468, %v2520
  %v2577 = vmax.f32 %v1469, %v2521
  %v2578 = vmax.f32 %v1470, %v2522
  %v2579 = vmax.f32 %v1471, %v2523
  %v2580 = vmax.f32 %v1472, %v2524
  %v2581 = vpack.c.bf16 %v2527, %v2525
  %v2582 = vpack.c.bf16 %v2528, %v2526
  %v2583 = vpack.c.bf16 %v2531, %v2529
  %v2584 = vpack.c.bf16 %v2532, %v2530
  %v2585 = vpack.c.bf16 %v2535, %v2533
  %v2586 = vpack.c.bf16 %v2536, %v2534
  %v2587 = vpack.c.bf16 %v2539, %v2537
  %v2588 = vpack.c.bf16 %v2540, %v2538
  %v2589 = vpack.c.bf16 %v2543, %v2541
  %v2590 = vpack.c.bf16 %v2544, %v2542
  %v2591 = vpack.c.bf16 %v2547, %v2545
  %v2592 = vpack.c.bf16 %v2548, %v2546
  %v2593 = vpack.c.bf16 %v2551, %v2549
  %v2594 = vpack.c.bf16 %v2552, %v2550
  %v2595 = vpack.c.bf16 %v2555, %v2553
  %v2596 = vpack.c.bf16 %v2556, %v2554
  %v2597 = vpack.c.bf16 %v2559, %v2557
  %v2598 = vpack.c.bf16 %v2560, %v2558
  %v2599 = vpack.c.bf16 %v2563, %v2561
  %v2600 = vpack.c.bf16 %v2564, %v2562
  %v2601 = vpack.c.bf16 %v2567, %v2565
  %v2602 = vpack.c.bf16 %v2568, %v2566
  %v2603 = vpack.c.bf16 %v2571, %v2569
  %v2604 = vpack.c.bf16 %v2572, %v2570
  %v2605 = vpack.c.bf16 %v2575, %v2573
  %v2606 = vpack.c.bf16 %v2576, %v2574
  %v2607 = vpack.c.bf16 %v2579, %v2577
  %v2608 = vpack.c.bf16 %v2580, %v2578
  %v2609 = vld [vmem:[%s4] sm:$0xf]
  %v2610 = vld [vmem:[%s4 + $0x4] sm:$0xf]
  %v2611 = vld [vmem:[%s4 + $0x8] sm:$0xf]
  %v2612 = vld [vmem:[%s4 + $0xc] sm:$0xf]
  %v2613 = vld [vmem:[%s4 + $0x10] sm:$0xf]
  %v2614 = vld [vmem:[%s4 + $0x14] sm:$0xf]
  %v2615 = vld [vmem:[%s4 + $0x18] sm:$0xf]
  %v2616 = vld [vmem:[%s4 + $0x1c] sm:$0xf]
  %v2617 = vld [vmem:[%s4 + $0x20] sm:$0xf]
  %v2618 = vld [vmem:[%s4 + $0x24] sm:$0xf]
  %v2619 = vld [vmem:[%s4 + $0x28] sm:$0xf]
  %v2620 = vld [vmem:[%s4 + $0x2c] sm:$0xf]
  %v2621 = vld [vmem:[%s4 + $0x30] sm:$0xf]
  %v2622 = vld [vmem:[%s4 + $0x34] sm:$0xf]
  %v2623 = vld [vmem:[%s4 + $0x38] sm:$0xf]
  %v2624 = vld [vmem:[%s4 + $0x3c] sm:$0xf]
  %v2625 = vld [vmem:[%s4 + $0x40] sm:$0xf]
  %v2626 = vld [vmem:[%s4 + $0x44] sm:$0xf]
  %v2627 = vld [vmem:[%s4 + $0x48] sm:$0xf]
  %v2628 = vld [vmem:[%s4 + $0x4c] sm:$0xf]
  %v2629 = vld [vmem:[%s4 + $0x50] sm:$0xf]
  %v2651 = vunpack.c.l.b16 %v2609
  %v2652 = vunpack.c.l.b16 %v2610
  %v2653 = vunpack.c.l.b16 %v2611
  %v2654 = vunpack.c.l.b16 %v2612
  %v2655 = vunpack.c.l.b16 %v2613
  %v2656 = vunpack.c.l.b16 %v2614
  %v2657 = vunpack.c.l.b16 %v2615
  %v2658 = vunpack.c.l.b16 %v2616
  %v2659 = vunpack.c.l.b16 %v2617
  %v2660 = vunpack.c.l.b16 %v2618
  %v2661 = vunpack.c.l.b16 %v2619
  %v2662 = vunpack.c.l.b16 %v2620
  %v2663 = vunpack.c.l.b16 %v2621
  %v2664 = vunpack.c.l.b16 %v2622
  %v2665 = vunpack.c.l.b16 %v2623
  %v2666 = vunpack.c.l.b16 %v2624
  %v2667 = vunpack.c.l.b16 %v2625
  %v2668 = vunpack.c.l.b16 %v2626
  %v2669 = vunpack.c.l.b16 %v2627
  %v2670 = vunpack.c.l.b16 %v2628
  %v2671 = vunpack.c.l.b16 %v2629
  %v2672 = vpack.c.b16 %v2652, %v2651
  %v2673 = vpack.c.b16 %v2654, %v2653
  %v2674 = vpack.c.b16 %v2656, %v2655
  %v2675 = vpack.c.b16 %v2658, %v2657
  %v2676 = vpack.c.b16 %v2660, %v2659
  %v2677 = vpack.c.b16 %v2662, %v2661
  %v2678 = vpack.c.b16 %v2664, %v2663
  %v2679 = vpack.c.b16 %v2666, %v2665
  %v2680 = vpack.c.b16 %v2668, %v2667
  %v2681 = vpack.c.b16 %v2670, %v2669
  %v2682 = vpack.c.b16 %v2671, %v2671
  %vm2693 = vcmask 326656
  %v2695 = vsel %vm2693, %v2582, 0
  %v2698 = vsel %vm2693, %v2584, 0
  %v2701 = vsel %vm2693, %v2586, 0
  %v2704 = vsel %vm2693, %v2588, 0
  %v2707 = vsel %vm2693, %v2590, 0
  %v2710 = vsel %vm2693, %v2592, 0
  %v2713 = vsel %vm2693, %v2594, 0
  %v2716 = vsel %vm2693, %v2596, 0
  %v2719 = vsel %vm2693, %v2598, 0
  %v2722 = vsel %vm2693, %v2600, 0
  %v2725 = vsel %vm2693, %v2602, 0
  %v2728 = vsel %vm2693, %v2604, 0
  %v2731 = vsel %vm2693, %v2606, 0
  %v2734 = vsel %vm2693, %v2608, 0
  %vm2736 = vcmask 1043456
  %v2738 = vsel %vm2736, %v2682, 0
  %2740 = vmatpush.bf16.msra.mxu0 %v2679
  %2741 = vmatpush.bf16.msra.mxu0 %v2678
  %2742 = vmatpush.bf16.msra.mxu0 %v2677
  %2743 = vmatpush.bf16.msra.mxu0 %v2676
  %2744 = vmatpush.bf16.msra.mxu0 %v2675
  %2745 = vmatpush.bf16.msra.mxu0 %v2674
  %2746 = vmatpush.bf16.msra.mxu0 %v2673
  %2747 = vmatpush.bf16.msra.mxu0 %v2672
  %2748 = vmatmul.bf16.gmra.mxu0 %v2581
  %v2749 = vpop.f32.mrf.mxu0
  %v2750 = vadd.f32 0.0, %v2749
  %v2751 = vpop.f32.mrf.mxu0
  %v2752 = vadd.f32 0.0, %v2751
  %2753 = vmatmul.bf16.gmra.mxu0 %v2583
  %v2754 = vpop.f32.mrf.mxu0
  %v2755 = vadd.f32 0.0, %v2754
  %v2756 = vpop.f32.mrf.mxu0
  %v2757 = vadd.f32 0.0, %v2756
  %2758 = vmatmul.bf16.gmra.mxu0 %v2585
  %v2759 = vpop.f32.mrf.mxu0
  %v2760 = vadd.f32 0.0, %v2759
  %v2761 = vpop.f32.mrf.mxu0
  %v2762 = vadd.f32 0.0, %v2761
  %2763 = vmatmul.bf16.gmra.mxu0 %v2587
  %v2764 = vpop.f32.mrf.mxu0
  %v2765 = vadd.f32 0.0, %v2764
  %v2766 = vpop.f32.mrf.mxu0
  %v2767 = vadd.f32 0.0, %v2766
  %2768 = vmatmul.bf16.gmra.mxu0 %v2589
  %v2769 = vpop.f32.mrf.mxu0
  %v2770 = vadd.f32 0.0, %v2769
  %v2771 = vpop.f32.mrf.mxu0
  %v2772 = vadd.f32 0.0, %v2771
  %2773 = vmatmul.bf16.gmra.mxu0 %v2591
  %v2774 = vpop.f32.mrf.mxu0
  %v2775 = vadd.f32 0.0, %v2774
  %v2776 = vpop.f32.mrf.mxu0
  %v2777 = vadd.f32 0.0, %v2776
  %2778 = vmatmul.bf16.gmra.mxu0 %v2593
  %v2779 = vpop.f32.mrf.mxu0
  %v2780 = vadd.f32 0.0, %v2779
  %v2781 = vpop.f32.mrf.mxu0
  %v2782 = vadd.f32 0.0, %v2781
  %2783 = vmatmul.bf16.gmra.mxu0 %v2595
  %v2784 = vpop.f32.mrf.mxu0
  %v2785 = vadd.f32 0.0, %v2784
  %v2786 = vpop.f32.mrf.mxu0
  %v2787 = vadd.f32 0.0, %v2786
  %2788 = vmatmul.bf16.gmra.mxu0 %v2597
  %v2789 = vpop.f32.mrf.mxu0
  %v2790 = vadd.f32 0.0, %v2789
  %v2791 = vpop.f32.mrf.mxu0
  %v2792 = vadd.f32 0.0, %v2791
  %2793 = vmatmul.bf16.gmra.mxu0 %v2599
  %v2794 = vpop.f32.mrf.mxu0
  %v2795 = vadd.f32 0.0, %v2794
  %v2796 = vpop.f32.mrf.mxu0
  %v2797 = vadd.f32 0.0, %v2796
  %2798 = vmatmul.bf16.gmra.mxu0 %v2601
  %v2799 = vpop.f32.mrf.mxu0
  %v2800 = vadd.f32 0.0, %v2799
  %v2801 = vpop.f32.mrf.mxu0
  %v2802 = vadd.f32 0.0, %v2801
  %2803 = vmatmul.bf16.gmra.mxu0 %v2603
  %v2804 = vpop.f32.mrf.mxu0
  %v2805 = vadd.f32 0.0, %v2804
  %v2806 = vpop.f32.mrf.mxu0
  %v2807 = vadd.f32 0.0, %v2806
  %2808 = vmatmul.bf16.gmra.mxu0 %v2605
  %v2809 = vpop.f32.mrf.mxu0
  %v2810 = vadd.f32 0.0, %v2809
  %v2811 = vpop.f32.mrf.mxu0
  %v2812 = vadd.f32 0.0, %v2811
  %2813 = vmatmul.bf16.gmra.mxu0 %v2607
  %v2814 = vpop.f32.mrf.mxu0
  %v2815 = vadd.f32 0.0, %v2814
  %v2816 = vpop.f32.mrf.mxu0
  %v2817 = vadd.f32 0.0, %v2816
  %2818 = vdwg.mxu0
  %2819 = vmatpush.bf16.msra.mxu0 0
  %2820 = vmatpush.bf16.msra.mxu0 0
  %2821 = vmatpush.bf16.msra.mxu0 0
  %2822 = vmatpush.bf16.msra.mxu0 0
  %2823 = vmatpush.bf16.msra.mxu0 0
  %2824 = vmatpush.bf16.msra.mxu0 %v2738
  %2825 = vmatpush.bf16.msra.mxu0 %v2681
  %2826 = vmatpush.bf16.msra.mxu0 %v2680
  %2827 = vmatmul.bf16.gmra.mxu0 %v2695
  %v2828 = vpop.f32.mrf.mxu0
  %v2829 = vadd.f32 %v2750, %v2828
  %v2830 = vpop.f32.mrf.mxu0
  %v2831 = vadd.f32 %v2752, %v2830
  %2832 = vmatmul.bf16.gmra.mxu0 %v2698
  %v2833 = vpop.f32.mrf.mxu0
  %v2834 = vadd.f32 %v2755, %v2833
  %v2835 = vpop.f32.mrf.mxu0
  %v2836 = vadd.f32 %v2757, %v2835
  %2837 = vmatmul.bf16.gmra.mxu0 %v2701
  %v2838 = vpop.f32.mrf.mxu0
  %v2839 = vadd.f32 %v2760, %v2838
  %v2840 = vpop.f32.mrf.mxu0
  %v2841 = vadd.f32 %v2762, %v2840
  %2842 = vmatmul.bf16.gmra.mxu0 %v2704
  %v2843 = vpop.f32.mrf.mxu0
  %v2844 = vadd.f32 %v2765, %v2843
  %v2845 = vpop.f32.mrf.mxu0
  %v2846 = vadd.f32 %v2767, %v2845
  %2847 = vmatmul.bf16.gmra.mxu0 %v2707
  %v2848 = vpop.f32.mrf.mxu0
  %v2849 = vadd.f32 %v2770, %v2848
  %v2850 = vpop.f32.mrf.mxu0
  %v2851 = vadd.f32 %v2772, %v2850
  %2852 = vmatmul.bf16.gmra.mxu0 %v2710
  %v2853 = vpop.f32.mrf.mxu0
  %v2854 = vadd.f32 %v2775, %v2853
  %v2855 = vpop.f32.mrf.mxu0
  %v2856 = vadd.f32 %v2777, %v2855
  %2857 = vmatmul.bf16.gmra.mxu0 %v2713
  %v2858 = vpop.f32.mrf.mxu0
  %v2859 = vadd.f32 %v2780, %v2858
  %v2860 = vpop.f32.mrf.mxu0
  %v2861 = vadd.f32 %v2782, %v2860
  %2862 = vmatmul.bf16.gmra.mxu0 %v2716
  %v2863 = vpop.f32.mrf.mxu0
  %v2864 = vadd.f32 %v2785, %v2863
  %v2865 = vpop.f32.mrf.mxu0
  %v2866 = vadd.f32 %v2787, %v2865
  %2867 = vmatmul.bf16.gmra.mxu0 %v2719
  %v2868 = vpop.f32.mrf.mxu0
  %v2869 = vadd.f32 %v2790, %v2868
  %v2870 = vpop.f32.mrf.mxu0
  %v2871 = vadd.f32 %v2792, %v2870
  %2872 = vmatmul.bf16.gmra.mxu0 %v2722
  %v2873 = vpop.f32.mrf.mxu0
  %v2874 = vadd.f32 %v2795, %v2873
  %v2875 = vpop.f32.mrf.mxu0
  %v2876 = vadd.f32 %v2797, %v2875
  %2877 = vmatmul.bf16.gmra.mxu0 %v2725
  %v2878 = vpop.f32.mrf.mxu0
  %v2879 = vadd.f32 %v2800, %v2878
  %v2880 = vpop.f32.mrf.mxu0
  %v2881 = vadd.f32 %v2802, %v2880
  %2882 = vmatmul.bf16.gmra.mxu0 %v2728
  %v2883 = vpop.f32.mrf.mxu0
  %v2884 = vadd.f32 %v2805, %v2883
  %v2885 = vpop.f32.mrf.mxu0
  %v2886 = vadd.f32 %v2807, %v2885
  %2887 = vmatmul.bf16.gmra.mxu0 %v2731
  %v2888 = vpop.f32.mrf.mxu0
  %v2889 = vadd.f32 %v2810, %v2888
  %v2890 = vpop.f32.mrf.mxu0
  %v2891 = vadd.f32 %v2812, %v2890
  %2892 = vmatmul.bf16.gmra.mxu0 %v2734
  %v2893 = vpop.f32.mrf.mxu0
  %v2894 = vadd.f32 %v2815, %v2893
  %v2895 = vpop.f32.mrf.mxu0
  %v2896 = vadd.f32 %v2817, %v2895
  %2897 = vdwg.mxu0
  %v2898 = vld [vmem:[%s5] sm:$0xf]
  %v2899 = vld [vmem:[%s5 + $0x4] sm:$0xf]
  %v2900 = vld [vmem:[%s5 + $0x8] sm:$0xf]
  %v2901 = vld [vmem:[%s5 + $0xc] sm:$0xf]
  %v2902 = vld [vmem:[%s5 + $0x10] sm:$0xf]
  %v2903 = vld [vmem:[%s5 + $0x14] sm:$0xf]
  %v2904 = vld [vmem:[%s5 + $0x18] sm:$0xf]
  %v2905 = vld [vmem:[%s5 + $0x1c] sm:$0xf]
  %v2906 = vld [vmem:[%s5 + $0x20] sm:$0xf]
  %v2907 = vld [vmem:[%s5 + $0x24] sm:$0xf]
  %v2908 = vld [vmem:[%s5 + $0x28] sm:$0xf]
  %v2909 = vld [vmem:[%s5 + $0x2c] sm:$0xf]
  %v2910 = vld [vmem:[%s5 + $0x30] sm:$0xf]
  %v2911 = vld [vmem:[%s5 + $0x34] sm:$0xf]
  %v2912 = vld [vmem:[%s5 + $0x38] sm:$0xf]
  %v2913 = vld [vmem:[%s5 + $0x3c] sm:$0xf]
  %v2914 = vld [vmem:[%s5 + $0x40] sm:$0xf]
  %v2915 = vld [vmem:[%s5 + $0x44] sm:$0xf]
  %v2916 = vld [vmem:[%s5 + $0x48] sm:$0xf]
  %v2917 = vld [vmem:[%s5 + $0x4c] sm:$0xf]
  %v2918 = vld [vmem:[%s5 + $0x50] sm:$0xf]
  %v2940 = vunpack.c.l.b16 %v2898
  %v2941 = vunpack.c.l.b16 %v2899
  %v2942 = vunpack.c.l.b16 %v2900
  %v2943 = vunpack.c.l.b16 %v2901
  %v2944 = vunpack.c.l.b16 %v2902
  %v2945 = vunpack.c.l.b16 %v2903
  %v2946 = vunpack.c.l.b16 %v2904
  %v2947 = vunpack.c.l.b16 %v2905
  %v2948 = vunpack.c.l.b16 %v2906
  %v2949 = vunpack.c.l.b16 %v2907
  %v2950 = vunpack.c.l.b16 %v2908
  %v2951 = vunpack.c.l.b16 %v2909
  %v2952 = vunpack.c.l.b16 %v2910
  %v2953 = vunpack.c.l.b16 %v2911
  %v2954 = vunpack.c.l.b16 %v2912
  %v2955 = vunpack.c.l.b16 %v2913
  %v2956 = vunpack.c.l.b16 %v2914
  %v2957 = vunpack.c.l.b16 %v2915
  %v2958 = vunpack.c.l.b16 %v2916
  %v2959 = vunpack.c.l.b16 %v2917
  %v2960 = vunpack.c.l.b16 %v2918
  %v2961 = vpack.c.b16 %v2941, %v2940
  %v2962 = vpack.c.b16 %v2943, %v2942
  %v2963 = vpack.c.b16 %v2945, %v2944
  %v2964 = vpack.c.b16 %v2947, %v2946
  %v2965 = vpack.c.b16 %v2949, %v2948
  %v2966 = vpack.c.b16 %v2951, %v2950
  %v2967 = vpack.c.b16 %v2953, %v2952
  %v2968 = vpack.c.b16 %v2955, %v2954
  %v2969 = vpack.c.b16 %v2957, %v2956
  %v2970 = vpack.c.b16 %v2959, %v2958
  %v2971 = vpack.c.b16 %v2960, %v2960
  %v2983 = vsel %vm2736, %v2971, 0
  %2985 = vmatpush.bf16.msra.mxu0 %v2968
  %2986 = vmatpush.bf16.msra.mxu0 %v2967
  %2987 = vmatpush.bf16.msra.mxu0 %v2966
  %2988 = vmatpush.bf16.msra.mxu0 %v2965
  %2989 = vmatpush.bf16.msra.mxu0 %v2964
  %2990 = vmatpush.bf16.msra.mxu0 %v2963
  %2991 = vmatpush.bf16.msra.mxu0 %v2962
  %2992 = vmatpush.bf16.msra.mxu0 %v2961
  %2993 = vmatmul.bf16.gmra.mxu0 %v2581
  %v2994 = vpop.f32.mrf.mxu0
  %v2995 = vadd.f32 0.0, %v2994
  %v2996 = vpop.f32.mrf.mxu0
  %v2997 = vadd.f32 0.0, %v2996
  %2998 = vmatmul.bf16.gmra.mxu0 %v2583
  %v2999 = vpop.f32.mrf.mxu0
  %v3000 = vadd.f32 0.0, %v2999
  %v3001 = vpop.f32.mrf.mxu0
  %v3002 = vadd.f32 0.0, %v3001
  %3003 = vmatmul.bf16.gmra.mxu0 %v2585
  %v3004 = vpop.f32.mrf.mxu0
  %v3005 = vadd.f32 0.0, %v3004
  %v3006 = vpop.f32.mrf.mxu0
  %v3007 = vadd.f32 0.0, %v3006
  %3008 = vmatmul.bf16.gmra.mxu0 %v2587
  %v3009 = vpop.f32.mrf.mxu0
  %v3010 = vadd.f32 0.0, %v3009
  %v3011 = vpop.f32.mrf.mxu0
  %v3012 = vadd.f32 0.0, %v3011
  %3013 = vmatmul.bf16.gmra.mxu0 %v2589
  %v3014 = vpop.f32.mrf.mxu0
  %v3015 = vadd.f32 0.0, %v3014
  %v3016 = vpop.f32.mrf.mxu0
  %v3017 = vadd.f32 0.0, %v3016
  %3018 = vmatmul.bf16.gmra.mxu0 %v2591
  %v3019 = vpop.f32.mrf.mxu0
  %v3020 = vadd.f32 0.0, %v3019
  %v3021 = vpop.f32.mrf.mxu0
  %v3022 = vadd.f32 0.0, %v3021
  %3023 = vmatmul.bf16.gmra.mxu0 %v2593
  %v3024 = vpop.f32.mrf.mxu0
  %v3025 = vadd.f32 0.0, %v3024
  %v3026 = vpop.f32.mrf.mxu0
  %v3027 = vadd.f32 0.0, %v3026
  %3028 = vmatmul.bf16.gmra.mxu0 %v2595
  %v3029 = vpop.f32.mrf.mxu0
  %v3030 = vadd.f32 0.0, %v3029
  %v3031 = vpop.f32.mrf.mxu0
  %v3032 = vadd.f32 0.0, %v3031
  %3033 = vmatmul.bf16.gmra.mxu0 %v2597
  %v3034 = vpop.f32.mrf.mxu0
  %v3035 = vadd.f32 0.0, %v3034
  %v3036 = vpop.f32.mrf.mxu0
  %v3037 = vadd.f32 0.0, %v3036
  %3038 = vmatmul.bf16.gmra.mxu0 %v2599
  %v3039 = vpop.f32.mrf.mxu0
  %v3040 = vadd.f32 0.0, %v3039
  %v3041 = vpop.f32.mrf.mxu0
  %v3042 = vadd.f32 0.0, %v3041
  %3043 = vmatmul.bf16.gmra.mxu0 %v2601
  %v3044 = vpop.f32.mrf.mxu0
  %v3045 = vadd.f32 0.0, %v3044
  %v3046 = vpop.f32.mrf.mxu0
  %v3047 = vadd.f32 0.0, %v3046
  %3048 = vmatmul.bf16.gmra.mxu0 %v2603
  %v3049 = vpop.f32.mrf.mxu0
  %v3050 = vadd.f32 0.0, %v3049
  %v3051 = vpop.f32.mrf.mxu0
  %v3052 = vadd.f32 0.0, %v3051
  %3053 = vmatmul.bf16.gmra.mxu0 %v2605
  %v3054 = vpop.f32.mrf.mxu0
  %v3055 = vadd.f32 0.0, %v3054
  %v3056 = vpop.f32.mrf.mxu0
  %v3057 = vadd.f32 0.0, %v3056
  %3058 = vmatmul.bf16.gmra.mxu0 %v2607
  %v3059 = vpop.f32.mrf.mxu0
  %v3060 = vadd.f32 0.0, %v3059
  %v3061 = vpop.f32.mrf.mxu0
  %v3062 = vadd.f32 0.0, %v3061
  %3063 = vdwg.mxu0
  %3064 = vmatpush.bf16.msra.mxu0 0
  %3065 = vmatpush.bf16.msra.mxu0 0
  %3066 = vmatpush.bf16.msra.mxu0 0
  %3067 = vmatpush.bf16.msra.mxu0 0
  %3068 = vmatpush.bf16.msra.mxu0 0
  %3069 = vmatpush.bf16.msra.mxu0 %v2983
  %3070 = vmatpush.bf16.msra.mxu0 %v2970
  %3071 = vmatpush.bf16.msra.mxu0 %v2969
  %3072 = vmatmul.bf16.gmra.mxu0 %v2695
  %v3073 = vpop.f32.mrf.mxu0
  %v3074 = vadd.f32 %v2995, %v3073
  %v3075 = vpop.f32.mrf.mxu0
  %v3076 = vadd.f32 %v2997, %v3075
  %3077 = vmatmul.bf16.gmra.mxu0 %v2698
  %v3078 = vpop.f32.mrf.mxu0
  %v3079 = vadd.f32 %v3000, %v3078
  %v3080 = vpop.f32.mrf.mxu0
  %v3081 = vadd.f32 %v3002, %v3080
  %3082 = vmatmul.bf16.gmra.mxu0 %v2701
  %v3083 = vpop.f32.mrf.mxu0
  %v3084 = vadd.f32 %v3005, %v3083
  %v3085 = vpop.f32.mrf.mxu0
  %v3086 = vadd.f32 %v3007, %v3085
  %3087 = vmatmul.bf16.gmra.mxu0 %v2704
  %v3088 = vpop.f32.mrf.mxu0
  %v3089 = vadd.f32 %v3010, %v3088
  %v3090 = vpop.f32.mrf.mxu0
  %v3091 = vadd.f32 %v3012, %v3090
  %3092 = vmatmul.bf16.gmra.mxu0 %v2707
  %v3093 = vpop.f32.mrf.mxu0
  %v3094 = vadd.f32 %v3015, %v3093
  %v3095 = vpop.f32.mrf.mxu0
  %v3096 = vadd.f32 %v3017, %v3095
  %3097 = vmatmul.bf16.gmra.mxu0 %v2710
  %v3098 = vpop.f32.mrf.mxu0
  %v3099 = vadd.f32 %v3020, %v3098
  %v3100 = vpop.f32.mrf.mxu0
  %v3101 = vadd.f32 %v3022, %v3100
  %3102 = vmatmul.bf16.gmra.mxu0 %v2713
  %v3103 = vpop.f32.mrf.mxu0
  %v3104 = vadd.f32 %v3025, %v3103
  %v3105 = vpop.f32.mrf.mxu0
  %v3106 = vadd.f32 %v3027, %v3105
  %3107 = vmatmul.bf16.gmra.mxu0 %v2716
  %v3108 = vpop.f32.mrf.mxu0
  %v3109 = vadd.f32 %v3030, %v3108
  %v3110 = vpop.f32.mrf.mxu0
  %v3111 = vadd.f32 %v3032, %v3110
  %3112 = vmatmul.bf16.gmra.mxu0 %v2719
  %v3113 = vpop.f32.mrf.mxu0
  %v3114 = vadd.f32 %v3035, %v3113
  %v3115 = vpop.f32.mrf.mxu0
  %v3116 = vadd.f32 %v3037, %v3115
  %3117 = vmatmul.bf16.gmra.mxu0 %v2722
  %v3118 = vpop.f32.mrf.mxu0
  %v3119 = vadd.f32 %v3040, %v3118
  %v3120 = vpop.f32.mrf.mxu0
  %v3121 = vadd.f32 %v3042, %v3120
  %3122 = vmatmul.bf16.gmra.mxu0 %v2725
  %v3123 = vpop.f32.mrf.mxu0
  %v3124 = vadd.f32 %v3045, %v3123
  %v3125 = vpop.f32.mrf.mxu0
  %v3126 = vadd.f32 %v3047, %v3125
  %3127 = vmatmul.bf16.gmra.mxu0 %v2728
  %v3128 = vpop.f32.mrf.mxu0
  %v3129 = vadd.f32 %v3050, %v3128
  %v3130 = vpop.f32.mrf.mxu0
  %v3131 = vadd.f32 %v3052, %v3130
  %3132 = vmatmul.bf16.gmra.mxu0 %v2731
  %v3133 = vpop.f32.mrf.mxu0
  %v3134 = vadd.f32 %v3055, %v3133
  %v3135 = vpop.f32.mrf.mxu0
  %v3136 = vadd.f32 %v3057, %v3135
  %3137 = vmatmul.bf16.gmra.mxu0 %v2734
  %v3138 = vpop.f32.mrf.mxu0
  %v3139 = vadd.f32 %v3060, %v3138
  %v3140 = vpop.f32.mrf.mxu0
  %v3141 = vadd.f32 %v3062, %v3140
  %3142 = vdwg.mxu0
  %v3143 = vmax.f32 %v2829, %v3074
  %v3144 = vmax.f32 %v2831, %v3076
  %v3145 = vmax.f32 %v2834, %v3079
  %v3146 = vmax.f32 %v2836, %v3081
  %v3147 = vmax.f32 %v2839, %v3084
  %v3148 = vmax.f32 %v2841, %v3086
  %v3149 = vmax.f32 %v2844, %v3089
  %v3150 = vmax.f32 %v2846, %v3091
  %v3151 = vmax.f32 %v2849, %v3094
  %v3152 = vmax.f32 %v2851, %v3096
  %v3153 = vmax.f32 %v2854, %v3099
  %v3154 = vmax.f32 %v2856, %v3101
  %v3155 = vmax.f32 %v2859, %v3104
  %v3156 = vmax.f32 %v2861, %v3106
  %v3157 = vmax.f32 %v2864, %v3109
  %v3158 = vmax.f32 %v2866, %v3111
  %v3159 = vmax.f32 %v2869, %v3114
  %v3160 = vmax.f32 %v2871, %v3116
  %v3161 = vmax.f32 %v2874, %v3119
  %v3162 = vmax.f32 %v2876, %v3121
  %v3163 = vmax.f32 %v2879, %v3124
  %v3164 = vmax.f32 %v2881, %v3126
  %v3165 = vmax.f32 %v2884, %v3129
  %v3166 = vmax.f32 %v2886, %v3131
  %v3167 = vmax.f32 %v2889, %v3134
  %v3168 = vmax.f32 %v2891, %v3136
  %v3169 = vmax.f32 %v2894, %v3139
  %v3170 = vmax.f32 %v2896, %v3141
  %v3171 = vpack.c.bf16 %v3143, %v3143
  %v3172 = vpack.c.bf16 %v3144, %v3144
  %v3173 = vpack.c.bf16 %v3145, %v3145
  %v3174 = vpack.c.bf16 %v3146, %v3146
  %v3175 = vpack.c.bf16 %v3147, %v3147
  %v3176 = vpack.c.bf16 %v3148, %v3148
  %v3177 = vpack.c.bf16 %v3149, %v3149
  %v3178 = vpack.c.bf16 %v3150, %v3150
  %v3179 = vpack.c.bf16 %v3151, %v3151
  %v3180 = vpack.c.bf16 %v3152, %v3152
  %v3181 = vpack.c.bf16 %v3153, %v3153
  %v3182 = vpack.c.bf16 %v3154, %v3154
  %v3183 = vpack.c.bf16 %v3155, %v3155
  %v3184 = vpack.c.bf16 %v3156, %v3156
  %v3185 = vpack.c.bf16 %v3157, %v3157
  %v3186 = vpack.c.bf16 %v3158, %v3158
  %v3187 = vpack.c.bf16 %v3159, %v3159
  %v3188 = vpack.c.bf16 %v3160, %v3160
  %v3189 = vpack.c.bf16 %v3161, %v3161
  %v3190 = vpack.c.bf16 %v3162, %v3162
  %v3191 = vpack.c.bf16 %v3163, %v3163
  %v3192 = vpack.c.bf16 %v3164, %v3164
  %v3193 = vpack.c.bf16 %v3165, %v3165
  %v3194 = vpack.c.bf16 %v3166, %v3166
  %v3195 = vpack.c.bf16 %v3167, %v3167
  %v3196 = vpack.c.bf16 %v3168, %v3168
  %v3197 = vpack.c.bf16 %v3169, %v3169
  %v3198 = vpack.c.bf16 %v3170, %v3170
  %v3201 = vunpack.c.l.b16 %v3171
  %v3202 = vunpack.c.l.b16 %v3172
  %v3203 = vpack.c.b16 %v3202, %v3201
  %v3206 = vunpack.c.l.b16 %v3175
  %v3207 = vunpack.c.l.b16 %v3176
  %v3208 = vpack.c.b16 %v3207, %v3206
  %v3211 = vunpack.c.l.b16 %v3179
  %v3212 = vunpack.c.l.b16 %v3180
  %v3213 = vpack.c.b16 %v3212, %v3211
  %v3216 = vunpack.c.l.b16 %v3183
  %v3217 = vunpack.c.l.b16 %v3184
  %v3218 = vpack.c.b16 %v3217, %v3216
  %v3221 = vunpack.c.l.b16 %v3187
  %v3222 = vunpack.c.l.b16 %v3188
  %v3223 = vpack.c.b16 %v3222, %v3221
  %v3226 = vunpack.c.l.b16 %v3173
  %v3227 = vunpack.c.l.b16 %v3174
  %v3228 = vpack.c.b16 %v3227, %v3226
  %v3231 = vunpack.c.l.b16 %v3177
  %v3232 = vunpack.c.l.b16 %v3178
  %v3233 = vpack.c.b16 %v3232, %v3231
  %v3236 = vunpack.c.l.b16 %v3181
  %v3237 = vunpack.c.l.b16 %v3182
  %v3238 = vpack.c.b16 %v3237, %v3236
  %v3241 = vunpack.c.l.b16 %v3185
  %v3242 = vunpack.c.l.b16 %v3186
  %v3243 = vpack.c.b16 %v3242, %v3241
  %v3246 = vunpack.c.l.b16 %v3189
  %v3247 = vunpack.c.l.b16 %v3190
  %v3248 = vpack.c.b16 %v3247, %v3246
  %v3251 = vunpack.c.l.b16 %v3191
  %v3252 = vunpack.c.l.b16 %v3192
  %v3253 = vpack.c.b16 %v3252, %v3251
  %v3256 = vunpack.c.l.b16 %v3193
  %v3257 = vunpack.c.l.b16 %v3194
  %v3258 = vpack.c.b16 %v3257, %v3256
  %v3261 = vunpack.c.l.b16 %v3195
  %v3262 = vunpack.c.l.b16 %v3196
  %v3263 = vpack.c.b16 %v3262, %v3261
  %v3266 = vunpack.c.l.b16 %v3197
  %v3267 = vunpack.c.l.b16 %v3198
  %v3268 = vpack.c.b16 %v3267, %v3266
  %v3269 = vld [vmem:[%s6] sm:$0xff]
  %v3270 = vld [vmem:[%s6 + $0x8] sm:$0xff]
  %v3271 = vld [vmem:[%s6 + $0x10] sm:$0xff]
  %v3272 = vld [vmem:[%s6 + $0x18] sm:$0xff]
  %v3273 = vld [vmem:[%s6 + $0x20] sm:$0xff]
  %v3274 = vld [vmem:[%s6 + $0x28] sm:$0xff]
  %v3275 = vld [vmem:[%s6 + $0x30] sm:$0xff]
  %v3276 = vld [vmem:[%s6 + $0x38] sm:$0xff]
  %v3277 = vld [vmem:[%s6 + $0x40] sm:$0xff]
  %v3278 = vld [vmem:[%s6 + $0x48] sm:$0xff]
  %v3279 = vld [vmem:[%s6 + $0x50] sm:$0x33]
  %s3280 = scalar_lea.vmem %s6, 88
  %v3281 = vld [vmem:[%s3280] sm:$0xff]
  %v3282 = vld [vmem:[%s3280 + $0x8] sm:$0xff]
  %v3283 = vld [vmem:[%s3280 + $0x10] sm:$0xff]
  %v3284 = vld [vmem:[%s3280 + $0x18] sm:$0xff]
  %v3285 = vld [vmem:[%s3280 + $0x20] sm:$0xff]
  %v3286 = vld [vmem:[%s3280 + $0x28] sm:$0xff]
  %v3287 = vld [vmem:[%s3280 + $0x30] sm:$0xff]
  %v3288 = vld [vmem:[%s3280 + $0x38] sm:$0xff]
  %v3289 = vld [vmem:[%s3280 + $0x40] sm:$0xff]
  %v3290 = vld [vmem:[%s3280 + $0x48] sm:$0xff]
  %v3291 = vld [vmem:[%s3280 + $0x50] sm:$0x33]
  %v3303 = vunpack.c.l.b16 %v3281
  %v3304 = vunpack.c.h.b16 %v3281
  %v3305 = vunpack.c.l.b16 %v3282
  %v3306 = vunpack.c.h.b16 %v3282
  %v3307 = vunpack.c.l.b16 %v3283
  %v3308 = vunpack.c.h.b16 %v3283
  %v3309 = vunpack.c.l.b16 %v3284
  %v3310 = vunpack.c.h.b16 %v3284
  %v3311 = vunpack.c.l.b16 %v3285
  %v3312 = vunpack.c.h.b16 %v3285
  %v3313 = vunpack.c.l.b16 %v3286
  %v3314 = vunpack.c.h.b16 %v3286
  %v3315 = vunpack.c.l.b16 %v3287
  %v3316 = vunpack.c.h.b16 %v3287
  %v3317 = vunpack.c.l.b16 %v3288
  %v3318 = vunpack.c.h.b16 %v3288
  %v3319 = vunpack.c.l.b16 %v3289
  %v3320 = vunpack.c.h.b16 %v3289
  %v3321 = vunpack.c.l.b16 %v3290
  %v3322 = vunpack.c.h.b16 %v3290
  %v3323 = vunpack.c.l.b16 %v3291
  %v3324 = vunpack.c.h.b16 %v3291
  %v3325 = vpack.c.b16 %v3305, %v3303
  %v3326 = vpack.c.b16 %v3306, %v3304
  %v3327 = vpack.c.b16 %v3309, %v3307
  %v3328 = vpack.c.b16 %v3310, %v3308
  %v3329 = vpack.c.b16 %v3313, %v3311
  %v3330 = vpack.c.b16 %v3314, %v3312
  %v3331 = vpack.c.b16 %v3317, %v3315
  %v3332 = vpack.c.b16 %v3318, %v3316
  %v3333 = vpack.c.b16 %v3321, %v3319
  %v3334 = vpack.c.b16 %v3322, %v3320
  %v3335 = vpack.c.b16 %v3323, %v3323
  %v3336 = vpack.c.b16 %v3324, %v3324
  %vm3347 = vcmask 687104
  %v3349 = vsel %vm3347, %v3228, 0
  %v3352 = vsel %vm3347, %v3233, 0
  %v3355 = vsel %vm3347, %v3238, 0
  %v3358 = vsel %vm3347, %v3243, 0
  %v3361 = vsel %vm3347, %v3248, 0
  %vm3363 = vcmask 1041408
  %v3365 = vsel %vm3363, %v3335, 0
  %v3368 = vsel %vm3363, %v3336, 0
  %3370 = vmatpush.bf16.msra.mxu0 0
  %3371 = vmatpush.bf16.msra.mxu0 0
  %3372 = vmatpush.bf16.msra.mxu0 %v3365
  %3373 = vmatpush.bf16.msra.mxu0 %v3333
  %3374 = vmatpush.bf16.msra.mxu0 %v3331
  %3375 = vmatpush.bf16.msra.mxu0 %v3329
  %3376 = vmatpush.bf16.msra.mxu0 %v3327
  %3377 = vmatpush.bf16.msra.mxu0 %v3325
  %3378 = vmatmul.bf16.gmra.mxu0 %v3349
  %v3379 = vpop.f32.mrf.mxu0
  %v3380 = vadd.f32 0.0, %v3379
  %v3381 = vpop.f32.mrf.mxu0
  %v3382 = vadd.f32 0.0, %v3381
  %3383 = vmatmul.bf16.gmra.mxu0 %v3352
  %v3384 = vpop.f32.mrf.mxu0
  %v3385 = vadd.f32 0.0, %v3384
  %v3386 = vpop.f32.mrf.mxu0
  %v3387 = vadd.f32 0.0, %v3386
  %3388 = vmatmul.bf16.gmra.mxu0 %v3355
  %v3389 = vpop.f32.mrf.mxu0
  %v3390 = vadd.f32 0.0, %v3389
  %v3391 = vpop.f32.mrf.mxu0
  %v3392 = vadd.f32 0.0, %v3391
  %3393 = vmatmul.bf16.gmra.mxu0 %v3358
  %v3394 = vpop.f32.mrf.mxu0
  %v3395 = vadd.f32 0.0, %v3394
  %v3396 = vpop.f32.mrf.mxu0
  %v3397 = vadd.f32 0.0, %v3396
  %3398 = vmatmul.bf16.gmra.mxu0 %v3361
  %v3399 = vpop.f32.mrf.mxu0
  %v3400 = vadd.f32 0.0, %v3399
  %v3401 = vpop.f32.mrf.mxu0
  %v3402 = vadd.f32 0.0, %v3401
  %3403 = vdwg.mxu0
  %3404 = vmatpush.bf16.msra.mxu0 0
  %3405 = vmatpush.bf16.msra.mxu0 0
  %3406 = vmatpush.bf16.msra.mxu0 %v3368
  %3407 = vmatpush.bf16.msra.mxu0 %v3334
  %3408 = vmatpush.bf16.msra.mxu0 %v3332
  %3409 = vmatpush.bf16.msra.mxu0 %v3330
  %3410 = vmatpush.bf16.msra.mxu0 %v3328
  %3411 = vmatpush.bf16.msra.mxu0 %v3326
  %3412 = vmatmul.bf16.gmra.mxu0 %v3349
  %v3413 = vpop.f32.mrf.mxu0
  %v3414 = vadd.f32 0.0, %v3413
  %v3415 = vpop.f32.mrf.mxu0
  %v3416 = vadd.f32 0.0, %v3415
  %3417 = vmatmul.bf16.gmra.mxu0 %v3352
  %v3418 = vpop.f32.mrf.mxu0
  %v3419 = vadd.f32 0.0, %v3418
  %v3420 = vpop.f32.mrf.mxu0
  %v3421 = vadd.f32 0.0, %v3420
  %3422 = vmatmul.bf16.gmra.mxu0 %v3355
  %v3423 = vpop.f32.mrf.mxu0
  %v3424 = vadd.f32 0.0, %v3423
  %v3425 = vpop.f32.mrf.mxu0
  %v3426 = vadd.f32 0.0, %v3425
  %3427 = vmatmul.bf16.gmra.mxu0 %v3358
  %v3428 = vpop.f32.mrf.mxu0
  %v3429 = vadd.f32 0.0, %v3428
  %v3430 = vpop.f32.mrf.mxu0
  %v3431 = vadd.f32 0.0, %v3430
  %3432 = vmatmul.bf16.gmra.mxu0 %v3361
  %v3433 = vpop.f32.mrf.mxu0
  %v3434 = vadd.f32 0.0, %v3433
  %v3435 = vpop.f32.mrf.mxu0
  %v3436 = vadd.f32 0.0, %v3435
  %3437 = vdwg.mxu0
  %v3449 = vunpack.c.l.b16 %v3269
  %v3450 = vunpack.c.h.b16 %v3269
  %v3451 = vunpack.c.l.b16 %v3270
  %v3452 = vunpack.c.h.b16 %v3270
  %v3453 = vunpack.c.l.b16 %v3271
  %v3454 = vunpack.c.h.b16 %v3271
  %v3455 = vunpack.c.l.b16 %v3272
  %v3456 = vunpack.c.h.b16 %v3272
  %v3457 = vunpack.c.l.b16 %v3273
  %v3458 = vunpack.c.h.b16 %v3273
  %v3459 = vunpack.c.l.b16 %v3274
  %v3460 = vunpack.c.h.b16 %v3274
  %v3461 = vunpack.c.l.b16 %v3275
  %v3462 = vunpack.c.h.b16 %v3275
  %v3463 = vunpack.c.l.b16 %v3276
  %v3464 = vunpack.c.h.b16 %v3276
  %v3465 = vunpack.c.l.b16 %v3277
  %v3466 = vunpack.c.h.b16 %v3277
  %v3467 = vunpack.c.l.b16 %v3278
  %v3468 = vunpack.c.h.b16 %v3278
  %v3469 = vunpack.c.l.b16 %v3279
  %v3470 = vunpack.c.h.b16 %v3279
  %v3471 = vpack.c.b16 %v3451, %v3449
  %v3472 = vpack.c.b16 %v3452, %v3450
  %v3473 = vpack.c.b16 %v3455, %v3453
  %v3474 = vpack.c.b16 %v3456, %v3454
  %v3475 = vpack.c.b16 %v3459, %v3457
  %v3476 = vpack.c.b16 %v3460, %v3458
  %v3477 = vpack.c.b16 %v3463, %v3461
  %v3478 = vpack.c.b16 %v3464, %v3462
  %v3479 = vpack.c.b16 %v3467, %v3465
  %v3480 = vpack.c.b16 %v3468, %v3466
  %v3481 = vpack.c.b16 %v3469, %v3469
  %v3482 = vpack.c.b16 %v3470, %v3470
  %v3494 = vsel %vm3347, %v3203, 0
  %v3497 = vsel %vm3347, %v3208, 0
  %v3500 = vsel %vm3347, %v3213, 0
  %v3503 = vsel %vm3347, %v3218, 0
  %v3506 = vsel %vm3347, %v3223, 0
  %v3509 = vsel %vm3363, %v3481, 0
  %v3512 = vsel %vm3363, %v3482, 0
  %3514 = vmatpush.bf16.msra.mxu0 0
  %3515 = vmatpush.bf16.msra.mxu0 0
  %3516 = vmatpush.bf16.msra.mxu0 %v3509
  %3517 = vmatpush.bf16.msra.mxu0 %v3479
  %3518 = vmatpush.bf16.msra.mxu0 %v3477
  %3519 = vmatpush.bf16.msra.mxu0 %v3475
  %3520 = vmatpush.bf16.msra.mxu0 %v3473
  %3521 = vmatpush.bf16.msra.mxu0 %v3471
  %3522 = vmatmul.bf16.gmra.mxu0 %v3494
  %v3523 = vpop.f32.mrf.mxu0
  %v3524 = vadd.f32 %v3380, %v3523
  %v3525 = vpop.f32.mrf.mxu0
  %v3526 = vadd.f32 %v3382, %v3525
  %3527 = vmatmul.bf16.gmra.mxu0 %v3497
  %v3528 = vpop.f32.mrf.mxu0
  %v3529 = vadd.f32 %v3385, %v3528
  %v3530 = vpop.f32.mrf.mxu0
  %v3531 = vadd.f32 %v3387, %v3530
  %3532 = vmatmul.bf16.gmra.mxu0 %v3500
  %v3533 = vpop.f32.mrf.mxu0
  %v3534 = vadd.f32 %v3390, %v3533
  %v3535 = vpop.f32.mrf.mxu0
  %v3536 = vadd.f32 %v3392, %v3535
  %3537 = vmatmul.bf16.gmra.mxu0 %v3503
  %v3538 = vpop.f32.mrf.mxu0
  %v3539 = vadd.f32 %v3395, %v3538
  %v3540 = vpop.f32.mrf.mxu0
  %v3541 = vadd.f32 %v3397, %v3540
  %3542 = vmatmul.bf16.gmra.mxu0 %v3506
  %v3543 = vpop.f32.mrf.mxu0
  %v3544 = vadd.f32 %v3400, %v3543
  %v3545 = vpop.f32.mrf.mxu0
  %v3546 = vadd.f32 %v3402, %v3545
  %3547 = vdwg.mxu0
  %3548 = vmatpush.bf16.msra.mxu0 0
  %3549 = vmatpush.bf16.msra.mxu0 0
  %3550 = vmatpush.bf16.msra.mxu0 %v3512
  %3551 = vmatpush.bf16.msra.mxu0 %v3480
  %3552 = vmatpush.bf16.msra.mxu0 %v3478
  %3553 = vmatpush.bf16.msra.mxu0 %v3476
  %3554 = vmatpush.bf16.msra.mxu0 %v3474
  %3555 = vmatpush.bf16.msra.mxu0 %v3472
  %3556 = vmatmul.bf16.gmra.mxu0 %v3494
  %v3557 = vpop.f32.mrf.mxu0
  %v3558 = vadd.f32 %v3414, %v3557
  %v3559 = vpop.f32.mrf.mxu0
  %v3560 = vadd.f32 %v3416, %v3559
  %3561 = vmatmul.bf16.gmra.mxu0 %v3497
  %v3562 = vpop.f32.mrf.mxu0
  %v3563 = vadd.f32 %v3419, %v3562
  %v3564 = vpop.f32.mrf.mxu0
  %v3565 = vadd.f32 %v3421, %v3564
  %3566 = vmatmul.bf16.gmra.mxu0 %v3500
  %v3567 = vpop.f32.mrf.mxu0
  %v3568 = vadd.f32 %v3424, %v3567
  %v3569 = vpop.f32.mrf.mxu0
  %v3570 = vadd.f32 %v3426, %v3569
  %3571 = vmatmul.bf16.gmra.mxu0 %v3503
  %v3572 = vpop.f32.mrf.mxu0
  %v3573 = vadd.f32 %v3429, %v3572
  %v3574 = vpop.f32.mrf.mxu0
  %v3575 = vadd.f32 %v3431, %v3574
  %3576 = vmatmul.bf16.gmra.mxu0 %v3506
  %v3577 = vpop.f32.mrf.mxu0
  %v3578 = vadd.f32 %v3434, %v3577
  %v3579 = vpop.f32.mrf.mxu0
  %v3580 = vadd.f32 %v3436, %v3579
  %3581 = vdwg.mxu0
  %s3582 = scalar_lea.vmem %s6, 176
  %v3583 = vld [vmem:[%s3582] sm:$0xff]
  %v3584 = vld [vmem:[%s3582 + $0x8] sm:$0xff]
  %v3585 = vld [vmem:[%s3582 + $0x10] sm:$0xff]
  %v3586 = vld [vmem:[%s3582 + $0x18] sm:$0xff]
  %v3587 = vld [vmem:[%s3582 + $0x20] sm:$0xff]
  %v3588 = vld [vmem:[%s3582 + $0x28] sm:$0xff]
  %v3589 = vld [vmem:[%s3582 + $0x30] sm:$0xff]
  %v3590 = vld [vmem:[%s3582 + $0x38] sm:$0xff]
  %v3591 = vld [vmem:[%s3582 + $0x40] sm:$0xff]
  %v3592 = vld [vmem:[%s3582 + $0x48] sm:$0xff]
  %v3593 = vld [vmem:[%s3582 + $0x50] sm:$0x33]
  %v3605 = vunpack.c.l.b16 %v3583
  %v3606 = vunpack.c.h.b16 %v3583
  %v3607 = vunpack.c.l.b16 %v3584
  %v3608 = vunpack.c.h.b16 %v3584
  %v3609 = vunpack.c.l.b16 %v3585
  %v3610 = vunpack.c.h.b16 %v3585
  %v3611 = vunpack.c.l.b16 %v3586
  %v3612 = vunpack.c.h.b16 %v3586
  %v3613 = vunpack.c.l.b16 %v3587
  %v3614 = vunpack.c.h.b16 %v3587
  %v3615 = vunpack.c.l.b16 %v3588
  %v3616 = vunpack.c.h.b16 %v3588
  %v3617 = vunpack.c.l.b16 %v3589
  %v3618 = vunpack.c.h.b16 %v3589
  %v3619 = vunpack.c.l.b16 %v3590
  %v3620 = vunpack.c.h.b16 %v3590
  %v3621 = vunpack.c.l.b16 %v3591
  %v3622 = vunpack.c.h.b16 %v3591
  %v3623 = vunpack.c.l.b16 %v3592
  %v3624 = vunpack.c.h.b16 %v3592
  %v3625 = vunpack.c.l.b16 %v3593
  %v3626 = vunpack.c.h.b16 %v3593
  %v3627 = vpack.c.b16 %v3607, %v3605
  %v3628 = vpack.c.b16 %v3608, %v3606
  %v3629 = vpack.c.b16 %v3611, %v3609
  %v3630 = vpack.c.b16 %v3612, %v3610
  %v3631 = vpack.c.b16 %v3615, %v3613
  %v3632 = vpack.c.b16 %v3616, %v3614
  %v3633 = vpack.c.b16 %v3619, %v3617
  %v3634 = vpack.c.b16 %v3620, %v3618
  %v3635 = vpack.c.b16 %v3623, %v3621
  %v3636 = vpack.c.b16 %v3624, %v3622
  %v3637 = vpack.c.b16 %v3625, %v3625
  %v3638 = vpack.c.b16 %v3626, %v3626
  %v3650 = vsel %vm3347, %v3253, 0
  %v3653 = vsel %vm3363, %v3637, 0
  %v3656 = vsel %vm3363, %v3638, 0
  %3658 = vmatpush.bf16.msra.mxu0 0
  %3659 = vmatpush.bf16.msra.mxu0 0
  %3660 = vmatpush.bf16.msra.mxu0 %v3653
  %3661 = vmatpush.bf16.msra.mxu0 %v3635
  %3662 = vmatpush.bf16.msra.mxu0 %v3633
  %3663 = vmatpush.bf16.msra.mxu0 %v3631
  %3664 = vmatpush.bf16.msra.mxu0 %v3629
  %3665 = vmatpush.bf16.msra.mxu0 %v3627
  %3666 = vmatmul.bf16.gmra.mxu0 %v3497
  %v3667 = vpop.f32.mrf.mxu0
  %v3668 = vadd.f32 0.0, %v3667
  %v3669 = vpop.f32.mrf.mxu0
  %v3670 = vadd.f32 0.0, %v3669
  %3671 = vmatmul.bf16.gmra.mxu0 %v3500
  %v3672 = vpop.f32.mrf.mxu0
  %v3673 = vadd.f32 0.0, %v3672
  %v3674 = vpop.f32.mrf.mxu0
  %v3675 = vadd.f32 0.0, %v3674
  %3676 = vmatmul.bf16.gmra.mxu0 %v3503
  %v3677 = vpop.f32.mrf.mxu0
  %v3678 = vadd.f32 0.0, %v3677
  %v3679 = vpop.f32.mrf.mxu0
  %v3680 = vadd.f32 0.0, %v3679
  %3681 = vmatmul.bf16.gmra.mxu0 %v3506
  %v3682 = vpop.f32.mrf.mxu0
  %v3683 = vadd.f32 0.0, %v3682
  %v3684 = vpop.f32.mrf.mxu0
  %v3685 = vadd.f32 0.0, %v3684
  %3686 = vmatmul.bf16.gmra.mxu0 %v3650
  %v3687 = vpop.f32.mrf.mxu0
  %v3688 = vadd.f32 0.0, %v3687
  %v3689 = vpop.f32.mrf.mxu0
  %v3690 = vadd.f32 0.0, %v3689
  %3691 = vdwg.mxu0
  %3692 = vmatpush.bf16.msra.mxu0 0
  %3693 = vmatpush.bf16.msra.mxu0 0
  %3694 = vmatpush.bf16.msra.mxu0 %v3656
  %3695 = vmatpush.bf16.msra.mxu0 %v3636
  %3696 = vmatpush.bf16.msra.mxu0 %v3634
  %3697 = vmatpush.bf16.msra.mxu0 %v3632
  %3698 = vmatpush.bf16.msra.mxu0 %v3630
  %3699 = vmatpush.bf16.msra.mxu0 %v3628
  %3700 = vmatmul.bf16.gmra.mxu0 %v3497
  %v3701 = vpop.f32.mrf.mxu0
  %v3702 = vadd.f32 0.0, %v3701
  %v3703 = vpop.f32.mrf.mxu0
  %v3704 = vadd.f32 0.0, %v3703
  %3705 = vmatmul.bf16.gmra.mxu0 %v3500
  %v3706 = vpop.f32.mrf.mxu0
  %v3707 = vadd.f32 0.0, %v3706
  %v3708 = vpop.f32.mrf.mxu0
  %v3709 = vadd.f32 0.0, %v3708
  %3710 = vmatmul.bf16.gmra.mxu0 %v3503
  %v3711 = vpop.f32.mrf.mxu0
  %v3712 = vadd.f32 0.0, %v3711
  %v3713 = vpop.f32.mrf.mxu0
  %v3714 = vadd.f32 0.0, %v3713
  %3715 = vmatmul.bf16.gmra.mxu0 %v3506
  %v3716 = vpop.f32.mrf.mxu0
  %v3717 = vadd.f32 0.0, %v3716
  %v3718 = vpop.f32.mrf.mxu0
  %v3719 = vadd.f32 0.0, %v3718
  %3720 = vmatmul.bf16.gmra.mxu0 %v3650
  %v3721 = vpop.f32.mrf.mxu0
  %v3722 = vadd.f32 0.0, %v3721
  %v3723 = vpop.f32.mrf.mxu0
  %v3724 = vadd.f32 0.0, %v3723
  %3725 = vdwg.mxu0
  %v3726 = vadd.f32 %v3524, %v3668
  %v3727 = vadd.f32 %v3558, %v3702
  %v3728 = vadd.f32 %v3526, %v3670
  %v3729 = vadd.f32 %v3560, %v3704
  %v3730 = vadd.f32 %v3529, %v3673
  %v3731 = vadd.f32 %v3563, %v3707
  %v3732 = vadd.f32 %v3531, %v3675
  %v3733 = vadd.f32 %v3565, %v3709
  %v3734 = vadd.f32 %v3534, %v3678
  %v3735 = vadd.f32 %v3568, %v3712
  %v3736 = vadd.f32 %v3536, %v3680
  %v3737 = vadd.f32 %v3570, %v3714
  %v3738 = vadd.f32 %v3539, %v3683
  %v3739 = vadd.f32 %v3573, %v3717
  %v3740 = vadd.f32 %v3541, %v3685
  %v3741 = vadd.f32 %v3575, %v3719
  %v3742 = vadd.f32 %v3544, %v3688
  %v3743 = vadd.f32 %v3578, %v3722
  %v3744 = vadd.f32 %v3546, %v3690
  %v3745 = vadd.f32 %v3580, %v3724
  %s3746 = scalar_lea.vmem %s6, 264
  %v3747 = vld [vmem:[%s3746] sm:$0xff]
  %v3748 = vld [vmem:[%s3746 + $0x8] sm:$0xff]
  %v3749 = vld [vmem:[%s3746 + $0x10] sm:$0xff]
  %v3750 = vld [vmem:[%s3746 + $0x18] sm:$0xff]
  %v3751 = vld [vmem:[%s3746 + $0x20] sm:$0xff]
  %v3752 = vld [vmem:[%s3746 + $0x28] sm:$0xff]
  %v3753 = vld [vmem:[%s3746 + $0x30] sm:$0xff]
  %v3754 = vld [vmem:[%s3746 + $0x38] sm:$0xff]
  %v3755 = vld [vmem:[%s3746 + $0x40] sm:$0xff]
  %v3756 = vld [vmem:[%s3746 + $0x48] sm:$0xff]
  %v3757 = vld [vmem:[%s3746 + $0x50] sm:$0x33]
  %v3769 = vunpack.c.l.b16 %v3747
  %v3770 = vunpack.c.h.b16 %v3747
  %v3771 = vunpack.c.l.b16 %v3748
  %v3772 = vunpack.c.h.b16 %v3748
  %v3773 = vunpack.c.l.b16 %v3749
  %v3774 = vunpack.c.h.b16 %v3749
  %v3775 = vunpack.c.l.b16 %v3750
  %v3776 = vunpack.c.h.b16 %v3750
  %v3777 = vunpack.c.l.b16 %v3751
  %v3778 = vunpack.c.h.b16 %v3751
  %v3779 = vunpack.c.l.b16 %v3752
  %v3780 = vunpack.c.h.b16 %v3752
  %v3781 = vunpack.c.l.b16 %v3753
  %v3782 = vunpack.c.h.b16 %v3753
  %v3783 = vunpack.c.l.b16 %v3754
  %v3784 = vunpack.c.h.b16 %v3754
  %v3785 = vunpack.c.l.b16 %v3755
  %v3786 = vunpack.c.h.b16 %v3755
  %v3787 = vunpack.c.l.b16 %v3756
  %v3788 = vunpack.c.h.b16 %v3756
  %v3789 = vunpack.c.l.b16 %v3757
  %v3790 = vunpack.c.h.b16 %v3757
  %v3791 = vpack.c.b16 %v3771, %v3769
  %v3792 = vpack.c.b16 %v3772, %v3770
  %v3793 = vpack.c.b16 %v3775, %v3773
  %v3794 = vpack.c.b16 %v3776, %v3774
  %v3795 = vpack.c.b16 %v3779, %v3777
  %v3796 = vpack.c.b16 %v3780, %v3778
  %v3797 = vpack.c.b16 %v3783, %v3781
  %v3798 = vpack.c.b16 %v3784, %v3782
  %v3799 = vpack.c.b16 %v3787, %v3785
  %v3800 = vpack.c.b16 %v3788, %v3786
  %v3801 = vpack.c.b16 %v3789, %v3789
  %v3802 = vpack.c.b16 %v3790, %v3790
  %v3814 = vsel %vm3347, %v3258, 0
  %v3817 = vsel %vm3363, %v3801, 0
  %v3820 = vsel %vm3363, %v3802, 0
  %3822 = vmatpush.bf16.msra.mxu0 0
  %3823 = vmatpush.bf16.msra.mxu0 0
  %3824 = vmatpush.bf16.msra.mxu0 %v3817
  %3825 = vmatpush.bf16.msra.mxu0 %v3799
  %3826 = vmatpush.bf16.msra.mxu0 %v3797
  %3827 = vmatpush.bf16.msra.mxu0 %v3795
  %3828 = vmatpush.bf16.msra.mxu0 %v3793
  %3829 = vmatpush.bf16.msra.mxu0 %v3791
  %3830 = vmatmul.bf16.gmra.mxu0 %v3352
  %v3831 = vpop.f32.mrf.mxu0
  %v3832 = vadd.f32 0.0, %v3831
  %v3833 = vpop.f32.mrf.mxu0
  %v3834 = vadd.f32 0.0, %v3833
  %3835 = vmatmul.bf16.gmra.mxu0 %v3355
  %v3836 = vpop.f32.mrf.mxu0
  %v3837 = vadd.f32 0.0, %v3836
  %v3838 = vpop.f32.mrf.mxu0
  %v3839 = vadd.f32 0.0, %v3838
  %3840 = vmatmul.bf16.gmra.mxu0 %v3358
  %v3841 = vpop.f32.mrf.mxu0
  %v3842 = vadd.f32 0.0, %v3841
  %v3843 = vpop.f32.mrf.mxu0
  %v3844 = vadd.f32 0.0, %v3843
  %3845 = vmatmul.bf16.gmra.mxu0 %v3361
  %v3846 = vpop.f32.mrf.mxu0
  %v3847 = vadd.f32 0.0, %v3846
  %v3848 = vpop.f32.mrf.mxu0
  %v3849 = vadd.f32 0.0, %v3848
  %3850 = vmatmul.bf16.gmra.mxu0 %v3814
  %v3851 = vpop.f32.mrf.mxu0
  %v3852 = vadd.f32 0.0, %v3851
  %v3853 = vpop.f32.mrf.mxu0
  %v3854 = vadd.f32 0.0, %v3853
  %3855 = vdwg.mxu0
  %3856 = vmatpush.bf16.msra.mxu0 0
  %3857 = vmatpush.bf16.msra.mxu0 0
  %3858 = vmatpush.bf16.msra.mxu0 %v3820
  %3859 = vmatpush.bf16.msra.mxu0 %v3800
  %3860 = vmatpush.bf16.msra.mxu0 %v3798
  %3861 = vmatpush.bf16.msra.mxu0 %v3796
  %3862 = vmatpush.bf16.msra.mxu0 %v3794
  %3863 = vmatpush.bf16.msra.mxu0 %v3792
  %3864 = vmatmul.bf16.gmra.mxu0 %v3352
  %v3865 = vpop.f32.mrf.mxu0
  %v3866 = vadd.f32 0.0, %v3865
  %v3867 = vpop.f32.mrf.mxu0
  %v3868 = vadd.f32 0.0, %v3867
  %3869 = vmatmul.bf16.gmra.mxu0 %v3355
  %v3870 = vpop.f32.mrf.mxu0
  %v3871 = vadd.f32 0.0, %v3870
  %v3872 = vpop.f32.mrf.mxu0
  %v3873 = vadd.f32 0.0, %v3872
  %3874 = vmatmul.bf16.gmra.mxu0 %v3358
  %v3875 = vpop.f32.mrf.mxu0
  %v3876 = vadd.f32 0.0, %v3875
  %v3877 = vpop.f32.mrf.mxu0
  %v3878 = vadd.f32 0.0, %v3877
  %3879 = vmatmul.bf16.gmra.mxu0 %v3361
  %v3880 = vpop.f32.mrf.mxu0
  %v3881 = vadd.f32 0.0, %v3880
  %v3882 = vpop.f32.mrf.mxu0
  %v3883 = vadd.f32 0.0, %v3882
  %3884 = vmatmul.bf16.gmra.mxu0 %v3814
  %v3885 = vpop.f32.mrf.mxu0
  %v3886 = vadd.f32 0.0, %v3885
  %v3887 = vpop.f32.mrf.mxu0
  %v3888 = vadd.f32 0.0, %v3887
  %3889 = vdwg.mxu0
  %v3890 = vadd.f32 %v3726, %v3832
  %v3891 = vadd.f32 %v3727, %v3866
  %v3892 = vadd.f32 %v3728, %v3834
  %v3893 = vadd.f32 %v3729, %v3868
  %v3894 = vadd.f32 %v3730, %v3837
  %v3895 = vadd.f32 %v3731, %v3871
  %v3896 = vadd.f32 %v3732, %v3839
  %v3897 = vadd.f32 %v3733, %v3873
  %v3898 = vadd.f32 %v3734, %v3842
  %v3899 = vadd.f32 %v3735, %v3876
  %v3900 = vadd.f32 %v3736, %v3844
  %v3901 = vadd.f32 %v3737, %v3878
  %v3902 = vadd.f32 %v3738, %v3847
  %v3903 = vadd.f32 %v3739, %v3881
  %v3904 = vadd.f32 %v3740, %v3849
  %v3905 = vadd.f32 %v3741, %v3883
  %v3906 = vadd.f32 %v3742, %v3852
  %v3907 = vadd.f32 %v3743, %v3886
  %v3908 = vadd.f32 %v3744, %v3854
  %v3909 = vadd.f32 %v3745, %v3888
  %s3910 = scalar_lea.vmem %s6, 352
  %v3911 = vld [vmem:[%s3910] sm:$0xff]
  %v3912 = vld [vmem:[%s3910 + $0x8] sm:$0xff]
  %v3913 = vld [vmem:[%s3910 + $0x10] sm:$0xff]
  %v3914 = vld [vmem:[%s3910 + $0x18] sm:$0xff]
  %v3915 = vld [vmem:[%s3910 + $0x20] sm:$0xff]
  %v3916 = vld [vmem:[%s3910 + $0x28] sm:$0xff]
  %v3917 = vld [vmem:[%s3910 + $0x30] sm:$0xff]
  %v3918 = vld [vmem:[%s3910 + $0x38] sm:$0xff]
  %v3919 = vld [vmem:[%s3910 + $0x40] sm:$0xff]
  %v3920 = vld [vmem:[%s3910 + $0x48] sm:$0xff]
  %v3921 = vld [vmem:[%s3910 + $0x50] sm:$0x33]
  %v3933 = vunpack.c.l.b16 %v3911
  %v3934 = vunpack.c.h.b16 %v3911
  %v3935 = vunpack.c.l.b16 %v3912
  %v3936 = vunpack.c.h.b16 %v3912
  %v3937 = vunpack.c.l.b16 %v3913
  %v3938 = vunpack.c.h.b16 %v3913
  %v3939 = vunpack.c.l.b16 %v3914
  %v3940 = vunpack.c.h.b16 %v3914
  %v3941 = vunpack.c.l.b16 %v3915
  %v3942 = vunpack.c.h.b16 %v3915
  %v3943 = vunpack.c.l.b16 %v3916
  %v3944 = vunpack.c.h.b16 %v3916
  %v3945 = vunpack.c.l.b16 %v3917
  %v3946 = vunpack.c.h.b16 %v3917
  %v3947 = vunpack.c.l.b16 %v3918
  %v3948 = vunpack.c.h.b16 %v3918
  %v3949 = vunpack.c.l.b16 %v3919
  %v3950 = vunpack.c.h.b16 %v3919
  %v3951 = vunpack.c.l.b16 %v3920
  %v3952 = vunpack.c.h.b16 %v3920
  %v3953 = vunpack.c.l.b16 %v3921
  %v3954 = vunpack.c.h.b16 %v3921
  %v3955 = vpack.c.b16 %v3935, %v3933
  %v3956 = vpack.c.b16 %v3936, %v3934
  %v3957 = vpack.c.b16 %v3939, %v3937
  %v3958 = vpack.c.b16 %v3940, %v3938
  %v3959 = vpack.c.b16 %v3943, %v3941
  %v3960 = vpack.c.b16 %v3944, %v3942
  %v3961 = vpack.c.b16 %v3947, %v3945
  %v3962 = vpack.c.b16 %v3948, %v3946
  %v3963 = vpack.c.b16 %v3951, %v3949
  %v3964 = vpack.c.b16 %v3952, %v3950
  %v3965 = vpack.c.b16 %v3953, %v3953
  %v3966 = vpack.c.b16 %v3954, %v3954
  %v3978 = vsel %vm3347, %v3263, 0
  %v3981 = vsel %vm3363, %v3965, 0
  %v3984 = vsel %vm3363, %v3966, 0
  %3986 = vmatpush.bf16.msra.mxu0 0
  %3987 = vmatpush.bf16.msra.mxu0 0
  %3988 = vmatpush.bf16.msra.mxu0 %v3981
  %3989 = vmatpush.bf16.msra.mxu0 %v3963
  %3990 = vmatpush.bf16.msra.mxu0 %v3961
  %3991 = vmatpush.bf16.msra.mxu0 %v3959
  %3992 = vmatpush.bf16.msra.mxu0 %v3957
  %3993 = vmatpush.bf16.msra.mxu0 %v3955
  %3994 = vmatmul.bf16.gmra.mxu0 %v3500
  %v3995 = vpop.f32.mrf.mxu0
  %v3996 = vadd.f32 0.0, %v3995
  %v3997 = vpop.f32.mrf.mxu0
  %v3998 = vadd.f32 0.0, %v3997
  %3999 = vmatmul.bf16.gmra.mxu0 %v3503
  %v4000 = vpop.f32.mrf.mxu0
  %v4001 = vadd.f32 0.0, %v4000
  %v4002 = vpop.f32.mrf.mxu0
  %v4003 = vadd.f32 0.0, %v4002
  %4004 = vmatmul.bf16.gmra.mxu0 %v3506
  %v4005 = vpop.f32.mrf.mxu0
  %v4006 = vadd.f32 0.0, %v4005
  %v4007 = vpop.f32.mrf.mxu0
  %v4008 = vadd.f32 0.0, %v4007
  %4009 = vmatmul.bf16.gmra.mxu0 %v3650
  %v4010 = vpop.f32.mrf.mxu0
  %v4011 = vadd.f32 0.0, %v4010
  %v4012 = vpop.f32.mrf.mxu0
  %v4013 = vadd.f32 0.0, %v4012
  %4014 = vmatmul.bf16.gmra.mxu0 %v3978
  %v4015 = vpop.f32.mrf.mxu0
  %v4016 = vadd.f32 0.0, %v4015
  %v4017 = vpop.f32.mrf.mxu0
  %v4018 = vadd.f32 0.0, %v4017
  %4019 = vdwg.mxu0
  %4020 = vmatpush.bf16.msra.mxu0 0
  %4021 = vmatpush.bf16.msra.mxu0 0
  %4022 = vmatpush.bf16.msra.mxu0 %v3984
  %4023 = vmatpush.bf16.msra.mxu0 %v3964
  %4024 = vmatpush.bf16.msra.mxu0 %v3962
  %4025 = vmatpush.bf16.msra.mxu0 %v3960
  %4026 = vmatpush.bf16.msra.mxu0 %v3958
  %4027 = vmatpush.bf16.msra.mxu0 %v3956
  %4028 = vmatmul.bf16.gmra.mxu0 %v3500
  %v4029 = vpop.f32.mrf.mxu0
  %v4030 = vadd.f32 0.0, %v4029
  %v4031 = vpop.f32.mrf.mxu0
  %v4032 = vadd.f32 0.0, %v4031
  %4033 = vmatmul.bf16.gmra.mxu0 %v3503
  %v4034 = vpop.f32.mrf.mxu0
  %v4035 = vadd.f32 0.0, %v4034
  %v4036 = vpop.f32.mrf.mxu0
  %v4037 = vadd.f32 0.0, %v4036
  %4038 = vmatmul.bf16.gmra.mxu0 %v3506
  %v4039 = vpop.f32.mrf.mxu0
  %v4040 = vadd.f32 0.0, %v4039
  %v4041 = vpop.f32.mrf.mxu0
  %v4042 = vadd.f32 0.0, %v4041
  %4043 = vmatmul.bf16.gmra.mxu0 %v3650
  %v4044 = vpop.f32.mrf.mxu0
  %v4045 = vadd.f32 0.0, %v4044
  %v4046 = vpop.f32.mrf.mxu0
  %v4047 = vadd.f32 0.0, %v4046
  %4048 = vmatmul.bf16.gmra.mxu0 %v3978
  %v4049 = vpop.f32.mrf.mxu0
  %v4050 = vadd.f32 0.0, %v4049
  %v4051 = vpop.f32.mrf.mxu0
  %v4052 = vadd.f32 0.0, %v4051
  %4053 = vdwg.mxu0
  %v4054 = vadd.f32 %v3890, %v3996
  %v4055 = vadd.f32 %v3891, %v4030
  %v4056 = vadd.f32 %v3892, %v3998
  %v4057 = vadd.f32 %v3893, %v4032
  %v4058 = vadd.f32 %v3894, %v4001
  %v4059 = vadd.f32 %v3895, %v4035
  %v4060 = vadd.f32 %v3896, %v4003
  %v4061 = vadd.f32 %v3897, %v4037
  %v4062 = vadd.f32 %v3898, %v4006
  %v4063 = vadd.f32 %v3899, %v4040
  %v4064 = vadd.f32 %v3900, %v4008
  %v4065 = vadd.f32 %v3901, %v4042
  %v4066 = vadd.f32 %v3902, %v4011
  %v4067 = vadd.f32 %v3903, %v4045
  %v4068 = vadd.f32 %v3904, %v4013
  %v4069 = vadd.f32 %v3905, %v4047
  %v4070 = vadd.f32 %v3906, %v4016
  %v4071 = vadd.f32 %v3907, %v4050
  %v4072 = vadd.f32 %v3908, %v4018
  %v4073 = vadd.f32 %v3909, %v4052
  %v4074 = vld [vmem:[%s7] sm:$0x3]
  %v4076 = vperm.slane %v4074, 0
  %v4077 = vperm.slane %v4074, 1
  %v4080 = vadd.f32 %v4054, %v4076
  %v4081 = vadd.f32 %v4055, %v4077
  %v4082 = vadd.f32 %v4056, %v4076
  %v4083 = vadd.f32 %v4057, %v4077
  %v4084 = vadd.f32 %v4058, %v4076
  %v4085 = vadd.f32 %v4059, %v4077
  %v4086 = vadd.f32 %v4060, %v4076
  %v4087 = vadd.f32 %v4061, %v4077
  %v4088 = vadd.f32 %v4062, %v4076
  %v4089 = vadd.f32 %v4063, %v4077
  %v4090 = vadd.f32 %v4064, %v4076
  %v4091 = vadd.f32 %v4065, %v4077
  %v4092 = vadd.f32 %v4066, %v4076
  %v4093 = vadd.f32 %v4067, %v4077
  %v4094 = vadd.f32 %v4068, %v4076
  %v4095 = vadd.f32 %v4069, %v4077
  %v4096 = vadd.f32 %v4070, %v4076
  %v4097 = vadd.f32 %v4071, %v4077
  %v4098 = vadd.f32 %v4072, %v4076
  %v4099 = vadd.f32 %v4073, %v4077
  %v4100 = vmax.f32 %v4080, 0.0
  %v4101 = vmax.f32 %v4081, 0.0
  %v4102 = vmax.f32 %v4082, 0.0
  %v4103 = vmax.f32 %v4083, 0.0
  %v4104 = vmax.f32 %v4084, 0.0
  %v4105 = vmax.f32 %v4085, 0.0
  %v4106 = vmax.f32 %v4086, 0.0
  %v4107 = vmax.f32 %v4087, 0.0
  %v4108 = vmax.f32 %v4088, 0.0
  %v4109 = vmax.f32 %v4089, 0.0
  %v4110 = vmax.f32 %v4090, 0.0
  %v4111 = vmax.f32 %v4091, 0.0
  %v4112 = vmax.f32 %v4092, 0.0
  %v4113 = vmax.f32 %v4093, 0.0
  %v4114 = vmax.f32 %v4094, 0.0
  %v4115 = vmax.f32 %v4095, 0.0
  %v4116 = vmax.f32 %v4096, 0.0
  %v4117 = vmax.f32 %v4097, 0.0
  %v4118 = vmax.f32 %v4098, 0.0
  %v4119 = vmax.f32 %v4099, 0.0
  %4120 = vmatpush.bf16.msra.mxu0 0
  %4121 = vmatpush.bf16.msra.mxu0 0
  %4122 = vmatpush.bf16.msra.mxu0 %v3365
  %4123 = vmatpush.bf16.msra.mxu0 %v3333
  %4124 = vmatpush.bf16.msra.mxu0 %v3331
  %4125 = vmatpush.bf16.msra.mxu0 %v3329
  %4126 = vmatpush.bf16.msra.mxu0 %v3327
  %4127 = vmatpush.bf16.msra.mxu0 %v3325
  %4128 = vmatmul.bf16.gmra.mxu0 %v3497
  %v4129 = vpop.f32.mrf.mxu0
  %v4130 = vadd.f32 0.0, %v4129
  %v4131 = vpop.f32.mrf.mxu0
  %v4132 = vadd.f32 0.0, %v4131
  %4133 = vmatmul.bf16.gmra.mxu0 %v3500
  %v4134 = vpop.f32.mrf.mxu0
  %v4135 = vadd.f32 0.0, %v4134
  %v4136 = vpop.f32.mrf.mxu0
  %v4137 = vadd.f32 0.0, %v4136
  %4138 = vmatmul.bf16.gmra.mxu0 %v3503
  %v4139 = vpop.f32.mrf.mxu0
  %v4140 = vadd.f32 0.0, %v4139
  %v4141 = vpop.f32.mrf.mxu0
  %v4142 = vadd.f32 0.0, %v4141
  %4143 = vmatmul.bf16.gmra.mxu0 %v3506
  %v4144 = vpop.f32.mrf.mxu0
  %v4145 = vadd.f32 0.0, %v4144
  %v4146 = vpop.f32.mrf.mxu0
  %v4147 = vadd.f32 0.0, %v4146
  %4148 = vmatmul.bf16.gmra.mxu0 %v3650
  %v4149 = vpop.f32.mrf.mxu0
  %v4150 = vadd.f32 0.0, %v4149
  %v4151 = vpop.f32.mrf.mxu0
  %v4152 = vadd.f32 0.0, %v4151
  %4153 = vdwg.mxu0
  %4154 = vmatpush.bf16.msra.mxu0 0
  %4155 = vmatpush.bf16.msra.mxu0 0
  %4156 = vmatpush.bf16.msra.mxu0 %v3368
  %4157 = vmatpush.bf16.msra.mxu0 %v3334
  %4158 = vmatpush.bf16.msra.mxu0 %v3332
  %4159 = vmatpush.bf16.msra.mxu0 %v3330
  %4160 = vmatpush.bf16.msra.mxu0 %v3328
  %4161 = vmatpush.bf16.msra.mxu0 %v3326
  %4162 = vmatmul.bf16.gmra.mxu0 %v3497
  %v4163 = vpop.f32.mrf.mxu0
  %v4164 = vadd.f32 0.0, %v4163
  %v4165 = vpop.f32.mrf.mxu0
  %v4166 = vadd.f32 0.0, %v4165
  %4167 = vmatmul.bf16.gmra.mxu0 %v3500
  %v4168 = vpop.f32.mrf.mxu0
  %v4169 = vadd.f32 0.0, %v4168
  %v4170 = vpop.f32.mrf.mxu0
  %v4171 = vadd.f32 0.0, %v4170
  %4172 = vmatmul.bf16.gmra.mxu0 %v3503
  %v4173 = vpop.f32.mrf.mxu0
  %v4174 = vadd.f32 0.0, %v4173
  %v4175 = vpop.f32.mrf.mxu0
  %v4176 = vadd.f32 0.0, %v4175
  %4177 = vmatmul.bf16.gmra.mxu0 %v3506
  %v4178 = vpop.f32.mrf.mxu0
  %v4179 = vadd.f32 0.0, %v4178
  %v4180 = vpop.f32.mrf.mxu0
  %v4181 = vadd.f32 0.0, %v4180
  %4182 = vmatmul.bf16.gmra.mxu0 %v3650
  %v4183 = vpop.f32.mrf.mxu0
  %v4184 = vadd.f32 0.0, %v4183
  %v4185 = vpop.f32.mrf.mxu0
  %v4186 = vadd.f32 0.0, %v4185
  %4187 = vdwg.mxu0
  %4188 = vmatpush.bf16.msra.mxu0 0
  %4189 = vmatpush.bf16.msra.mxu0 0
  %4190 = vmatpush.bf16.msra.mxu0 %v3509
  %4191 = vmatpush.bf16.msra.mxu0 %v3479
  %4192 = vmatpush.bf16.msra.mxu0 %v3477
  %4193 = vmatpush.bf16.msra.mxu0 %v3475
  %4194 = vmatpush.bf16.msra.mxu0 %v3473
  %4195 = vmatpush.bf16.msra.mxu0 %v3471
  %4196 = vmatmul.bf16.gmra.mxu0 %v3349
  %v4197 = vpop.f32.mrf.mxu0
  %v4198 = vadd.f32 %v4130, %v4197
  %v4199 = vpop.f32.mrf.mxu0
  %v4200 = vadd.f32 %v4132, %v4199
  %4201 = vmatmul.bf16.gmra.mxu0 %v3352
  %v4202 = vpop.f32.mrf.mxu0
  %v4203 = vadd.f32 %v4135, %v4202
  %v4204 = vpop.f32.mrf.mxu0
  %v4205 = vadd.f32 %v4137, %v4204
  %4206 = vmatmul.bf16.gmra.mxu0 %v3355
  %v4207 = vpop.f32.mrf.mxu0
  %v4208 = vadd.f32 %v4140, %v4207
  %v4209 = vpop.f32.mrf.mxu0
  %v4210 = vadd.f32 %v4142, %v4209
  %4211 = vmatmul.bf16.gmra.mxu0 %v3358
  %v4212 = vpop.f32.mrf.mxu0
  %v4213 = vadd.f32 %v4145, %v4212
  %v4214 = vpop.f32.mrf.mxu0
  %v4215 = vadd.f32 %v4147, %v4214
  %4216 = vmatmul.bf16.gmra.mxu0 %v3361
  %v4217 = vpop.f32.mrf.mxu0
  %v4218 = vadd.f32 %v4150, %v4217
  %v4219 = vpop.f32.mrf.mxu0
  %v4220 = vadd.f32 %v4152, %v4219
  %4221 = vdwg.mxu0
  %4222 = vmatpush.bf16.msra.mxu0 0
  %4223 = vmatpush.bf16.msra.mxu0 0
  %4224 = vmatpush.bf16.msra.mxu0 %v3512
  %4225 = vmatpush.bf16.msra.mxu0 %v3480
  %4226 = vmatpush.bf16.msra.mxu0 %v3478
  %4227 = vmatpush.bf16.msra.mxu0 %v3476
  %4228 = vmatpush.bf16.msra.mxu0 %v3474
  %4229 = vmatpush.bf16.msra.mxu0 %v3472
  %4230 = vmatmul.bf16.gmra.mxu0 %v3349
  %v4231 = vpop.f32.mrf.mxu0
  %v4232 = vadd.f32 %v4164, %v4231
  %v4233 = vpop.f32.mrf.mxu0
  %v4234 = vadd.f32 %v4166, %v4233
  %4235 = vmatmul.bf16.gmra.mxu0 %v3352
  %v4236 = vpop.f32.mrf.mxu0
  %v4237 = vadd.f32 %v4169, %v4236
  %v4238 = vpop.f32.mrf.mxu0
  %v4239 = vadd.f32 %v4171, %v4238
  %4240 = vmatmul.bf16.gmra.mxu0 %v3355
  %v4241 = vpop.f32.mrf.mxu0
  %v4242 = vadd.f32 %v4174, %v4241
  %v4243 = vpop.f32.mrf.mxu0
  %v4244 = vadd.f32 %v4176, %v4243
  %4245 = vmatmul.bf16.gmra.mxu0 %v3358
  %v4246 = vpop.f32.mrf.mxu0
  %v4247 = vadd.f32 %v4179, %v4246
  %v4248 = vpop.f32.mrf.mxu0
  %v4249 = vadd.f32 %v4181, %v4248
  %4250 = vmatmul.bf16.gmra.mxu0 %v3361
  %v4251 = vpop.f32.mrf.mxu0
  %v4252 = vadd.f32 %v4184, %v4251
  %v4253 = vpop.f32.mrf.mxu0
  %v4254 = vadd.f32 %v4186, %v4253
  %4255 = vdwg.mxu0
  %4256 = vmatpush.bf16.msra.mxu0 0
  %4257 = vmatpush.bf16.msra.mxu0 0
  %4258 = vmatpush.bf16.msra.mxu0 %v3653
  %4259 = vmatpush.bf16.msra.mxu0 %v3635
  %4260 = vmatpush.bf16.msra.mxu0 %v3633
  %4261 = vmatpush.bf16.msra.mxu0 %v3631
  %4262 = vmatpush.bf16.msra.mxu0 %v3629
  %4263 = vmatpush.bf16.msra.mxu0 %v3627
  %4264 = vmatmul.bf16.gmra.mxu0 %v3352
  %v4265 = vpop.f32.mrf.mxu0
  %v4266 = vadd.f32 0.0, %v4265
  %v4267 = vpop.f32.mrf.mxu0
  %v4268 = vadd.f32 0.0, %v4267
  %4269 = vmatmul.bf16.gmra.mxu0 %v3355
  %v4270 = vpop.f32.mrf.mxu0
  %v4271 = vadd.f32 0.0, %v4270
  %v4272 = vpop.f32.mrf.mxu0
  %v4273 = vadd.f32 0.0, %v4272
  %4274 = vmatmul.bf16.gmra.mxu0 %v3358
  %v4275 = vpop.f32.mrf.mxu0
  %v4276 = vadd.f32 0.0, %v4275
  %v4277 = vpop.f32.mrf.mxu0
  %v4278 = vadd.f32 0.0, %v4277
  %4279 = vmatmul.bf16.gmra.mxu0 %v3361
  %v4280 = vpop.f32.mrf.mxu0
  %v4281 = vadd.f32 0.0, %v4280
  %v4282 = vpop.f32.mrf.mxu0
  %v4283 = vadd.f32 0.0, %v4282
  %4284 = vmatmul.bf16.gmra.mxu0 %v3814
  %v4285 = vpop.f32.mrf.mxu0
  %v4286 = vadd.f32 0.0, %v4285
  %v4287 = vpop.f32.mrf.mxu0
  %v4288 = vadd.f32 0.0, %v4287
  %4289 = vdwg.mxu0
  %4290 = vmatpush.bf16.msra.mxu0 0
  %4291 = vmatpush.bf16.msra.mxu0 0
  %4292 = vmatpush.bf16.msra.mxu0 %v3656
  %4293 = vmatpush.bf16.msra.mxu0 %v3636
  %4294 = vmatpush.bf16.msra.mxu0 %v3634
  %4295 = vmatpush.bf16.msra.mxu0 %v3632
  %4296 = vmatpush.bf16.msra.mxu0 %v3630
  %4297 = vmatpush.bf16.msra.mxu0 %v3628
  %4298 = vmatmul.bf16.gmra.mxu0 %v3352
  %v4299 = vpop.f32.mrf.mxu0
  %v4300 = vadd.f32 0.0, %v4299
  %v4301 = vpop.f32.mrf.mxu0
  %v4302 = vadd.f32 0.0, %v4301
  %4303 = vmatmul.bf16.gmra.mxu0 %v3355
  %v4304 = vpop.f32.mrf.mxu0
  %v4305 = vadd.f32 0.0, %v4304
  %v4306 = vpop.f32.mrf.mxu0
  %v4307 = vadd.f32 0.0, %v4306
  %4308 = vmatmul.bf16.gmra.mxu0 %v3358
  %v4309 = vpop.f32.mrf.mxu0
  %v4310 = vadd.f32 0.0, %v4309
  %v4311 = vpop.f32.mrf.mxu0
  %v4312 = vadd.f32 0.0, %v4311
  %4313 = vmatmul.bf16.gmra.mxu0 %v3361
  %v4314 = vpop.f32.mrf.mxu0
  %v4315 = vadd.f32 0.0, %v4314
  %v4316 = vpop.f32.mrf.mxu0
  %v4317 = vadd.f32 0.0, %v4316
  %4318 = vmatmul.bf16.gmra.mxu0 %v3814
  %v4319 = vpop.f32.mrf.mxu0
  %v4320 = vadd.f32 0.0, %v4319
  %v4321 = vpop.f32.mrf.mxu0
  %v4322 = vadd.f32 0.0, %v4321
  %4323 = vdwg.mxu0
  %v4324 = vadd.f32 %v4198, %v4266
  %v4325 = vadd.f32 %v4232, %v4300
  %v4326 = vadd.f32 %v4200, %v4268
  %v4327 = vadd.f32 %v4234, %v4302
  %v4328 = vadd.f32 %v4203, %v4271
  %v4329 = vadd.f32 %v4237, %v4305
  %v4330 = vadd.f32 %v4205, %v4273
  %v4331 = vadd.f32 %v4239, %v4307
  %v4332 = vadd.f32 %v4208, %v4276
  %v4333 = vadd.f32 %v4242, %v4310
  %v4334 = vadd.f32 %v4210, %v4278
  %v4335 = vadd.f32 %v4244, %v4312
  %v4336 = vadd.f32 %v4213, %v4281
  %v4337 = vadd.f32 %v4247, %v4315
  %v4338 = vadd.f32 %v4215, %v4283
  %v4339 = vadd.f32 %v4249, %v4317
  %v4340 = vadd.f32 %v4218, %v4286
  %v4341 = vadd.f32 %v4252, %v4320
  %v4342 = vadd.f32 %v4220, %v4288
  %v4343 = vadd.f32 %v4254, %v4322
  %4344 = vmatpush.bf16.msra.mxu0 0
  %4345 = vmatpush.bf16.msra.mxu0 0
  %4346 = vmatpush.bf16.msra.mxu0 %v3817
  %4347 = vmatpush.bf16.msra.mxu0 %v3799
  %4348 = vmatpush.bf16.msra.mxu0 %v3797
  %4349 = vmatpush.bf16.msra.mxu0 %v3795
  %4350 = vmatpush.bf16.msra.mxu0 %v3793
  %4351 = vmatpush.bf16.msra.mxu0 %v3791
  %4352 = vmatmul.bf16.gmra.mxu0 %v3500
  %v4353 = vpop.f32.mrf.mxu0
  %v4354 = vadd.f32 0.0, %v4353
  %v4355 = vpop.f32.mrf.mxu0
  %v4356 = vadd.f32 0.0, %v4355
  %4357 = vmatmul.bf16.gmra.mxu0 %v3503
  %v4358 = vpop.f32.mrf.mxu0
  %v4359 = vadd.f32 0.0, %v4358
  %v4360 = vpop.f32.mrf.mxu0
  %v4361 = vadd.f32 0.0, %v4360
  %4362 = vmatmul.bf16.gmra.mxu0 %v3506
  %v4363 = vpop.f32.mrf.mxu0
  %v4364 = vadd.f32 0.0, %v4363
  %v4365 = vpop.f32.mrf.mxu0
  %v4366 = vadd.f32 0.0, %v4365
  %4367 = vmatmul.bf16.gmra.mxu0 %v3650
  %v4368 = vpop.f32.mrf.mxu0
  %v4369 = vadd.f32 0.0, %v4368
  %v4370 = vpop.f32.mrf.mxu0
  %v4371 = vadd.f32 0.0, %v4370
  %4372 = vmatmul.bf16.gmra.mxu0 %v3978
  %v4373 = vpop.f32.mrf.mxu0
  %v4374 = vadd.f32 0.0, %v4373
  %v4375 = vpop.f32.mrf.mxu0
  %v4376 = vadd.f32 0.0, %v4375
  %4377 = vdwg.mxu0
  %4378 = vmatpush.bf16.msra.mxu0 0
  %4379 = vmatpush.bf16.msra.mxu0 0
  %4380 = vmatpush.bf16.msra.mxu0 %v3820
  %4381 = vmatpush.bf16.msra.mxu0 %v3800
  %4382 = vmatpush.bf16.msra.mxu0 %v3798
  %4383 = vmatpush.bf16.msra.mxu0 %v3796
  %4384 = vmatpush.bf16.msra.mxu0 %v3794
  %4385 = vmatpush.bf16.msra.mxu0 %v3792
  %4386 = vmatmul.bf16.gmra.mxu0 %v3500
  %v4387 = vpop.f32.mrf.mxu0
  %v4388 = vadd.f32 0.0, %v4387
  %v4389 = vpop.f32.mrf.mxu0
  %v4390 = vadd.f32 0.0, %v4389
  %4391 = vmatmul.bf16.gmra.mxu0 %v3503
  %v4392 = vpop.f32.mrf.mxu0
  %v4393 = vadd.f32 0.0, %v4392
  %v4394 = vpop.f32.mrf.mxu0
  %v4395 = vadd.f32 0.0, %v4394
  %4396 = vmatmul.bf16.gmra.mxu0 %v3506
  %v4397 = vpop.f32.mrf.mxu0
  %v4398 = vadd.f32 0.0, %v4397
  %v4399 = vpop.f32.mrf.mxu0
  %v4400 = vadd.f32 0.0, %v4399
  %4401 = vmatmul.bf16.gmra.mxu0 %v3650
  %v4402 = vpop.f32.mrf.mxu0
  %v4403 = vadd.f32 0.0, %v4402
  %v4404 = vpop.f32.mrf.mxu0
  %v4405 = vadd.f32 0.0, %v4404
  %4406 = vmatmul.bf16.gmra.mxu0 %v3978
  %v4407 = vpop.f32.mrf.mxu0
  %v4408 = vadd.f32 0.0, %v4407
  %v4409 = vpop.f32.mrf.mxu0
  %v4410 = vadd.f32 0.0, %v4409
  %4411 = vdwg.mxu0
  %v4412 = vadd.f32 %v4324, %v4354
  %v4413 = vadd.f32 %v4325, %v4388
  %v4414 = vadd.f32 %v4326, %v4356
  %v4415 = vadd.f32 %v4327, %v4390
  %v4416 = vadd.f32 %v4328, %v4359
  %v4417 = vadd.f32 %v4329, %v4393
  %v4418 = vadd.f32 %v4330, %v4361
  %v4419 = vadd.f32 %v4331, %v4395
  %v4420 = vadd.f32 %v4332, %v4364
  %v4421 = vadd.f32 %v4333, %v4398
  %v4422 = vadd.f32 %v4334, %v4366
  %v4423 = vadd.f32 %v4335, %v4400
  %v4424 = vadd.f32 %v4336, %v4369
  %v4425 = vadd.f32 %v4337, %v4403
  %v4426 = vadd.f32 %v4338, %v4371
  %v4427 = vadd.f32 %v4339, %v4405
  %v4428 = vadd.f32 %v4340, %v4374
  %v4429 = vadd.f32 %v4341, %v4408
  %v4430 = vadd.f32 %v4342, %v4376
  %v4431 = vadd.f32 %v4343, %v4410
  %v4433 = vsel %vm3347, %v3268, 0
  %4435 = vmatpush.bf16.msra.mxu0 0
  %4436 = vmatpush.bf16.msra.mxu0 0
  %4437 = vmatpush.bf16.msra.mxu0 %v3981
  %4438 = vmatpush.bf16.msra.mxu0 %v3963
  %4439 = vmatpush.bf16.msra.mxu0 %v3961
  %4440 = vmatpush.bf16.msra.mxu0 %v3959
  %4441 = vmatpush.bf16.msra.mxu0 %v3957
  %4442 = vmatpush.bf16.msra.mxu0 %v3955
  %4443 = vmatmul.bf16.gmra.mxu0 %v3355
  %v4444 = vpop.f32.mrf.mxu0
  %v4445 = vadd.f32 0.0, %v4444
  %v4446 = vpop.f32.mrf.mxu0
  %v4447 = vadd.f32 0.0, %v4446
  %4448 = vmatmul.bf16.gmra.mxu0 %v3358
  %v4449 = vpop.f32.mrf.mxu0
  %v4450 = vadd.f32 0.0, %v4449
  %v4451 = vpop.f32.mrf.mxu0
  %v4452 = vadd.f32 0.0, %v4451
  %4453 = vmatmul.bf16.gmra.mxu0 %v3361
  %v4454 = vpop.f32.mrf.mxu0
  %v4455 = vadd.f32 0.0, %v4454
  %v4456 = vpop.f32.mrf.mxu0
  %v4457 = vadd.f32 0.0, %v4456
  %4458 = vmatmul.bf16.gmra.mxu0 %v3814
  %v4459 = vpop.f32.mrf.mxu0
  %v4460 = vadd.f32 0.0, %v4459
  %v4461 = vpop.f32.mrf.mxu0
  %v4462 = vadd.f32 0.0, %v4461
  %4463 = vmatmul.bf16.gmra.mxu0 %v4433
  %v4464 = vpop.f32.mrf.mxu0
  %v4465 = vadd.f32 0.0, %v4464
  %v4466 = vpop.f32.mrf.mxu0
  %v4467 = vadd.f32 0.0, %v4466
  %4468 = vdwg.mxu0
  %4469 = vmatpush.bf16.msra.mxu0 0
  %4470 = vmatpush.bf16.msra.mxu0 0
  %4471 = vmatpush.bf16.msra.mxu0 %v3984
  %4472 = vmatpush.bf16.msra.mxu0 %v3964
  %4473 = vmatpush.bf16.msra.mxu0 %v3962
  %4474 = vmatpush.bf16.msra.mxu0 %v3960
  %4475 = vmatpush.bf16.msra.mxu0 %v3958
  %4476 = vmatpush.bf16.msra.mxu0 %v3956
  %4477 = vmatmul.bf16.gmra.mxu0 %v3355
  %v4478 = vpop.f32.mrf.mxu0
  %v4479 = vadd.f32 0.0, %v4478
  %v4480 = vpop.f32.mrf.mxu0
  %v4481 = vadd.f32 0.0, %v4480
  %4482 = vmatmul.bf16.gmra.mxu0 %v3358
  %v4483 = vpop.f32.mrf.mxu0
  %v4484 = vadd.f32 0.0, %v4483
  %v4485 = vpop.f32.mrf.mxu0
  %v4486 = vadd.f32 0.0, %v4485
  %4487 = vmatmul.bf16.gmra.mxu0 %v3361
  %v4488 = vpop.f32.mrf.mxu0
  %v4489 = vadd.f32 0.0, %v4488
  %v4490 = vpop.f32.mrf.mxu0
  %v4491 = vadd.f32 0.0, %v4490
  %4492 = vmatmul.bf16.gmra.mxu0 %v3814
  %v4493 = vpop.f32.mrf.mxu0
  %v4494 = vadd.f32 0.0, %v4493
  %v4495 = vpop.f32.mrf.mxu0
  %v4496 = vadd.f32 0.0, %v4495
  %4497 = vmatmul.bf16.gmra.mxu0 %v4433
  %v4498 = vpop.f32.mrf.mxu0
  %v4499 = vadd.f32 0.0, %v4498
  %v4500 = vpop.f32.mrf.mxu0
  %v4501 = vadd.f32 0.0, %v4500
  %4502 = vdwg.mxu0
  %v4503 = vadd.f32 %v4412, %v4445
  %v4504 = vadd.f32 %v4413, %v4479
  %v4505 = vadd.f32 %v4414, %v4447
  %v4506 = vadd.f32 %v4415, %v4481
  %v4507 = vadd.f32 %v4416, %v4450
  %v4508 = vadd.f32 %v4417, %v4484
  %v4509 = vadd.f32 %v4418, %v4452
  %v4510 = vadd.f32 %v4419, %v4486
  %v4511 = vadd.f32 %v4420, %v4455
  %v4512 = vadd.f32 %v4421, %v4489
  %v4513 = vadd.f32 %v4422, %v4457
  %v4514 = vadd.f32 %v4423, %v4491
  %v4515 = vadd.f32 %v4424, %v4460
  %v4516 = vadd.f32 %v4425, %v4494
  %v4517 = vadd.f32 %v4426, %v4462
  %v4518 = vadd.f32 %v4427, %v4496
  %v4519 = vadd.f32 %v4428, %v4465
  %v4520 = vadd.f32 %v4429, %v4499
  %v4521 = vadd.f32 %v4430, %v4467
  %v4522 = vadd.f32 %v4431, %v4501
  %v4523 = vadd.f32 %v4503, %v4076
  %v4524 = vadd.f32 %v4504, %v4077
  %v4525 = vadd.f32 %v4505, %v4076
  %v4526 = vadd.f32 %v4506, %v4077
  %v4527 = vadd.f32 %v4507, %v4076
  %v4528 = vadd.f32 %v4508, %v4077
  %v4529 = vadd.f32 %v4509, %v4076
  %v4530 = vadd.f32 %v4510, %v4077
  %v4531 = vadd.f32 %v4511, %v4076
  %v4532 = vadd.f32 %v4512, %v4077
  %v4533 = vadd.f32 %v4513, %v4076
  %v4534 = vadd.f32 %v4514, %v4077
  %v4535 = vadd.f32 %v4515, %v4076
  %v4536 = vadd.f32 %v4516, %v4077
  %v4537 = vadd.f32 %v4517, %v4076
  %v4538 = vadd.f32 %v4518, %v4077
  %v4539 = vadd.f32 %v4519, %v4076
  %v4540 = vadd.f32 %v4520, %v4077
  %v4541 = vadd.f32 %v4521, %v4076
  %v4542 = vadd.f32 %v4522, %v4077
  %v4543 = vmax.f32 %v4523, 0.0
  %v4544 = vmax.f32 %v4524, 0.0
  %v4545 = vmax.f32 %v4525, 0.0
  %v4546 = vmax.f32 %v4526, 0.0
  %v4547 = vmax.f32 %v4527, 0.0
  %v4548 = vmax.f32 %v4528, 0.0
  %v4549 = vmax.f32 %v4529, 0.0
  %v4550 = vmax.f32 %v4530, 0.0
  %v4551 = vmax.f32 %v4531, 0.0
  %v4552 = vmax.f32 %v4532, 0.0
  %v4553 = vmax.f32 %v4533, 0.0
  %v4554 = vmax.f32 %v4534, 0.0
  %v4555 = vmax.f32 %v4535, 0.0
  %v4556 = vmax.f32 %v4536, 0.0
  %v4557 = vmax.f32 %v4537, 0.0
  %v4558 = vmax.f32 %v4538, 0.0
  %v4559 = vmax.f32 %v4539, 0.0
  %v4560 = vmax.f32 %v4540, 0.0
  %v4561 = vmax.f32 %v4541, 0.0
  %v4562 = vmax.f32 %v4542, 0.0
  %v4563 = vmax.f32 %v4100, %v4543
  %v4564 = vmax.f32 %v4101, %v4544
  %v4565 = vmax.f32 %v4102, %v4545
  %v4566 = vmax.f32 %v4103, %v4546
  %v4567 = vmax.f32 %v4104, %v4547
  %v4568 = vmax.f32 %v4105, %v4548
  %v4569 = vmax.f32 %v4106, %v4549
  %v4570 = vmax.f32 %v4107, %v4550
  %v4571 = vmax.f32 %v4108, %v4551
  %v4572 = vmax.f32 %v4109, %v4552
  %v4573 = vmax.f32 %v4110, %v4553
  %v4574 = vmax.f32 %v4111, %v4554
  %v4575 = vmax.f32 %v4112, %v4555
  %v4576 = vmax.f32 %v4113, %v4556
  %v4577 = vmax.f32 %v4114, %v4557
  %v4578 = vmax.f32 %v4115, %v4558
  %v4579 = vmax.f32 %v4116, %v4559
  %v4580 = vmax.f32 %v4117, %v4560
  %v4581 = vmax.f32 %v4118, %v4561
  %v4582 = vmax.f32 %v4119, %v4562
  %v4583 = vpack.c.bf16 %v4565, %v4563
  %v4584 = vpack.c.bf16 %v4566, %v4564
  %v4585 = vpack.c.bf16 %v4569, %v4567
  %v4586 = vpack.c.bf16 %v4570, %v4568
  %v4587 = vpack.c.bf16 %v4573, %v4571
  %v4588 = vpack.c.bf16 %v4574, %v4572
  %v4589 = vpack.c.bf16 %v4577, %v4575
  %v4590 = vpack.c.bf16 %v4578, %v4576
  %v4591 = vpack.c.bf16 %v4581, %v4579
  %v4592 = vpack.c.bf16 %v4582, %v4580
  %v4593 = vld [vmem:[%s8] sm:$0xf]
  %v4594 = vld [vmem:[%s8 + $0x4] sm:$0xf]
  %v4595 = vld [vmem:[%s8 + $0x8] sm:$0xf]
  %v4596 = vld [vmem:[%s8 + $0xc] sm:$0xf]
  %v4597 = vld [vmem:[%s8 + $0x10] sm:$0xf]
  %v4598 = vld [vmem:[%s8 + $0x14] sm:$0xf]
  %v4599 = vld [vmem:[%s8 + $0x18] sm:$0xf]
  %v4600 = vld [vmem:[%s8 + $0x1c] sm:$0xf]
  %v4601 = vld [vmem:[%s8 + $0x20] sm:$0xf]
  %v4602 = vld [vmem:[%s8 + $0x24] sm:$0xf]
  %v4603 = vld [vmem:[%s8 + $0x28] sm:$0xf]
  %v4604 = vld [vmem:[%s8 + $0x2c] sm:$0xf]
  %v4605 = vld [vmem:[%s8 + $0x30] sm:$0xf]
  %v4606 = vld [vmem:[%s8 + $0x34] sm:$0xf]
  %v4607 = vld [vmem:[%s8 + $0x38] sm:$0xf]
  %v4608 = vld [vmem:[%s8 + $0x3c] sm:$0xf]
  %v4609 = vld [vmem:[%s8 + $0x40] sm:$0xf]
  %v4610 = vld [vmem:[%s8 + $0x44] sm:$0xf]
  %v4611 = vld [vmem:[%s8 + $0x48] sm:$0xf]
  %v4612 = vld [vmem:[%s8 + $0x4c] sm:$0xf]
  %v4633 = vunpack.c.l.b16 %v4593
  %v4634 = vunpack.c.l.b16 %v4594
  %v4635 = vunpack.c.l.b16 %v4595
  %v4636 = vunpack.c.l.b16 %v4596
  %v4637 = vunpack.c.l.b16 %v4597
  %v4638 = vunpack.c.l.b16 %v4598
  %v4639 = vunpack.c.l.b16 %v4599
  %v4640 = vunpack.c.l.b16 %v4600
  %v4641 = vunpack.c.l.b16 %v4601
  %v4642 = vunpack.c.l.b16 %v4602
  %v4643 = vunpack.c.l.b16 %v4603
  %v4644 = vunpack.c.l.b16 %v4604
  %v4645 = vunpack.c.l.b16 %v4605
  %v4646 = vunpack.c.l.b16 %v4606
  %v4647 = vunpack.c.l.b16 %v4607
  %v4648 = vunpack.c.l.b16 %v4608
  %v4649 = vunpack.c.l.b16 %v4609
  %v4650 = vunpack.c.l.b16 %v4610
  %v4651 = vunpack.c.l.b16 %v4611
  %v4652 = vunpack.c.l.b16 %v4612
  %v4653 = vpack.c.b16 %v4634, %v4633
  %v4654 = vpack.c.b16 %v4636, %v4635
  %v4655 = vpack.c.b16 %v4638, %v4637
  %v4656 = vpack.c.b16 %v4640, %v4639
  %v4657 = vpack.c.b16 %v4642, %v4641
  %v4658 = vpack.c.b16 %v4644, %v4643
  %v4659 = vpack.c.b16 %v4646, %v4645
  %v4660 = vpack.c.b16 %v4648, %v4647
  %v4661 = vpack.c.b16 %v4650, %v4649
  %v4662 = vpack.c.b16 %v4652, %v4651
  %vm4673 = vcmask 261120
  %v4675 = vsel %vm4673, %v4584, 0
  %v4678 = vsel %vm4673, %v4586, 0
  %v4681 = vsel %vm4673, %v4588, 0
  %v4684 = vsel %vm4673, %v4590, 0
  %v4687 = vsel %vm4673, %v4592, 0
  %4689 = vmatpush.bf16.msra.mxu0 %v4660
  %4690 = vmatpush.bf16.msra.mxu0 %v4659
  %4691 = vmatpush.bf16.msra.mxu0 %v4658
  %4692 = vmatpush.bf16.msra.mxu0 %v4657
  %4693 = vmatpush.bf16.msra.mxu0 %v4656
  %4694 = vmatpush.bf16.msra.mxu0 %v4655
  %4695 = vmatpush.bf16.msra.mxu0 %v4654
  %4696 = vmatpush.bf16.msra.mxu0 %v4653
  %4697 = vmatmul.bf16.gmra.mxu0 %v4583
  %v4698 = vpop.f32.mrf.mxu0
  %v4699 = vadd.f32 0.0, %v4698
  %v4700 = vpop.f32.mrf.mxu0
  %v4701 = vadd.f32 0.0, %v4700
  %4702 = vmatmul.bf16.gmra.mxu0 %v4585
  %v4703 = vpop.f32.mrf.mxu0
  %v4704 = vadd.f32 0.0, %v4703
  %v4705 = vpop.f32.mrf.mxu0
  %v4706 = vadd.f32 0.0, %v4705
  %4707 = vmatmul.bf16.gmra.mxu0 %v4587
  %v4708 = vpop.f32.mrf.mxu0
  %v4709 = vadd.f32 0.0, %v4708
  %v4710 = vpop.f32.mrf.mxu0
  %v4711 = vadd.f32 0.0, %v4710
  %4712 = vmatmul.bf16.gmra.mxu0 %v4589
  %v4713 = vpop.f32.mrf.mxu0
  %v4714 = vadd.f32 0.0, %v4713
  %v4715 = vpop.f32.mrf.mxu0
  %v4716 = vadd.f32 0.0, %v4715
  %4717 = vmatmul.bf16.gmra.mxu0 %v4591
  %v4718 = vpop.f32.mrf.mxu0
  %v4719 = vadd.f32 0.0, %v4718
  %v4720 = vpop.f32.mrf.mxu0
  %v4721 = vadd.f32 0.0, %v4720
  %4722 = vdwg.mxu0
  %4723 = vmatpush.bf16.msra.mxu0 0
  %4724 = vmatpush.bf16.msra.mxu0 0
  %4725 = vmatpush.bf16.msra.mxu0 0
  %4726 = vmatpush.bf16.msra.mxu0 0
  %4727 = vmatpush.bf16.msra.mxu0 0
  %4728 = vmatpush.bf16.msra.mxu0 0
  %4729 = vmatpush.bf16.msra.mxu0 %v4662
  %4730 = vmatpush.bf16.msra.mxu0 %v4661
  %4731 = vmatmul.bf16.gmra.mxu0 %v4675
  %v4732 = vpop.f32.mrf.mxu0
  %v4733 = vadd.f32 %v4699, %v4732
  %v4734 = vpop.f32.mrf.mxu0
  %v4735 = vadd.f32 %v4701, %v4734
  %4736 = vmatmul.bf16.gmra.mxu0 %v4678
  %v4737 = vpop.f32.mrf.mxu0
  %v4738 = vadd.f32 %v4704, %v4737
  %v4739 = vpop.f32.mrf.mxu0
  %v4740 = vadd.f32 %v4706, %v4739
  %4741 = vmatmul.bf16.gmra.mxu0 %v4681
  %v4742 = vpop.f32.mrf.mxu0
  %v4743 = vadd.f32 %v4709, %v4742
  %v4744 = vpop.f32.mrf.mxu0
  %v4745 = vadd.f32 %v4711, %v4744
  %4746 = vmatmul.bf16.gmra.mxu0 %v4684
  %v4747 = vpop.f32.mrf.mxu0
  %v4748 = vadd.f32 %v4714, %v4747
  %v4749 = vpop.f32.mrf.mxu0
  %v4750 = vadd.f32 %v4716, %v4749
  %4751 = vmatmul.bf16.gmra.mxu0 %v4687
  %v4752 = vpop.f32.mrf.mxu0
  %v4753 = vadd.f32 %v4719, %v4752
  %v4754 = vpop.f32.mrf.mxu0
  %v4755 = vadd.f32 %v4721, %v4754
  %4756 = vdwg.mxu0
  %v4757 = vld [vmem:[%s9] sm:$0xf]
  %v4758 = vld [vmem:[%s9 + $0x4] sm:$0xf]
  %v4759 = vld [vmem:[%s9 + $0x8] sm:$0xf]
  %v4760 = vld [vmem:[%s9 + $0xc] sm:$0xf]
  %v4761 = vld [vmem:[%s9 + $0x10] sm:$0xf]
  %v4762 = vld [vmem:[%s9 + $0x14] sm:$0xf]
  %v4763 = vld [vmem:[%s9 + $0x18] sm:$0xf]
  %v4764 = vld [vmem:[%s9 + $0x1c] sm:$0xf]
  %v4765 = vld [vmem:[%s9 + $0x20] sm:$0xf]
  %v4766 = vld [vmem:[%s9 + $0x24] sm:$0xf]
  %v4767 = vld [vmem:[%s9 + $0x28] sm:$0xf]
  %v4768 = vld [vmem:[%s9 + $0x2c] sm:$0xf]
  %v4769 = vld [vmem:[%s9 + $0x30] sm:$0xf]
  %v4770 = vld [vmem:[%s9 + $0x34] sm:$0xf]
  %v4771 = vld [vmem:[%s9 + $0x38] sm:$0xf]
  %v4772 = vld [vmem:[%s9 + $0x3c] sm:$0xf]
  %v4773 = vld [vmem:[%s9 + $0x40] sm:$0xf]
  %v4774 = vld [vmem:[%s9 + $0x44] sm:$0xf]
  %v4775 = vld [vmem:[%s9 + $0x48] sm:$0xf]
  %v4776 = vld [vmem:[%s9 + $0x4c] sm:$0xf]
  %v4797 = vunpack.c.l.b16 %v4757
  %v4798 = vunpack.c.l.b16 %v4758
  %v4799 = vunpack.c.l.b16 %v4759
  %v4800 = vunpack.c.l.b16 %v4760
  %v4801 = vunpack.c.l.b16 %v4761
  %v4802 = vunpack.c.l.b16 %v4762
  %v4803 = vunpack.c.l.b16 %v4763
  %v4804 = vunpack.c.l.b16 %v4764
  %v4805 = vunpack.c.l.b16 %v4765
  %v4806 = vunpack.c.l.b16 %v4766
  %v4807 = vunpack.c.l.b16 %v4767
  %v4808 = vunpack.c.l.b16 %v4768
  %v4809 = vunpack.c.l.b16 %v4769
  %v4810 = vunpack.c.l.b16 %v4770
  %v4811 = vunpack.c.l.b16 %v4771
  %v4812 = vunpack.c.l.b16 %v4772
  %v4813 = vunpack.c.l.b16 %v4773
  %v4814 = vunpack.c.l.b16 %v4774
  %v4815 = vunpack.c.l.b16 %v4775
  %v4816 = vunpack.c.l.b16 %v4776
  %v4817 = vpack.c.b16 %v4798, %v4797
  %v4818 = vpack.c.b16 %v4800, %v4799
  %v4819 = vpack.c.b16 %v4802, %v4801
  %v4820 = vpack.c.b16 %v4804, %v4803
  %v4821 = vpack.c.b16 %v4806, %v4805
  %v4822 = vpack.c.b16 %v4808, %v4807
  %v4823 = vpack.c.b16 %v4810, %v4809
  %v4824 = vpack.c.b16 %v4812, %v4811
  %v4825 = vpack.c.b16 %v4814, %v4813
  %v4826 = vpack.c.b16 %v4816, %v4815
  %4837 = vmatpush.bf16.msra.mxu0 %v4824
  %4838 = vmatpush.bf16.msra.mxu0 %v4823
  %4839 = vmatpush.bf16.msra.mxu0 %v4822
  %4840 = vmatpush.bf16.msra.mxu0 %v4821
  %4841 = vmatpush.bf16.msra.mxu0 %v4820
  %4842 = vmatpush.bf16.msra.mxu0 %v4819
  %4843 = vmatpush.bf16.msra.mxu0 %v4818
  %4844 = vmatpush.bf16.msra.mxu0 %v4817
  %4845 = vmatmul.bf16.gmra.mxu0 %v4583
  %v4846 = vpop.f32.mrf.mxu0
  %v4847 = vadd.f32 0.0, %v4846
  %v4848 = vpop.f32.mrf.mxu0
  %v4849 = vadd.f32 0.0, %v4848
  %4850 = vmatmul.bf16.gmra.mxu0 %v4585
  %v4851 = vpop.f32.mrf.mxu0
  %v4852 = vadd.f32 0.0, %v4851
  %v4853 = vpop.f32.mrf.mxu0
  %v4854 = vadd.f32 0.0, %v4853
  %4855 = vmatmul.bf16.gmra.mxu0 %v4587
  %v4856 = vpop.f32.mrf.mxu0
  %v4857 = vadd.f32 0.0, %v4856
  %v4858 = vpop.f32.mrf.mxu0
  %v4859 = vadd.f32 0.0, %v4858
  %4860 = vmatmul.bf16.gmra.mxu0 %v4589
  %v4861 = vpop.f32.mrf.mxu0
  %v4862 = vadd.f32 0.0, %v4861
  %v4863 = vpop.f32.mrf.mxu0
  %v4864 = vadd.f32 0.0, %v4863
  %4865 = vmatmul.bf16.gmra.mxu0 %v4591
  %v4866 = vpop.f32.mrf.mxu0
  %v4867 = vadd.f32 0.0, %v4866
  %v4868 = vpop.f32.mrf.mxu0
  %v4869 = vadd.f32 0.0, %v4868
  %4870 = vdwg.mxu0
  %4871 = vmatpush.bf16.msra.mxu0 0
  %4872 = vmatpush.bf16.msra.mxu0 0
  %4873 = vmatpush.bf16.msra.mxu0 0
  %4874 = vmatpush.bf16.msra.mxu0 0
  %4875 = vmatpush.bf16.msra.mxu0 0
  %4876 = vmatpush.bf16.msra.mxu0 0
  %4877 = vmatpush.bf16.msra.mxu0 %v4826
  %4878 = vmatpush.bf16.msra.mxu0 %v4825
  %4879 = vmatmul.bf16.gmra.mxu0 %v4675
  %v4880 = vpop.f32.mrf.mxu0
  %v4881 = vadd.f32 %v4847, %v4880
  %v4882 = vpop.f32.mrf.mxu0
  %v4883 = vadd.f32 %v4849, %v4882
  %4884 = vmatmul.bf16.gmra.mxu0 %v4678
  %v4885 = vpop.f32.mrf.mxu0
  %v4886 = vadd.f32 %v4852, %v4885
  %v4887 = vpop.f32.mrf.mxu0
  %v4888 = vadd.f32 %v4854, %v4887
  %4889 = vmatmul.bf16.gmra.mxu0 %v4681
  %v4890 = vpop.f32.mrf.mxu0
  %v4891 = vadd.f32 %v4857, %v4890
  %v4892 = vpop.f32.mrf.mxu0
  %v4893 = vadd.f32 %v4859, %v4892
  %4894 = vmatmul.bf16.gmra.mxu0 %v4684
  %v4895 = vpop.f32.mrf.mxu0
  %v4896 = vadd.f32 %v4862, %v4895
  %v4897 = vpop.f32.mrf.mxu0
  %v4898 = vadd.f32 %v4864, %v4897
  %4899 = vmatmul.bf16.gmra.mxu0 %v4687
  %v4900 = vpop.f32.mrf.mxu0
  %v4901 = vadd.f32 %v4867, %v4900
  %v4902 = vpop.f32.mrf.mxu0
  %v4903 = vadd.f32 %v4869, %v4902
  %4904 = vdwg.mxu0
  %v4905 = vmax.f32 %v4733, %v4881
  %v4906 = vmax.f32 %v4735, %v4883
  %v4907 = vmax.f32 %v4738, %v4886
  %v4908 = vmax.f32 %v4740, %v4888
  %v4909 = vmax.f32 %v4743, %v4891
  %v4910 = vmax.f32 %v4745, %v4893
  %v4911 = vmax.f32 %v4748, %v4896
  %v4912 = vmax.f32 %v4750, %v4898
  %v4913 = vmax.f32 %v4753, %v4901
  %v4914 = vmax.f32 %v4755, %v4903
  %v4915 = vpack.c.bf16 %v4905, %v4905
  %v4916 = vpack.c.bf16 %v4906, %v4906
  %v4917 = vpack.c.bf16 %v4907, %v4907
  %v4918 = vpack.c.bf16 %v4908, %v4908
  %v4919 = vpack.c.bf16 %v4909, %v4909
  %v4920 = vpack.c.bf16 %v4910, %v4910
  %v4921 = vpack.c.bf16 %v4911, %v4911
  %v4922 = vpack.c.bf16 %v4912, %v4912
  %v4923 = vpack.c.bf16 %v4913, %v4913
  %v4924 = vpack.c.bf16 %v4914, %v4914
  %v4925 = vld [vmem:[%s10] sm:$0xf]
  %v4926 = vld [vmem:[%s10 + $0x4] sm:$0xf]
  %v4927 = vld [vmem:[%s10 + $0x8] sm:$0xf]
  %v4928 = vld [vmem:[%s10 + $0xc] sm:$0xf]
  %v4929 = vld [vmem:[%s10 + $0x10] sm:$0xf]
  %v4930 = vld [vmem:[%s10 + $0x14] sm:$0xf]
  %v4931 = vld [vmem:[%s10 + $0x18] sm:$0xf]
  %v4932 = vld [vmem:[%s10 + $0x1c] sm:$0xf]
  %v4933 = vld [vmem:[%s10 + $0x20] sm:$0xf]
  %v4934 = vld [vmem:[%s10 + $0x24] sm:$0xf]
  %s4935 = scalar_lea.vmem %s10, 40
  %v4936 = vld [vmem:[%s4935] sm:$0xf]
  %v4937 = vld [vmem:[%s4935 + $0x4] sm:$0xf]
  %v4938 = vld [vmem:[%s4935 + $0x8] sm:$0xf]
  %v4939 = vld [vmem:[%s4935 + $0xc] sm:$0xf]
  %v4940 = vld [vmem:[%s4935 + $0x10] sm:$0xf]
  %v4941 = vld [vmem:[%s4935 + $0x14] sm:$0xf]
  %v4942 = vld [vmem:[%s4935 + $0x18] sm:$0xf]
  %v4943 = vld [vmem:[%s4935 + $0x1c] sm:$0xf]
  %v4944 = vld [vmem:[%s4935 + $0x20] sm:$0xf]
  %v4945 = vld [vmem:[%s4935 + $0x24] sm:$0xf]
  %v4948 = vunpack.c.l.b16 %v4917
  %v4949 = vunpack.c.l.b16 %v4918
  %v4950 = vpack.c.b16 %v4949, %v4948
  %v4961 = vunpack.c.l.b16 %v4936
  %v4962 = vunpack.c.l.b16 %v4937
  %v4963 = vunpack.c.l.b16 %v4938
  %v4964 = vunpack.c.l.b16 %v4939
  %v4965 = vunpack.c.l.b16 %v4940
  %v4966 = vunpack.c.l.b16 %v4941
  %v4967 = vunpack.c.l.b16 %v4942
  %v4968 = vunpack.c.l.b16 %v4943
  %v4969 = vunpack.c.l.b16 %v4944
  %v4970 = vunpack.c.l.b16 %v4945
  %v4971 = vpack.c.b16 %v4962, %v4961
  %v4972 = vpack.c.b16 %v4964, %v4963
  %v4973 = vpack.c.b16 %v4966, %v4965
  %v4974 = vpack.c.b16 %v4968, %v4967
  %v4975 = vpack.c.b16 %v4970, %v4969
  %vm4981 = vcmask 654336
  %v4983 = vsel %vm4981, %v4950, 0
  %4985 = vmatpush.bf16.msra.mxu0 0
  %4986 = vmatpush.bf16.msra.mxu0 0
  %4987 = vmatpush.bf16.msra.mxu0 0
  %4988 = vmatpush.bf16.msra.mxu0 %v4975
  %4989 = vmatpush.bf16.msra.mxu0 %v4974
  %4990 = vmatpush.bf16.msra.mxu0 %v4973
  %4991 = vmatpush.bf16.msra.mxu0 %v4972
  %4992 = vmatpush.bf16.msra.mxu0 %v4971
  %4993 = vmatmul.bf16.gmra.mxu0 %v4983
  %v4994 = vpop.f32.mrf.mxu0
  %v4995 = vadd.f32 0.0, %v4994
  %v4996 = vpop.f32.mrf.mxu0
  %v4997 = vadd.f32 0.0, %v4996
  %4998 = vdwg.mxu0
  %v5001 = vunpack.c.l.b16 %v4915
  %v5002 = vunpack.c.l.b16 %v4916
  %v5003 = vpack.c.b16 %v5002, %v5001
  %v5014 = vunpack.c.l.b16 %v4925
  %v5015 = vunpack.c.l.b16 %v4926
  %v5016 = vunpack.c.l.b16 %v4927
  %v5017 = vunpack.c.l.b16 %v4928
  %v5018 = vunpack.c.l.b16 %v4929
  %v5019 = vunpack.c.l.b16 %v4930
  %v5020 = vunpack.c.l.b16 %v4931
  %v5021 = vunpack.c.l.b16 %v4932
  %v5022 = vunpack.c.l.b16 %v4933
  %v5023 = vunpack.c.l.b16 %v4934
  %v5024 = vpack.c.b16 %v5015, %v5014
  %v5025 = vpack.c.b16 %v5017, %v5016
  %v5026 = vpack.c.b16 %v5019, %v5018
  %v5027 = vpack.c.b16 %v5021, %v5020
  %v5028 = vpack.c.b16 %v5023, %v5022
  %v5035 = vsel %vm4981, %v5003, 0
  %5037 = vmatpush.bf16.msra.mxu0 0
  %5038 = vmatpush.bf16.msra.mxu0 0
  %5039 = vmatpush.bf16.msra.mxu0 0
  %5040 = vmatpush.bf16.msra.mxu0 %v5028
  %5041 = vmatpush.bf16.msra.mxu0 %v5027
  %5042 = vmatpush.bf16.msra.mxu0 %v5026
  %5043 = vmatpush.bf16.msra.mxu0 %v5025
  %5044 = vmatpush.bf16.msra.mxu0 %v5024
  %5045 = vmatmul.bf16.gmra.mxu0 %v5035
  %v5046 = vpop.f32.mrf.mxu0
  %v5047 = vadd.f32 %v4995, %v5046
  %v5048 = vpop.f32.mrf.mxu0
  %v5049 = vadd.f32 %v4997, %v5048
  %5050 = vdwg.mxu0
  %s5051 = scalar_lea.vmem %s10, 80
  %v5052 = vld [vmem:[%s5051] sm:$0xf]
  %v5053 = vld [vmem:[%s5051 + $0x4] sm:$0xf]
  %v5054 = vld [vmem:[%s5051 + $0x8] sm:$0xf]
  %v5055 = vld [vmem:[%s5051 + $0xc] sm:$0xf]
  %v5056 = vld [vmem:[%s5051 + $0x10] sm:$0xf]
  %v5057 = vld [vmem:[%s5051 + $0x14] sm:$0xf]
  %v5058 = vld [vmem:[%s5051 + $0x18] sm:$0xf]
  %v5059 = vld [vmem:[%s5051 + $0x1c] sm:$0xf]
  %v5060 = vld [vmem:[%s5051 + $0x20] sm:$0xf]
  %v5061 = vld [vmem:[%s5051 + $0x24] sm:$0xf]
  %v5064 = vunpack.c.l.b16 %v4919
  %v5065 = vunpack.c.l.b16 %v4920
  %v5066 = vpack.c.b16 %v5065, %v5064
  %v5077 = vunpack.c.l.b16 %v5052
  %v5078 = vunpack.c.l.b16 %v5053
  %v5079 = vunpack.c.l.b16 %v5054
  %v5080 = vunpack.c.l.b16 %v5055
  %v5081 = vunpack.c.l.b16 %v5056
  %v5082 = vunpack.c.l.b16 %v5057
  %v5083 = vunpack.c.l.b16 %v5058
  %v5084 = vunpack.c.l.b16 %v5059
  %v5085 = vunpack.c.l.b16 %v5060
  %v5086 = vunpack.c.l.b16 %v5061
  %v5087 = vpack.c.b16 %v5078, %v5077
  %v5088 = vpack.c.b16 %v5080, %v5079
  %v5089 = vpack.c.b16 %v5082, %v5081
  %v5090 = vpack.c.b16 %v5084, %v5083
  %v5091 = vpack.c.b16 %v5086, %v5085
  %v5098 = vsel %vm4981, %v5066, 0
  %5100 = vmatpush.bf16.msra.mxu0 0
  %5101 = vmatpush.bf16.msra.mxu0 0
  %5102 = vmatpush.bf16.msra.mxu0 0
  %5103 = vmatpush.bf16.msra.mxu0 %v5091
  %5104 = vmatpush.bf16.msra.mxu0 %v5090
  %5105 = vmatpush.bf16.msra.mxu0 %v5089
  %5106 = vmatpush.bf16.msra.mxu0 %v5088
  %5107 = vmatpush.bf16.msra.mxu0 %v5087
  %5108 = vmatmul.bf16.gmra.mxu0 %v5098
  %v5109 = vpop.f32.mrf.mxu0
  %v5110 = vadd.f32 0.0, %v5109
  %v5111 = vpop.f32.mrf.mxu0
  %v5112 = vadd.f32 0.0, %v5111
  %5113 = vdwg.mxu0
  %v5114 = vadd.f32 %v5047, %v5110
  %v5115 = vadd.f32 %v5049, %v5112
  %s5116 = scalar_lea.vmem %s10, 120
  %v5117 = vld [vmem:[%s5116] sm:$0xf]
  %v5118 = vld [vmem:[%s5116 + $0x4] sm:$0xf]
  %v5119 = vld [vmem:[%s5116 + $0x8] sm:$0xf]
  %v5120 = vld [vmem:[%s5116 + $0xc] sm:$0xf]
  %v5121 = vld [vmem:[%s5116 + $0x10] sm:$0xf]
  %v5122 = vld [vmem:[%s5116 + $0x14] sm:$0xf]
  %v5123 = vld [vmem:[%s5116 + $0x18] sm:$0xf]
  %v5124 = vld [vmem:[%s5116 + $0x1c] sm:$0xf]
  %v5125 = vld [vmem:[%s5116 + $0x20] sm:$0xf]
  %v5126 = vld [vmem:[%s5116 + $0x24] sm:$0xf]
  %v5129 = vunpack.c.l.b16 %v4921
  %v5130 = vunpack.c.l.b16 %v4922
  %v5131 = vpack.c.b16 %v5130, %v5129
  %v5142 = vunpack.c.l.b16 %v5117
  %v5143 = vunpack.c.l.b16 %v5118
  %v5144 = vunpack.c.l.b16 %v5119
  %v5145 = vunpack.c.l.b16 %v5120
  %v5146 = vunpack.c.l.b16 %v5121
  %v5147 = vunpack.c.l.b16 %v5122
  %v5148 = vunpack.c.l.b16 %v5123
  %v5149 = vunpack.c.l.b16 %v5124
  %v5150 = vunpack.c.l.b16 %v5125
  %v5151 = vunpack.c.l.b16 %v5126
  %v5152 = vpack.c.b16 %v5143, %v5142
  %v5153 = vpack.c.b16 %v5145, %v5144
  %v5154 = vpack.c.b16 %v5147, %v5146
  %v5155 = vpack.c.b16 %v5149, %v5148
  %v5156 = vpack.c.b16 %v5151, %v5150
  %v5163 = vsel %vm4981, %v5131, 0
  %5165 = vmatpush.bf16.msra.mxu0 0
  %5166 = vmatpush.bf16.msra.mxu0 0
  %5167 = vmatpush.bf16.msra.mxu0 0
  %5168 = vmatpush.bf16.msra.mxu0 %v5156
  %5169 = vmatpush.bf16.msra.mxu0 %v5155
  %5170 = vmatpush.bf16.msra.mxu0 %v5154
  %5171 = vmatpush.bf16.msra.mxu0 %v5153
  %5172 = vmatpush.bf16.msra.mxu0 %v5152
  %5173 = vmatmul.bf16.gmra.mxu0 %v5163
  %v5174 = vpop.f32.mrf.mxu0
  %v5175 = vadd.f32 0.0, %v5174
  %v5176 = vpop.f32.mrf.mxu0
  %v5177 = vadd.f32 0.0, %v5176
  %5178 = vdwg.mxu0
  %v5179 = vadd.f32 %v5114, %v5175
  %v5180 = vadd.f32 %v5115, %v5177
  %s5181 = scalar_lea.vmem %s10, 160
  %v5182 = vld [vmem:[%s5181] sm:$0xf]
  %v5183 = vld [vmem:[%s5181 + $0x4] sm:$0xf]
  %v5184 = vld [vmem:[%s5181 + $0x8] sm:$0xf]
  %v5185 = vld [vmem:[%s5181 + $0xc] sm:$0xf]
  %v5186 = vld [vmem:[%s5181 + $0x10] sm:$0xf]
  %v5187 = vld [vmem:[%s5181 + $0x14] sm:$0xf]
  %v5188 = vld [vmem:[%s5181 + $0x18] sm:$0xf]
  %v5189 = vld [vmem:[%s5181 + $0x1c] sm:$0xf]
  %v5190 = vld [vmem:[%s5181 + $0x20] sm:$0xf]
  %v5191 = vld [vmem:[%s5181 + $0x24] sm:$0xf]
  %v5194 = vunpack.c.l.b16 %v4923
  %v5195 = vunpack.c.l.b16 %v4924
  %v5196 = vpack.c.b16 %v5195, %v5194
  %v5207 = vunpack.c.l.b16 %v5182
  %v5208 = vunpack.c.l.b16 %v5183
  %v5209 = vunpack.c.l.b16 %v5184
  %v5210 = vunpack.c.l.b16 %v5185
  %v5211 = vunpack.c.l.b16 %v5186
  %v5212 = vunpack.c.l.b16 %v5187
  %v5213 = vunpack.c.l.b16 %v5188
  %v5214 = vunpack.c.l.b16 %v5189
  %v5215 = vunpack.c.l.b16 %v5190
  %v5216 = vunpack.c.l.b16 %v5191
  %v5217 = vpack.c.b16 %v5208, %v5207
  %v5218 = vpack.c.b16 %v5210, %v5209
  %v5219 = vpack.c.b16 %v5212, %v5211
  %v5220 = vpack.c.b16 %v5214, %v5213
  %v5221 = vpack.c.b16 %v5216, %v5215
  %v5228 = vsel %vm4981, %v5196, 0
  %5230 = vmatpush.bf16.msra.mxu0 0
  %5231 = vmatpush.bf16.msra.mxu0 0
  %5232 = vmatpush.bf16.msra.mxu0 0
  %5233 = vmatpush.bf16.msra.mxu0 %v5221
  %5234 = vmatpush.bf16.msra.mxu0 %v5220
  %5235 = vmatpush.bf16.msra.mxu0 %v5219
  %5236 = vmatpush.bf16.msra.mxu0 %v5218
  %5237 = vmatpush.bf16.msra.mxu0 %v5217
  %5238 = vmatmul.bf16.gmra.mxu0 %v5228
  %v5239 = vpop.f32.mrf.mxu0
  %v5240 = vadd.f32 0.0, %v5239
  %v5241 = vpop.f32.mrf.mxu0
  %v5242 = vadd.f32 0.0, %v5241
  %5243 = vdwg.mxu0
  %v5244 = vadd.f32 %v5179, %v5240
  %v5245 = vadd.f32 %v5180, %v5242
  %v5246 = vld [vmem:[%s11] sm:$0x1]
  %v5248 = vperm.slane %v5246, 0
  %v5250 = vadd.f32 %v5244, %v5248
  %v5251 = vadd.f32 %v5245, %v5248
  %v5252 = vmax.f32 %v5250, 0.0
  %v5253 = vmax.f32 %v5251, 0.0
  %v5254 = vpack.c.bf16 %v5253, %v5252
  %v5255 = vld [vmem:[%s12] sm:$0xf]
  %v5256 = vld [vmem:[%s12 + $0x4] sm:$0xf]
  %v5257 = vld [vmem:[%s12 + $0x8] sm:$0xf]
  %v5258 = vld [vmem:[%s12 + $0xc] sm:$0xf]
  %v5259 = vld [vmem:[%s12 + $0x10] sm:$0xf]
  %v5260 = vld [vmem:[%s12 + $0x14] sm:$0xf]
  %v5261 = vld [vmem:[%s12 + $0x18] sm:$0xf]
  %v5262 = vld [vmem:[%s12 + $0x1c] sm:$0xf]
  %v5263 = vld [vmem:[%s12 + $0x20] sm:$0xf]
  %v5264 = vld [vmem:[%s12 + $0x24] sm:$0xf]
  %v5265 = vld [vmem:[%s12 + $0x28] sm:$0xf]
  %v5266 = vld [vmem:[%s12 + $0x2c] sm:$0xf]
  %v5267 = vld [vmem:[%s12 + $0x30] sm:$0xf]
  %v5268 = vld [vmem:[%s12 + $0x34] sm:$0xf]
  %v5269 = vld [vmem:[%s12 + $0x38] sm:$0xf]
  %v5270 = vld [vmem:[%s13] sm:$0x1]
  %v5272 = vperm.slane %v5270, 0
  %v5289 = vunpack.c.l.b16 %v5255
  %v5290 = vunpack.c.l.b16 %v5256
  %v5291 = vunpack.c.l.b16 %v5257
  %v5292 = vunpack.c.l.b16 %v5258
  %v5293 = vunpack.c.l.b16 %v5259
  %v5294 = vunpack.c.l.b16 %v5260
  %v5295 = vunpack.c.l.b16 %v5261
  %v5296 = vunpack.c.l.b16 %v5262
  %v5297 = vunpack.c.l.b16 %v5263
  %v5298 = vunpack.c.l.b16 %v5264
  %v5299 = vunpack.c.l.b16 %v5265
  %v5300 = vunpack.c.l.b16 %v5266
  %v5301 = vunpack.c.l.b16 %v5267
  %v5302 = vunpack.c.l.b16 %v5268
  %v5303 = vunpack.c.l.b16 %v5269
  %v5304 = vpack.c.b16 %v5290, %v5289
  %v5305 = vpack.c.b16 %v5292, %v5291
  %v5306 = vpack.c.b16 %v5294, %v5293
  %v5307 = vpack.c.b16 %v5296, %v5295
  %v5308 = vpack.c.b16 %v5298, %v5297
  %v5309 = vpack.c.b16 %v5300, %v5299
  %v5310 = vpack.c.b16 %v5302, %v5301
  %v5311 = vpack.c.b16 %v5303, %v5303
  %vm5319 = vcmask 982016
  %v5321 = vsel %vm5319, %v5254, 0
  %v5324 = vsel %vm2736, %v5311, 0
  %5326 = vmatpush.bf16.msra.mxu0 %v5324
  %5327 = vmatpush.bf16.msra.mxu0 %v5310
  %5328 = vmatpush.bf16.msra.mxu0 %v5309
  %5329 = vmatpush.bf16.msra.mxu0 %v5308
  %5330 = vmatpush.bf16.msra.mxu0 %v5307
  %5331 = vmatpush.bf16.msra.mxu0 %v5306
  %5332 = vmatpush.bf16.msra.mxu0 %v5305
  %5333 = vmatpush.bf16.msra.mxu0 %v5304
  %5334 = vmatmul.bf16.gmra.mxu0 %v5321
  %v5335 = vpop.f32.mrf.mxu0
  %v5336 = vadd.f32 %v5272, %v5335
  %v5337 = vpop.f32.mrf.mxu0
  %v5338 = vadd.f32 %v5272, %v5337
  %5339 = vdwg.mxu0
  %v5340 = vmax.f32 %v5336, 0.0
  %v5341 = vmax.f32 %v5338, 0.0
  %v5342 = vpack.c.bf16 %v5341, %v5340
  %v5343 = vld [vmem:[%s14] sm:$0xf]
  %v5344 = vld [vmem:[%s14 + $0x4] sm:$0xf]
  %v5345 = vld [vmem:[%s14 + $0x8] sm:$0xf]
  %v5346 = vld [vmem:[%s14 + $0xc] sm:$0xf]
  %v5347 = vld [vmem:[%s14 + $0x10] sm:$0xf]
  %v5348 = vld [vmem:[%s14 + $0x14] sm:$0xf]
  %v5349 = vld [vmem:[%s14 + $0x18] sm:$0xf]
  %v5350 = vld [vmem:[%s14 + $0x1c] sm:$0xf]
  %v5351 = vld [vmem:[%s14 + $0x20] sm:$0xf]
  %v5352 = vld [vmem:[%s14 + $0x24] sm:$0xf]
  %v5353 = vld [vmem:[%s14 + $0x28] sm:$0x3]
  %v5354 = vld [vmem:[%s15] sm:$0x1]
  %v5356 = vperm.slane %v5354, 0
  %v5369 = vunpack.c.l.b16 %v5343
  %v5370 = vunpack.c.l.b16 %v5344
  %v5371 = vunpack.c.l.b16 %v5345
  %v5372 = vunpack.c.l.b16 %v5346
  %v5373 = vunpack.c.l.b16 %v5347
  %v5374 = vunpack.c.l.b16 %v5348
  %v5375 = vunpack.c.l.b16 %v5349
  %v5376 = vunpack.c.l.b16 %v5350
  %v5377 = vunpack.c.l.b16 %v5351
  %v5378 = vunpack.c.l.b16 %v5352
  %v5379 = vunpack.c.l.b16 %v5353
  %v5380 = vpack.c.b16 %v5370, %v5369
  %v5381 = vpack.c.b16 %v5372, %v5371
  %v5382 = vpack.c.b16 %v5374, %v5373
  %v5383 = vpack.c.b16 %v5376, %v5375
  %v5384 = vpack.c.b16 %v5378, %v5377
  %v5385 = vpack.c.b16 %v5379, %v5379
  %v5392 = vsel %vm3347, %v5342, 0
  %v5395 = vsel %vm3363, %v5385, 0
  %5397 = vmatpush.bf16.msra.mxu0 0
  %5398 = vmatpush.bf16.msra.mxu0 0
  %5399 = vmatpush.bf16.msra.mxu0 %v5395
  %5400 = vmatpush.bf16.msra.mxu0 %v5384
  %5401 = vmatpush.bf16.msra.mxu0 %v5383
  %5402 = vmatpush.bf16.msra.mxu0 %v5382
  %5403 = vmatpush.bf16.msra.mxu0 %v5381
  %5404 = vmatpush.bf16.msra.mxu0 %v5380
  %5405 = vmatmul.bf16.gmra.mxu0 %v5392
  %v5406 = vpop.f32.mrf.mxu0
  %v5407 = vadd.f32 %v5356, %v5406
  %v5408 = vpop.f32.mrf.mxu0
  %v5409 = vadd.f32 %v5356, %v5408
  %5410 = vdwg.mxu0
  %vm5411 = vcmask 80896
  %5412 = vst.msk [vmem:[%s16] sm:$0xff] %vm5411, %v5407
  %5413 = vst.msk [vmem:[%s16 + $0x8] sm:$0xff] %vm5411, %v5409
  // Predicated region
  $region66: #{cifar_net_forward.1} parent=0 // pred_check
    _
  $region67: #{cifar_net_forward.1} parent=0 // pred_check_branch
    %5415 = sbr.rel (0) target = $region69
  $region68: #{cifar_net_forward.1} parent=0 // pred_region
    _
  $region69: #{cifar_net_forward.1} parent=0 // pred_fallthru
    _
  // Predicated region
  $region70: #{cifar_net_forward.1} parent=0 // pred_check
    _
  $region71: #{cifar_net_forward.1} parent=0 // pred_check_branch
    %5417 = sbr.rel (0) target = $region73
  $region72: #{cifar_net_forward.1} parent=0 // pred_region
    _
  $region73: #{cifar_net_forward.1} parent=0 // pred_fallthru
    _

</llo_original>
